<compile_context>
chip_gen: v6e
topology: v6e:2x2x1
jax: 0.10.0
libtpu: 0.0.40
codegen_flags: <defaults>
</compile_context>

<pallas_src>
import math
import jax
import jax.numpy as jnp
from jax.experimental import pallas as pl
from jax.experimental.pallas import tpu as pltpu

# ---- model hyper-parameters (small, but consistent with a RoBERTa encoder) --
BATCH = 2
SEQ = 8
HIDDEN = 32
NUM_HEADS = 2
HEAD_DIM = HIDDEN // NUM_HEADS
FFN = 64
NUM_LAYERS = 2
VOCAB = 100
LN_EPS = 1e-5     # TODO(synk): verify against the checkpoint's layer_norm_eps.
NORM_EPS = 1e-12  # F.normalize default eps

LANE = 128
HP = LANE          # lane-padded hidden   (32 real lanes of 128)
FP = LANE          # lane-padded ffn dim  (64 real lanes of 128)


# ----------------------------- Pallas kernel ---------------------------------
def _layer_norm(x, gamma, beta):
    """Two-pass LayerNorm over the first HIDDEN lanes of a 128-lane slab.

    Padded lanes of x are zero and padded lanes of gamma/beta are zero, so the
    padded lanes of the result stay exactly zero.
    """
    xr = x[:, :HIDDEN]
    mu = jnp.sum(xr, axis=-1, keepdims=True) * (1.0 / HIDDEN)
    d = xr - mu
    var = jnp.sum(d * d, axis=-1, keepdims=True) * (1.0 / HIDDEN)
    return (x - mu) * jax.lax.rsqrt(var + LN_EPS) * gamma + beta


def encoder_kernel(
    x_ref,        # (1, S, HP)   lane-padded embedded input (one batch row)
    mask_ref,     # (1, 1, S)    additive attention bias (0 / -1e9)
    hmask_ref,    # (NH, 1, HP)  per-head lane-window mask (0/1)
    lneg_ref, lneb_ref,          # (1, HP)        embedding LayerNorm
    wqkv_ref, bqkv_ref,          # (L, H, 3*HP) bf16, (L, 1, 3*HP) f32
    wo_ref, bo_ref,              # (L, H, HP)   bf16, (L, 1, HP)   f32
    ln1g_ref, ln1b_ref,          # (L, 1, HP)
    w1_ref, b1_ref,              # (L, H, FP)   bf16, (L, 1, FP)   f32
    w2_ref, b2_ref,              # (L, F, HP)   bf16, (L, 1, HP)   f32
    ln2g_ref, ln2b_ref,          # (L, 1, HP)
    out_ref,                     # (1, 1, HP)   lane-dense normalized CLS slab
):
    S = x_ref.shape[1]

    h = x_ref[0]                       # (S, HP) fp32, padded lanes zero
    mask = mask_ref[0]                 # (1, S)  broadcasts over heads & rows
    hmask = hmask_ref[...]             # (NH, 1, HP)

    # embedding LayerNorm (RoBERTa applies LN right after embeddings)
    h = _layer_norm(h, lneg_ref[...], lneb_ref[...])

    # Layer loop: Python-unrolled only because NUM_LAYERS is tiny (see TODO
    # at the top about a grid axis for the real 12-layer model).
    for l in range(NUM_LAYERS):
        # ---- fused QKV projection: one bf16 MXU matmul for all heads -------
        qkv = jnp.dot(h[:, :HIDDEN].astype(jnp.bfloat16), wqkv_ref[l],
                      preferred_element_type=jnp.float32) + bqkv_ref[l]
        q = qkv[:, 0:HP]               # heads packed in 16-lane windows
        k = qkv[:, HP:2 * HP]
        v = qkv[:, 2 * HP:3 * HP]

        # ---- attention: per-head lane masking + head-batched einsums -------
        # Masking Q to head n's lane window makes the full-128 contraction a
        # correct per-head score; masking V makes the summed context land in
        # each head's own lane window, so one Wo matmul finishes attention.
        qh = q[None, :, :] * hmask                          # (NH, S, HP)
        vh = v[None, :, :] * hmask                          # (NH, S, HP)
        kb = jnp.broadcast_to(k[None, :, :], (NUM_HEADS, S, HP))
        s = jnp.einsum("nqd,nkd->nqk", qh, kb,
                       preferred_element_type=jnp.float32)  # (NH, S, S)
        s = s + mask
        s = s - jnp.max(s, axis=-1, keepdims=True)
        p = jnp.exp(s)
        p = p * pl.reciprocal(jnp.sum(p, axis=-1, keepdims=True), approx=True)
        ctx = jnp.einsum("nqk,nkd->nqd", p, vh,
                         preferred_element_type=jnp.float32)  # (NH, S, HP)
        ctx = jnp.sum(ctx, axis=0)                            # (S, HP) packed
        attn = jnp.dot(ctx[:, :HIDDEN].astype(jnp.bfloat16), wo_ref[l],
                       preferred_element_type=jnp.float32) + bo_ref[l]
        h = _layer_norm(h + attn, ln1g_ref[l], ln1b_ref[l])

        # ---- feed-forward ---------------------------------------------------
        # TODO(synk): HF RoBERTa uses exact (erf) GELU; tanh approximation used
        # here for robust TPU lowering.
        ff = jnp.dot(h[:, :HIDDEN].astype(jnp.bfloat16), w1_ref[l],
                     preferred_element_type=jnp.float32) + b1_ref[l]
        ff = jax.nn.gelu(ff, approximate=True)
        ff = jnp.dot(ff[:, :FFN].astype(jnp.bfloat16), w2_ref[l],
                     preferred_element_type=jnp.float32) + b2_ref[l]
        h = _layer_norm(h + ff, ln2g_ref[l], ln2b_ref[l])

    # ---- CLS embedding + L2 normalize (F.normalize, p=2, dim=1) -------------
    cls = h[0:1, :]                                           # first row: CLS
    norm = jnp.sqrt(jnp.sum(cls * cls, axis=-1, keepdims=True))
    out_ref[0] = cls / jnp.maximum(norm, NORM_EPS)


# ------------------------- parameter preparation ------------------------------
def _pad_lane(a, n):
    pad = [(0, 0)] * (a.ndim - 1) + [(0, n - a.shape[-1])]
    return jnp.pad(a, pad)


def prepare_padded_params(p):
    """Restructure raw (torch-like) params into the layout the kernel consumes.

    * Q/K/V fused along the lane axis into one (L, H, 3*128) bf16 weight;
      heads stay in their natural 16-lane windows (no per-head padding).
    * Contraction (sublane) dims stay at their real sizes (32 / 64).
    * Only output (lane) dims are zero-padded to 128.
    * 1/sqrt(head_dim) is folded into Wq / bq (zero runtime cost).
    * Big projection weights stored bf16; biases / LayerNorm params fp32.
    """
    scale = 1.0 / math.sqrt(HEAD_DIM)

    wqkv = jnp.concatenate([_pad_lane(p["wq"] * scale, HP),
                            _pad_lane(p["wk"], HP),
                            _pad_lane(p["wv"], HP)], axis=-1)     # (L,H,3HP)
    bqkv = jnp.concatenate([_pad_lane(p["bq"] * scale, HP),
                            _pad_lane(p["bk"], HP),
                            _pad_lane(p["bv"], HP)], axis=-1)     # (L,1,3HP)

    lane = jnp.arange(HP)[None, None, :]
    head = jnp.arange(NUM_HEADS)[:, None, None]
    hmask = ((lane >= head * HEAD_DIM)
             & (lane < (head + 1) * HEAD_DIM)).astype(jnp.float32)  # (NH,1,HP)

    return {
        "hmask": hmask,
        "wqkv": wqkv.astype(jnp.bfloat16), "bqkv": bqkv,
        "wo": _pad_lane(p["wo"], HP).astype(jnp.bfloat16),        # (L,H,HP)
        "bo": _pad_lane(p["bo"], HP),
        # LayerNorm gamma/beta padded with ZEROS so padded lanes stay zero.
        "ln_e_g": _pad_lane(p["ln_e_g"], HP), "ln_e_b": _pad_lane(p["ln_e_b"], HP),
        "ln1_g": _pad_lane(p["ln1_g"], HP), "ln1_b": _pad_lane(p["ln1_b"], HP),
        "ln2_g": _pad_lane(p["ln2_g"], HP), "ln2_b": _pad_lane(p["ln2_b"], HP),
        "w1": _pad_lane(p["w1"], FP).astype(jnp.bfloat16),        # (L,H,FP)
        "b1": _pad_lane(p["b1"], FP),
        "w2": _pad_lane(p["w2"], HP).astype(jnp.bfloat16),        # (L,F,HP)
        "b2": _pad_lane(p["b2"], HP),
    }


# ------------------------------- wrapper --------------------------------------
def granite_embedding_forward(input_ids, attention_mask, params, padded_params):
    """input_ids: (B, S) int32; attention_mask: (B, S) int32 of 0/1."""
    B, S = input_ids.shape
    L = NUM_LAYERS

    # ---- embedding lookup (glue: gather stays in plain JAX) -----------------
    # TODO(synk): real RoBERTa offsets position ids by padding_idx+1 and masks
    # padding positions; irrelevant for these synthetic weights.
    word = jnp.take(params["word_emb"], input_ids, axis=0)       # (B, S, H)
    pos = params["pos_emb"][None, :S, :]
    tok = params["type_emb"][None, 0:1, :]
    x = (word + pos + tok).astype(jnp.float32)
    x_slab = jnp.pad(x, ((0, 0), (0, 0), (0, HP - HIDDEN)))      # (B, S, HP)

    # additive attention bias, shaped (B, 1, S)
    mask_bias = (1.0 - attention_mask.astype(jnp.float32))[:, None, :] * -1e9

    pp = padded_params

    def w_spec(shape):
        nd = len(shape)
        return pl.BlockSpec(shape, lambda b, _n=nd: (0,) * _n)

    out = pl.pallas_call(
        encoder_kernel,
        grid=(B,),
        in_specs=[
            pl.BlockSpec((1, S, HP), lambda b: (b, 0, 0)),       # x
            pl.BlockSpec((1, 1, S), lambda b: (b, 0, 0)),        # mask bias
            w_spec((NUM_HEADS, 1, HP)),                          # head mask
            w_spec((1, HP)), w_spec((1, HP)),                    # emb LN
            w_spec((L, HIDDEN, 3 * HP)), w_spec((L, 1, 3 * HP)), # QKV
            w_spec((L, HIDDEN, HP)), w_spec((L, 1, HP)),         # Wo
            w_spec((L, 1, HP)), w_spec((L, 1, HP)),              # LN1
            w_spec((L, HIDDEN, FP)), w_spec((L, 1, FP)),         # W1
            w_spec((L, FFN, HP)), w_spec((L, 1, HP)),            # W2
            w_spec((L, 1, HP)), w_spec((L, 1, HP)),              # LN2
        ],
        out_specs=pl.BlockSpec((1, 1, HP), lambda b: (b, 0, 0)),
        out_shape=jax.ShapeDtypeStruct((B, 1, HP), jnp.float32),
        compiler_params=pltpu.CompilerParams(
            dimension_semantics=("parallel",),       # v7x: batch over 2 TCs
            vmem_limit_bytes=32 * 1024 * 1024),
    )(
        x_slab, mask_bias, pp["hmask"],
        pp["ln_e_g"], pp["ln_e_b"],
        pp["wqkv"], pp["bqkv"], pp["wo"], pp["bo"],
        pp["ln1_g"], pp["ln1_b"],
        pp["w1"], pp["b1"], pp["w2"], pp["b2"],
        pp["ln2_g"], pp["ln2_b"],
    )
    return out[:, 0, :HIDDEN]                                    # (B, HIDDEN)


# --------------------------- plain-JAX reference ------------------------------
def reference_forward(input_ids, attention_mask, params):
    B, S = input_ids.shape
    word = jnp.take(params["word_emb"], input_ids, axis=0)
    x = (word + params["pos_emb"][None, :S, :]
         + params["type_emb"][None, 0:1, :]).astype(jnp.float32)
    bias = (1.0 - attention_mask.astype(jnp.float32))[:, None, None, :] * -1e9

    def ln(t, g, b):
        mu = jnp.mean(t, axis=-1, keepdims=True)
        var = jnp.mean((t - mu) ** 2, axis=-1, keepdims=True)
        return (t - mu) * jax.lax.rsqrt(var + LN_EPS) * g + b

    h = ln(x, params["ln_e_g"], params["ln_e_b"])
    scale = 1.0 / math.sqrt(HEAD_DIM)
    for l in range(NUM_LAYERS):
        q = h @ params["wq"][l] + params["bq"][l]
        k = h @ params["wk"][l] + params["bk"][l]
        v = h @ params["wv"][l] + params["bv"][l]

        def split(t):
            return t.reshape(B, S, NUM_HEADS, HEAD_DIM).transpose(0, 2, 1, 3)

        s = jnp.einsum("bnqd,bnkd->bnqk", split(q), split(k)) * scale + bias
        p = jax.nn.softmax(s, axis=-1)
        ctx = jnp.einsum("bnqk,bnkd->bnqd", p, split(v))
        ctx = ctx.transpose(0, 2, 1, 3).reshape(B, S, HIDDEN)
        attn = ctx @ params["wo"][l] + params["bo"][l]
        h = ln(h + attn, params["ln1_g"][l], params["ln1_b"][l])
        ff = jax.nn.gelu(h @ params["w1"][l] + params["b1"][l], approximate=True)
        ff = ff @ params["w2"][l] + params["b2"][l]
        h = ln(h + ff, params["ln2_g"][l], params["ln2_b"][l])
    cls = h[:, 0, :]
    n = jnp.sqrt(jnp.sum(cls * cls, axis=-1, keepdims=True))
    return cls / jnp.maximum(n, NORM_EPS)


# ------------------------------ init & main ------------------------------------
def init_params(key):
    L, H, F = NUM_LAYERS, HIDDEN, FFN
    ks = iter(jax.random.split(key, 32))
    n = lambda shape: 0.02 * jax.random.normal(next(ks), shape, jnp.float32)
    return {
        "word_emb": n((VOCAB, H)),
        "pos_emb": n((SEQ, H)),
        "type_emb": n((1, H)),
        "ln_e_g": jnp.ones((1, H), jnp.float32),
        "ln_e_b": jnp.zeros((1, H), jnp.float32),
        "wq": n((L, H, H)), "bq": jnp.zeros((L, 1, H), jnp.float32),
        "wk": n((L, H, H)), "bk": jnp.zeros((L, 1, H), jnp.float32),
        "wv": n((L, H, H)), "bv": jnp.zeros((L, 1, H), jnp.float32),
        "wo": n((L, H, H)), "bo": jnp.zeros((L, 1, H), jnp.float32),
        "ln1_g": jnp.ones((L, 1, H), jnp.float32),
        "ln1_b": jnp.zeros((L, 1, H), jnp.float32),
        "w1": n((L, H, F)), "b1": jnp.zeros((L, 1, F), jnp.float32),
        "w2": n((L, F, H)), "b2": jnp.zeros((L, 1, H), jnp.float32),
        "ln2_g": jnp.ones((L, 1, H), jnp.float32),
        "ln2_b": jnp.zeros((L, 1, H), jnp.float32),
    }


if __name__ == "__main__":
    key = jax.random.PRNGKey(0)
    kp, ki = jax.random.split(key)
    params = init_params(kp)
    padded = prepare_padded_params(params)

    input_ids = jax.random.randint(ki, (BATCH, SEQ), 0, VOCAB, dtype=jnp.int32)
    attention_mask = jnp.array(
        [[1] * SEQ, [1] * (SEQ - 3) + [0] * 3], dtype=jnp.int32)

    emb = granite_embedding_forward(input_ids, attention_mask, params, padded)
    emb = jax.block_until_ready(emb)
    assert emb.shape == (BATCH, HIDDEN)

    # sanity 1: output must be unit-norm along dim=1 (as F.normalize guarantees)
    norms = jnp.sqrt(jnp.sum(emb * emb, axis=1))
    assert jnp.allclose(norms, 1.0, atol=1e-4), norms

    # sanity 2: matches a plain-JAX fp32 reference of the same synthetic
    # encoder (tolerance covers bf16 matmul operands and the approximate
    # softmax reciprocal inside the kernel).
    ref = reference_forward(input_ids, attention_mask, params)
    assert jnp.allclose(emb, ref, atol=1e-2), float(jnp.max(jnp.abs(emb - ref)))

    print("KERNEL_OK")
</pallas_src>

<mosaic_0001>
module attributes {stable_mosaic.version = 11 : i64} {
  func.func @encoder_kernel(%arg0: i32, %arg1: memref<1x8x128xf32, #tpu.memory_space<vmem>>, %arg2: memref<1x1x8xf32, #tpu.memory_space<vmem>>, %arg3: memref<2x1x128xf32, #tpu.memory_space<vmem>>, %arg4: memref<1x128xf32, #tpu.memory_space<vmem>>, %arg5: memref<1x128xf32, #tpu.memory_space<vmem>>, %arg6: memref<2x32x384xbf16, #tpu.memory_space<vmem>>, %arg7: memref<2x1x384xf32, #tpu.memory_space<vmem>>, %arg8: memref<2x32x128xbf16, #tpu.memory_space<vmem>>, %arg9: memref<2x1x128xf32, #tpu.memory_space<vmem>>, %arg10: memref<2x1x128xf32, #tpu.memory_space<vmem>>, %arg11: memref<2x1x128xf32, #tpu.memory_space<vmem>>, %arg12: memref<2x32x128xbf16, #tpu.memory_space<vmem>>, %arg13: memref<2x1x128xf32, #tpu.memory_space<vmem>>, %arg14: memref<2x64x128xbf16, #tpu.memory_space<vmem>>, %arg15: memref<2x1x128xf32, #tpu.memory_space<vmem>>, %arg16: memref<2x1x128xf32, #tpu.memory_space<vmem>>, %arg17: memref<2x1x128xf32, #tpu.memory_space<vmem>>, %arg18: memref<1x1x128xf32, #tpu.memory_space<vmem>>) attributes {dimension_semantics = [#tpu.dimension_semantics<parallel>], iteration_bounds = array<i64: 2>, scalar_prefetch = 0 : i64, scratch_operands = 0 : i64, tpu.core_type = #tpu.core_type<tc>, window_params = [{transform_indices = @transform_0, window_bounds = array<i64: 1, 8, 128>}, {transform_indices = @transform_1, window_bounds = array<i64: 1, 1, 8>}, {pipeline_mode = #tpu.pipeline_mode<synchronous>, transform_indices = @transform_2, window_bounds = array<i64: 2, 1, 128>}, {pipeline_mode = #tpu.pipeline_mode<synchronous>, transform_indices = @transform_3, window_bounds = array<i64: 1, 128>}, {pipeline_mode = #tpu.pipeline_mode<synchronous>, transform_indices = @transform_4, window_bounds = array<i64: 1, 128>}, {pipeline_mode = #tpu.pipeline_mode<synchronous>, transform_indices = @transform_5, window_bounds = array<i64: 2, 32, 384>}, {pipeline_mode = #tpu.pipeline_mode<synchronous>, transform_indices = @transform_6, window_bounds = array<i64: 2, 1, 384>}, {pipeline_mode = #tpu.pipeline_mode<synchronous>, transform_indices = @transform_7, window_bounds = array<i64: 2, 32, 128>}, {pipeline_mode = #tpu.pipeline_mode<synchronous>, transform_indices = @transform_8, window_bounds = array<i64: 2, 1, 128>}, {pipeline_mode = #tpu.pipeline_mode<synchronous>, transform_indices = @transform_9, window_bounds = array<i64: 2, 1, 128>}, {pipeline_mode = #tpu.pipeline_mode<synchronous>, transform_indices = @transform_10, window_bounds = array<i64: 2, 1, 128>}, {pipeline_mode = #tpu.pipeline_mode<synchronous>, transform_indices = @transform_11, window_bounds = array<i64: 2, 32, 128>}, {pipeline_mode = #tpu.pipeline_mode<synchronous>, transform_indices = @transform_12, window_bounds = array<i64: 2, 1, 128>}, {pipeline_mode = #tpu.pipeline_mode<synchronous>, transform_indices = @transform_13, window_bounds = array<i64: 2, 64, 128>}, {pipeline_mode = #tpu.pipeline_mode<synchronous>, transform_indices = @transform_14, window_bounds = array<i64: 2, 1, 128>}, {pipeline_mode = #tpu.pipeline_mode<synchronous>, transform_indices = @transform_15, window_bounds = array<i64: 2, 1, 128>}, {pipeline_mode = #tpu.pipeline_mode<synchronous>, transform_indices = @transform_16, window_bounds = array<i64: 2, 1, 128>}, {transform_indices = @transform_17, window_bounds = array<i64: 1, 1, 128>}]} {
    %c0 = arith.constant 0 : index
    %c0_0 = arith.constant 0 : index
    %c0_1 = arith.constant 0 : index
    %0 = vector.load %arg1[%c0, %c0_0, %c0_1] : memref<1x8x128xf32, #tpu.memory_space<vmem>>, vector<1x8x128xf32>
    %1 = vector.shape_cast %0 : vector<1x8x128xf32> to vector<8x128xf32>
    %c0_2 = arith.constant 0 : index
    %c0_3 = arith.constant 0 : index
    %c0_4 = arith.constant 0 : index
    %2 = vector.load %arg2[%c0_2, %c0_3, %c0_4] : memref<1x1x8xf32, #tpu.memory_space<vmem>>, vector<1x1x8xf32>
    %3 = vector.shape_cast %2 : vector<1x1x8xf32> to vector<1x8xf32>
    %c0_5 = arith.constant 0 : index
    %c0_6 = arith.constant 0 : index
    %c0_7 = arith.constant 0 : index
    %4 = vector.load %arg3[%c0_5, %c0_6, %c0_7] : memref<2x1x128xf32, #tpu.memory_space<vmem>>, vector<2x1x128xf32>
    %c0_8 = arith.constant 0 : index
    %c0_9 = arith.constant 0 : index
    %5 = vector.load %arg4[%c0_8, %c0_9] : memref<1x128xf32, #tpu.memory_space<vmem>>, vector<1x128xf32>
    %c0_10 = arith.constant 0 : index
    %c0_11 = arith.constant 0 : index
    %6 = vector.load %arg5[%c0_10, %c0_11] : memref<1x128xf32, #tpu.memory_space<vmem>>, vector<1x128xf32>
    %7 = vector.extract_strided_slice %1 {offsets = [0, 0], sizes = [8, 32], strides = [1, 1]} : vector<8x128xf32> to vector<8x32xf32>
    %cst = arith.constant dense<0.000000e+00> : vector<8xf32>
    %8 = vector.multi_reduction <add>, %7, %cst [1] : vector<8x32xf32> to vector<8xf32>
    %9 = vector.shape_cast %8 : vector<8xf32> to vector<8x1xf32>
    %cst_12 = arith.constant 3.125000e-02 : f32
    %10 = vector.broadcast %cst_12 : f32 to vector<8x1xf32>
    %11 = arith.mulf %9, %10 : vector<8x1xf32>
    %12 = vector.broadcast %11 : vector<8x1xf32> to vector<8x32xf32>
    %13 = arith.subf %7, %12 : vector<8x32xf32>
    %14 = arith.mulf %13, %13 : vector<8x32xf32>
    %cst_13 = arith.constant dense<0.000000e+00> : vector<8xf32>
    %15 = vector.multi_reduction <add>, %14, %cst_13 [1] : vector<8x32xf32> to vector<8xf32>
    %16 = vector.shape_cast %15 : vector<8xf32> to vector<8x1xf32>
    %cst_14 = arith.constant 3.125000e-02 : f32
    %17 = vector.broadcast %cst_14 : f32 to vector<8x1xf32>
    %18 = arith.mulf %16, %17 : vector<8x1xf32>
    %19 = vector.broadcast %11 : vector<8x1xf32> to vector<8x128xf32>
    %20 = arith.subf %1, %19 : vector<8x128xf32>
    %cst_15 = arith.constant 9.99999974E-6 : f32
    %21 = vector.broadcast %cst_15 : f32 to vector<8x1xf32>
    %22 = arith.addf %18, %21 : vector<8x1xf32>
    %23 = math.rsqrt %22 : vector<8x1xf32>
    %24 = vector.broadcast %23 : vector<8x1xf32> to vector<8x128xf32>
    %25 = arith.mulf %20, %24 : vector<8x128xf32>
    %26 = vector.broadcast %5 : vector<1x128xf32> to vector<8x128xf32>
    %27 = arith.mulf %25, %26 : vector<8x128xf32>
    %28 = vector.broadcast %6 : vector<1x128xf32> to vector<8x128xf32>
    %29 = arith.addf %27, %28 : vector<8x128xf32>
    %30 = vector.extract_strided_slice %29 {offsets = [0, 0], sizes = [8, 32], strides = [1, 1]} : vector<8x128xf32> to vector<8x32xf32>
    %31 = arith.truncf %30 : vector<8x32xf32> to vector<8x32xbf16>
    %c0_16 = arith.constant 0 : index
    %c0_17 = arith.constant 0 : index
    %c0_18 = arith.constant 0 : index
    %32 = vector.load %arg6[%c0_16, %c0_17, %c0_18] : memref<2x32x384xbf16, #tpu.memory_space<vmem>>, vector<1x32x384xbf16>
    %33 = vector.shape_cast %32 : vector<1x32x384xbf16> to vector<32x384xbf16>
    %cst_19 = arith.constant dense<0.000000e+00> : vector<8x384xf32>
    %34 = tpu.matmul %31, %33, %cst_19 {dimension_numbers = #tpu.dot_dimension_numbers<[1], [0], [0], [1], [0, 0, 1, 1], [], []>} : vector<8x32xbf16>, vector<32x384xbf16>, vector<8x384xf32> -> vector<8x384xf32>
    %c0_20 = arith.constant 0 : index
    %c0_21 = arith.constant 0 : index
    %c0_22 = arith.constant 0 : index
    %35 = vector.load %arg7[%c0_20, %c0_21, %c0_22] : memref<2x1x384xf32, #tpu.memory_space<vmem>>, vector<1x1x384xf32>
    %36 = vector.shape_cast %35 : vector<1x1x384xf32> to vector<1x384xf32>
    %37 = vector.broadcast %36 : vector<1x384xf32> to vector<8x384xf32>
    %38 = arith.addf %34, %37 : vector<8x384xf32>
    %39 = vector.extract_strided_slice %38 {offsets = [0, 0], sizes = [8, 128], strides = [1, 1]} : vector<8x384xf32> to vector<8x128xf32>
    %40 = vector.extract_strided_slice %38 {offsets = [0, 128], sizes = [8, 128], strides = [1, 1]} : vector<8x384xf32> to vector<8x128xf32>
    %41 = vector.extract_strided_slice %38 {offsets = [0, 256], sizes = [8, 128], strides = [1, 1]} : vector<8x384xf32> to vector<8x128xf32>
    %42 = vector.shape_cast %39 : vector<8x128xf32> to vector<1x8x128xf32>
    %43 = vector.broadcast %42 : vector<1x8x128xf32> to vector<2x8x128xf32>
    %44 = vector.broadcast %4 : vector<2x1x128xf32> to vector<2x8x128xf32>
    %45 = arith.mulf %43, %44 : vector<2x8x128xf32>
    %46 = vector.shape_cast %41 : vector<8x128xf32> to vector<1x8x128xf32>
    %47 = vector.broadcast %46 : vector<1x8x128xf32> to vector<2x8x128xf32>
    %48 = vector.broadcast %4 : vector<2x1x128xf32> to vector<2x8x128xf32>
    %49 = arith.mulf %47, %48 : vector<2x8x128xf32>
    %50 = vector.shape_cast %40 : vector<8x128xf32> to vector<1x8x128xf32>
    %51 = vector.shape_cast %50 : vector<1x8x128xf32> to vector<1x8x128xf32>
    %52 = vector.broadcast %51 : vector<1x8x128xf32> to vector<2x8x128xf32>
    "tpu.trace_start"() <{level = 10 : i32, message = "nqd,nkd->nqk"}> : () -> ()
    %cst_23 = arith.constant dense<0.000000e+00> : vector<2x8x8xf32>
    %53 = tpu.matmul %45, %52, %cst_23 {dimension_numbers = #tpu.dot_dimension_numbers<[2], [2], [1], [1], [0, 0, 0, 1, 1, 1], [0], [0]>} : vector<2x8x128xf32>, vector<2x8x128xf32>, vector<2x8x8xf32> -> vector<2x8x8xf32>
    "tpu.trace_stop"() : () -> ()
    %54 = vector.shape_cast %3 : vector<1x8xf32> to vector<1x1x8xf32>
    %55 = vector.broadcast %54 : vector<1x1x8xf32> to vector<2x8x8xf32>
    %56 = arith.addf %53, %55 : vector<2x8x8xf32>
    %cst_24 = arith.constant dense<0xFF800000> : vector<2x8xf32>
    %57 = vector.multi_reduction <maximumf>, %56, %cst_24 [2] : vector<2x8x8xf32> to vector<2x8xf32>
    %58 = vector.shape_cast %57 : vector<2x8xf32> to vector<2x8x1xf32>
    %59 = vector.broadcast %58 : vector<2x8x1xf32> to vector<2x8x8xf32>
    %60 = arith.subf %56, %59 : vector<2x8x8xf32>
    %61 = math.exp %60 : vector<2x8x8xf32>
    %cst_25 = arith.constant dense<0.000000e+00> : vector<2x8xf32>
    %62 = vector.multi_reduction <add>, %61, %cst_25 [2] : vector<2x8x8xf32> to vector<2x8xf32>
    %63 = vector.shape_cast %62 : vector<2x8xf32> to vector<2x8x1xf32>
    %64 = tpu.reciprocal %63 {approx = true} : vector<2x8x1xf32> -> vector<2x8x1xf32>
    %65 = vector.broadcast %64 : vector<2x8x1xf32> to vector<2x8x8xf32>
    %66 = arith.mulf %61, %65 : vector<2x8x8xf32>
    "tpu.trace_start"() <{level = 10 : i32, message = "nqk,nkd->nqd"}> : () -> ()
    %cst_26 = arith.constant dense<0.000000e+00> : vector<2x8x128xf32>
    %67 = tpu.matmul %66, %49, %cst_26 {dimension_numbers = #tpu.dot_dimension_numbers<[2], [1], [1], [2], [0, 0, 0, 1, 1, 2], [0], [0]>} : vector<2x8x8xf32>, vector<2x8x128xf32>, vector<2x8x128xf32> -> vector<2x8x128xf32>
    "tpu.trace_stop"() : () -> ()
    %cst_27 = arith.constant dense<0.000000e+00> : vector<8x128xf32>
    %68 = vector.multi_reduction <add>, %67, %cst_27 [0] : vector<2x8x128xf32> to vector<8x128xf32>
    %69 = vector.extract_strided_slice %68 {offsets = [0, 0], sizes = [8, 32], strides = [1, 1]} : vector<8x128xf32> to vector<8x32xf32>
    %70 = arith.truncf %69 : vector<8x32xf32> to vector<8x32xbf16>
    %c0_28 = arith.constant 0 : index
    %c0_29 = arith.constant 0 : index
    %c0_30 = arith.constant 0 : index
    %71 = vector.load %arg8[%c0_28, %c0_29, %c0_30] : memref<2x32x128xbf16, #tpu.memory_space<vmem>>, vector<1x32x128xbf16>
    %72 = vector.shape_cast %71 : vector<1x32x128xbf16> to vector<32x128xbf16>
    %cst_31 = arith.constant dense<0.000000e+00> : vector<8x128xf32>
    %73 = tpu.matmul %70, %72, %cst_31 {dimension_numbers = #tpu.dot_dimension_numbers<[1], [0], [0], [1], [0, 0, 1, 1], [], []>} : vector<8x32xbf16>, vector<32x128xbf16>, vector<8x128xf32> -> vector<8x128xf32>
    %c0_32 = arith.constant 0 : index
    %c0_33 = arith.constant 0 : index
    %c0_34 = arith.constant 0 : index
    %74 = vector.load %arg9[%c0_32, %c0_33, %c0_34] : memref<2x1x128xf32, #tpu.memory_space<vmem>>, vector<1x1x128xf32>
    %75 = vector.shape_cast %74 : vector<1x1x128xf32> to vector<1x128xf32>
    %76 = vector.broadcast %75 : vector<1x128xf32> to vector<8x128xf32>
    %77 = arith.addf %73, %76 : vector<8x128xf32>
    %78 = arith.addf %29, %77 : vector<8x128xf32>
    %c0_35 = arith.constant 0 : index
    %c0_36 = arith.constant 0 : index
    %c0_37 = arith.constant 0 : index
    %79 = vector.load %arg10[%c0_35, %c0_36, %c0_37] : memref<2x1x128xf32, #tpu.memory_space<vmem>>, vector<1x1x128xf32>
    %80 = vector.shape_cast %79 : vector<1x1x128xf32> to vector<1x128xf32>
    %c0_38 = arith.constant 0 : index
    %c0_39 = arith.constant 0 : index
    %c0_40 = arith.constant 0 : index
    %81 = vector.load %arg11[%c0_38, %c0_39, %c0_40] : memref<2x1x128xf32, #tpu.memory_space<vmem>>, vector<1x1x128xf32>
    %82 = vector.shape_cast %81 : vector<1x1x128xf32> to vector<1x128xf32>
    %83 = vector.extract_strided_slice %78 {offsets = [0, 0], sizes = [8, 32], strides = [1, 1]} : vector<8x128xf32> to vector<8x32xf32>
    %cst_41 = arith.constant dense<0.000000e+00> : vector<8xf32>
    %84 = vector.multi_reduction <add>, %83, %cst_41 [1] : vector<8x32xf32> to vector<8xf32>
    %85 = vector.shape_cast %84 : vector<8xf32> to vector<8x1xf32>
    %cst_42 = arith.constant 3.125000e-02 : f32
    %86 = vector.broadcast %cst_42 : f32 to vector<8x1xf32>
    %87 = arith.mulf %85, %86 : vector<8x1xf32>
    %88 = vector.broadcast %87 : vector<8x1xf32> to vector<8x32xf32>
    %89 = arith.subf %83, %88 : vector<8x32xf32>
    %90 = arith.mulf %89, %89 : vector<8x32xf32>
    %cst_43 = arith.constant dense<0.000000e+00> : vector<8xf32>
    %91 = vector.multi_reduction <add>, %90, %cst_43 [1] : vector<8x32xf32> to vector<8xf32>
    %92 = vector.shape_cast %91 : vector<8xf32> to vector<8x1xf32>
    %cst_44 = arith.constant 3.125000e-02 : f32
    %93 = vector.broadcast %cst_44 : f32 to vector<8x1xf32>
    %94 = arith.mulf %92, %93 : vector<8x1xf32>
    %95 = vector.broadcast %87 : vector<8x1xf32> to vector<8x128xf32>
    %96 = arith.subf %78, %95 : vector<8x128xf32>
    %cst_45 = arith.constant 9.99999974E-6 : f32
    %97 = vector.broadcast %cst_45 : f32 to vector<8x1xf32>
    %98 = arith.addf %94, %97 : vector<8x1xf32>
    %99 = math.rsqrt %98 : vector<8x1xf32>
    %100 = vector.broadcast %99 : vector<8x1xf32> to vector<8x128xf32>
    %101 = arith.mulf %96, %100 : vector<8x128xf32>
    %102 = vector.broadcast %80 : vector<1x128xf32> to vector<8x128xf32>
    %103 = arith.mulf %101, %102 : vector<8x128xf32>
    %104 = vector.broadcast %82 : vector<1x128xf32> to vector<8x128xf32>
    %105 = arith.addf %103, %104 : vector<8x128xf32>
    %106 = vector.extract_strided_slice %105 {offsets = [0, 0], sizes = [8, 32], strides = [1, 1]} : vector<8x128xf32> to vector<8x32xf32>
    %107 = arith.truncf %106 : vector<8x32xf32> to vector<8x32xbf16>
    %c0_46 = arith.constant 0 : index
    %c0_47 = arith.constant 0 : index
    %c0_48 = arith.constant 0 : index
    %108 = vector.load %arg12[%c0_46, %c0_47, %c0_48] : memref<2x32x128xbf16, #tpu.memory_space<vmem>>, vector<1x32x128xbf16>
    %109 = vector.shape_cast %108 : vector<1x32x128xbf16> to vector<32x128xbf16>
    %cst_49 = arith.constant dense<0.000000e+00> : vector<8x128xf32>
    %110 = tpu.matmul %107, %109, %cst_49 {dimension_numbers = #tpu.dot_dimension_numbers<[1], [0], [0], [1], [0, 0, 1, 1], [], []>} : vector<8x32xbf16>, vector<32x128xbf16>, vector<8x128xf32> -> vector<8x128xf32>
    %c0_50 = arith.constant 0 : index
    %c0_51 = arith.constant 0 : index
    %c0_52 = arith.constant 0 : index
    %111 = vector.load %arg13[%c0_50, %c0_51, %c0_52] : memref<2x1x128xf32, #tpu.memory_space<vmem>>, vector<1x1x128xf32>
    %112 = vector.shape_cast %111 : vector<1x1x128xf32> to vector<1x128xf32>
    %113 = vector.broadcast %112 : vector<1x128xf32> to vector<8x128xf32>
    %114 = arith.addf %110, %113 : vector<8x128xf32>
    %115 = arith.mulf %114, %114 : vector<8x128xf32>
    %116 = arith.mulf %114, %115 : vector<8x128xf32>
    %cst_53 = arith.constant 4.471500e-02 : f32
    %117 = vector.broadcast %cst_53 : f32 to vector<8x128xf32>
    %118 = arith.mulf %117, %116 : vector<8x128xf32>
    %119 = arith.addf %114, %118 : vector<8x128xf32>
    %cst_54 = arith.constant 0.797884583 : f32
    %120 = vector.broadcast %cst_54 : f32 to vector<8x128xf32>
    %121 = arith.mulf %120, %119 : vector<8x128xf32>
    %122 = math.tanh %121 : vector<8x128xf32>
    %cst_55 = arith.constant 1.000000e+00 : f32
    %123 = vector.broadcast %cst_55 : f32 to vector<8x128xf32>
    %124 = arith.addf %123, %122 : vector<8x128xf32>
    %cst_56 = arith.constant 5.000000e-01 : f32
    %125 = vector.broadcast %cst_56 : f32 to vector<8x128xf32>
    %126 = arith.mulf %125, %124 : vector<8x128xf32>
    %127 = arith.mulf %114, %126 : vector<8x128xf32>
    %128 = vector.extract_strided_slice %127 {offsets = [0, 0], sizes = [8, 64], strides = [1, 1]} : vector<8x128xf32> to vector<8x64xf32>
    %129 = arith.truncf %128 : vector<8x64xf32> to vector<8x64xbf16>
    %c0_57 = arith.constant 0 : index
    %c0_58 = arith.constant 0 : index
    %c0_59 = arith.constant 0 : index
    %130 = vector.load %arg14[%c0_57, %c0_58, %c0_59] : memref<2x64x128xbf16, #tpu.memory_space<vmem>>, vector<1x64x128xbf16>
    %131 = vector.shape_cast %130 : vector<1x64x128xbf16> to vector<64x128xbf16>
    %cst_60 = arith.constant dense<0.000000e+00> : vector<8x128xf32>
    %132 = tpu.matmul %129, %131, %cst_60 {dimension_numbers = #tpu.dot_dimension_numbers<[1], [0], [0], [1], [0, 0, 1, 1], [], []>} : vector<8x64xbf16>, vector<64x128xbf16>, vector<8x128xf32> -> vector<8x128xf32>
    %c0_61 = arith.constant 0 : index
    %c0_62 = arith.constant 0 : index
    %c0_63 = arith.constant 0 : index
    %133 = vector.load %arg15[%c0_61, %c0_62, %c0_63] : memref<2x1x128xf32, #tpu.memory_space<vmem>>, vector<1x1x128xf32>
    %134 = vector.shape_cast %133 : vector<1x1x128xf32> to vector<1x128xf32>
    %135 = vector.broadcast %134 : vector<1x128xf32> to vector<8x128xf32>
    %136 = arith.addf %132, %135 : vector<8x128xf32>
    %137 = arith.addf %105, %136 : vector<8x128xf32>
    %c0_64 = arith.constant 0 : index
    %c0_65 = arith.constant 0 : index
    %c0_66 = arith.constant 0 : index
    %138 = vector.load %arg16[%c0_64, %c0_65, %c0_66] : memref<2x1x128xf32, #tpu.memory_space<vmem>>, vector<1x1x128xf32>
    %139 = vector.shape_cast %138 : vector<1x1x128xf32> to vector<1x128xf32>
    %c0_67 = arith.constant 0 : index
    %c0_68 = arith.constant 0 : index
    %c0_69 = arith.constant 0 : index
    %140 = vector.load %arg17[%c0_67, %c0_68, %c0_69] : memref<2x1x128xf32, #tpu.memory_space<vmem>>, vector<1x1x128xf32>
    %141 = vector.shape_cast %140 : vector<1x1x128xf32> to vector<1x128xf32>
    %142 = vector.extract_strided_slice %137 {offsets = [0, 0], sizes = [8, 32], strides = [1, 1]} : vector<8x128xf32> to vector<8x32xf32>
    %cst_70 = arith.constant dense<0.000000e+00> : vector<8xf32>
    %143 = vector.multi_reduction <add>, %142, %cst_70 [1] : vector<8x32xf32> to vector<8xf32>
    %144 = vector.shape_cast %143 : vector<8xf32> to vector<8x1xf32>
    %cst_71 = arith.constant 3.125000e-02 : f32
    %145 = vector.broadcast %cst_71 : f32 to vector<8x1xf32>
    %146 = arith.mulf %144, %145 : vector<8x1xf32>
    %147 = vector.broadcast %146 : vector<8x1xf32> to vector<8x32xf32>
    %148 = arith.subf %142, %147 : vector<8x32xf32>
    %149 = arith.mulf %148, %148 : vector<8x32xf32>
    %cst_72 = arith.constant dense<0.000000e+00> : vector<8xf32>
    %150 = vector.multi_reduction <add>, %149, %cst_72 [1] : vector<8x32xf32> to vector<8xf32>
    %151 = vector.shape_cast %150 : vector<8xf32> to vector<8x1xf32>
    %cst_73 = arith.constant 3.125000e-02 : f32
    %152 = vector.broadcast %cst_73 : f32 to vector<8x1xf32>
    %153 = arith.mulf %151, %152 : vector<8x1xf32>
    %154 = vector.broadcast %146 : vector<8x1xf32> to vector<8x128xf32>
    %155 = arith.subf %137, %154 : vector<8x128xf32>
    %cst_74 = arith.constant 9.99999974E-6 : f32
    %156 = vector.broadcast %cst_74 : f32 to vector<8x1xf32>
    %157 = arith.addf %153, %156 : vector<8x1xf32>
    %158 = math.rsqrt %157 : vector<8x1xf32>
    %159 = vector.broadcast %158 : vector<8x1xf32> to vector<8x128xf32>
    %160 = arith.mulf %155, %159 : vector<8x128xf32>
    %161 = vector.broadcast %139 : vector<1x128xf32> to vector<8x128xf32>
    %162 = arith.mulf %160, %161 : vector<8x128xf32>
    %163 = vector.broadcast %141 : vector<1x128xf32> to vector<8x128xf32>
    %164 = arith.addf %162, %163 : vector<8x128xf32>
    %165 = vector.extract_strided_slice %164 {offsets = [0, 0], sizes = [8, 32], strides = [1, 1]} : vector<8x128xf32> to vector<8x32xf32>
    %166 = arith.truncf %165 : vector<8x32xf32> to vector<8x32xbf16>
    %c1 = arith.constant 1 : index
    %c0_75 = arith.constant 0 : index
    %c0_76 = arith.constant 0 : index
    %167 = vector.load %arg6[%c1, %c0_75, %c0_76] : memref<2x32x384xbf16, #tpu.memory_space<vmem>>, vector<1x32x384xbf16>
    %168 = vector.shape_cast %167 : vector<1x32x384xbf16> to vector<32x384xbf16>
    %cst_77 = arith.constant dense<0.000000e+00> : vector<8x384xf32>
    %169 = tpu.matmul %166, %168, %cst_77 {dimension_numbers = #tpu.dot_dimension_numbers<[1], [0], [0], [1], [0, 0, 1, 1], [], []>} : vector<8x32xbf16>, vector<32x384xbf16>, vector<8x384xf32> -> vector<8x384xf32>
    %c1_78 = arith.constant 1 : index
    %c0_79 = arith.constant 0 : index
    %c0_80 = arith.constant 0 : index
    %170 = vector.load %arg7[%c1_78, %c0_79, %c0_80] : memref<2x1x384xf32, #tpu.memory_space<vmem>>, vector<1x1x384xf32>
    %171 = vector.shape_cast %170 : vector<1x1x384xf32> to vector<1x384xf32>
    %172 = vector.broadcast %171 : vector<1x384xf32> to vector<8x384xf32>
    %173 = arith.addf %169, %172 : vector<8x384xf32>
    %174 = vector.extract_strided_slice %173 {offsets = [0, 0], sizes = [8, 128], strides = [1, 1]} : vector<8x384xf32> to vector<8x128xf32>
    %175 = vector.extract_strided_slice %173 {offsets = [0, 128], sizes = [8, 128], strides = [1, 1]} : vector<8x384xf32> to vector<8x128xf32>
    %176 = vector.extract_strided_slice %173 {offsets = [0, 256], sizes = [8, 128], strides = [1, 1]} : vector<8x384xf32> to vector<8x128xf32>
    %177 = vector.shape_cast %174 : vector<8x128xf32> to vector<1x8x128xf32>
    %178 = vector.broadcast %177 : vector<1x8x128xf32> to vector<2x8x128xf32>
    %179 = vector.broadcast %4 : vector<2x1x128xf32> to vector<2x8x128xf32>
    %180 = arith.mulf %178, %179 : vector<2x8x128xf32>
    %181 = vector.shape_cast %176 : vector<8x128xf32> to vector<1x8x128xf32>
    %182 = vector.broadcast %181 : vector<1x8x128xf32> to vector<2x8x128xf32>
    %183 = vector.broadcast %4 : vector<2x1x128xf32> to vector<2x8x128xf32>
    %184 = arith.mulf %182, %183 : vector<2x8x128xf32>
    %185 = vector.shape_cast %175 : vector<8x128xf32> to vector<1x8x128xf32>
    %186 = vector.shape_cast %185 : vector<1x8x128xf32> to vector<1x8x128xf32>
    %187 = vector.broadcast %186 : vector<1x8x128xf32> to vector<2x8x128xf32>
    "tpu.trace_start"() <{level = 10 : i32, message = "nqd,nkd->nqk"}> : () -> ()
    %cst_81 = arith.constant dense<0.000000e+00> : vector<2x8x8xf32>
    %188 = tpu.matmul %180, %187, %cst_81 {dimension_numbers = #tpu.dot_dimension_numbers<[2], [2], [1], [1], [0, 0, 0, 1, 1, 1], [0], [0]>} : vector<2x8x128xf32>, vector<2x8x128xf32>, vector<2x8x8xf32> -> vector<2x8x8xf32>
    "tpu.trace_stop"() : () -> ()
    %189 = vector.shape_cast %3 : vector<1x8xf32> to vector<1x1x8xf32>
    %190 = vector.broadcast %189 : vector<1x1x8xf32> to vector<2x8x8xf32>
    %191 = arith.addf %188, %190 : vector<2x8x8xf32>
    %cst_82 = arith.constant dense<0xFF800000> : vector<2x8xf32>
    %192 = vector.multi_reduction <maximumf>, %191, %cst_82 [2] : vector<2x8x8xf32> to vector<2x8xf32>
    %193 = vector.shape_cast %192 : vector<2x8xf32> to vector<2x8x1xf32>
    %194 = vector.broadcast %193 : vector<2x8x1xf32> to vector<2x8x8xf32>
    %195 = arith.subf %191, %194 : vector<2x8x8xf32>
    %196 = math.exp %195 : vector<2x8x8xf32>
    %cst_83 = arith.constant dense<0.000000e+00> : vector<2x8xf32>
    %197 = vector.multi_reduction <add>, %196, %cst_83 [2] : vector<2x8x8xf32> to vector<2x8xf32>
    %198 = vector.shape_cast %197 : vector<2x8xf32> to vector<2x8x1xf32>
    %199 = tpu.reciprocal %198 {approx = true} : vector<2x8x1xf32> -> vector<2x8x1xf32>
    %200 = vector.broadcast %199 : vector<2x8x1xf32> to vector<2x8x8xf32>
    %201 = arith.mulf %196, %200 : vector<2x8x8xf32>
    "tpu.trace_start"() <{level = 10 : i32, message = "nqk,nkd->nqd"}> : () -> ()
    %cst_84 = arith.constant dense<0.000000e+00> : vector<2x8x128xf32>
    %202 = tpu.matmul %201, %184, %cst_84 {dimension_numbers = #tpu.dot_dimension_numbers<[2], [1], [1], [2], [0, 0, 0, 1, 1, 2], [0], [0]>} : vector<2x8x8xf32>, vector<2x8x128xf32>, vector<2x8x128xf32> -> vector<2x8x128xf32>
    "tpu.trace_stop"() : () -> ()
    %cst_85 = arith.constant dense<0.000000e+00> : vector<8x128xf32>
    %203 = vector.multi_reduction <add>, %202, %cst_85 [0] : vector<2x8x128xf32> to vector<8x128xf32>
    %204 = vector.extract_strided_slice %203 {offsets = [0, 0], sizes = [8, 32], strides = [1, 1]} : vector<8x128xf32> to vector<8x32xf32>
    %205 = arith.truncf %204 : vector<8x32xf32> to vector<8x32xbf16>
    %c1_86 = arith.constant 1 : index
    %c0_87 = arith.constant 0 : index
    %c0_88 = arith.constant 0 : index
    %206 = vector.load %arg8[%c1_86, %c0_87, %c0_88] : memref<2x32x128xbf16, #tpu.memory_space<vmem>>, vector<1x32x128xbf16>
    %207 = vector.shape_cast %206 : vector<1x32x128xbf16> to vector<32x128xbf16>
    %cst_89 = arith.constant dense<0.000000e+00> : vector<8x128xf32>
    %208 = tpu.matmul %205, %207, %cst_89 {dimension_numbers = #tpu.dot_dimension_numbers<[1], [0], [0], [1], [0, 0, 1, 1], [], []>} : vector<8x32xbf16>, vector<32x128xbf16>, vector<8x128xf32> -> vector<8x128xf32>
    %c1_90 = arith.constant 1 : index
    %c0_91 = arith.constant 0 : index
    %c0_92 = arith.constant 0 : index
    %209 = vector.load %arg9[%c1_90, %c0_91, %c0_92] : memref<2x1x128xf32, #tpu.memory_space<vmem>>, vector<1x1x128xf32>
    %210 = vector.shape_cast %209 : vector<1x1x128xf32> to vector<1x128xf32>
    %211 = vector.broadcast %210 : vector<1x128xf32> to vector<8x128xf32>
    %212 = arith.addf %208, %211 : vector<8x128xf32>
    %213 = arith.addf %164, %212 : vector<8x128xf32>
    %c1_93 = arith.constant 1 : index
    %c0_94 = arith.constant 0 : index
    %c0_95 = arith.constant 0 : index
    %214 = vector.load %arg10[%c1_93, %c0_94, %c0_95] : memref<2x1x128xf32, #tpu.memory_space<vmem>>, vector<1x1x128xf32>
    %215 = vector.shape_cast %214 : vector<1x1x128xf32> to vector<1x128xf32>
    %c1_96 = arith.constant 1 : index
    %c0_97 = arith.constant 0 : index
    %c0_98 = arith.constant 0 : index
    %216 = vector.load %arg11[%c1_96, %c0_97, %c0_98] : memref<2x1x128xf32, #tpu.memory_space<vmem>>, vector<1x1x128xf32>
    %217 = vector.shape_cast %216 : vector<1x1x128xf32> to vector<1x128xf32>
    %218 = vector.extract_strided_slice %213 {offsets = [0, 0], sizes = [8, 32], strides = [1, 1]} : vector<8x128xf32> to vector<8x32xf32>
    %cst_99 = arith.constant dense<0.000000e+00> : vector<8xf32>
    %219 = vector.multi_reduction <add>, %218, %cst_99 [1] : vector<8x32xf32> to vector<8xf32>
    %220 = vector.shape_cast %219 : vector<8xf32> to vector<8x1xf32>
    %cst_100 = arith.constant 3.125000e-02 : f32
    %221 = vector.broadcast %cst_100 : f32 to vector<8x1xf32>
    %222 = arith.mulf %220, %221 : vector<8x1xf32>
    %223 = vector.broadcast %222 : vector<8x1xf32> to vector<8x32xf32>
    %224 = arith.subf %218, %223 : vector<8x32xf32>
    %225 = arith.mulf %224, %224 : vector<8x32xf32>
    %cst_101 = arith.constant dense<0.000000e+00> : vector<8xf32>
    %226 = vector.multi_reduction <add>, %225, %cst_101 [1] : vector<8x32xf32> to vector<8xf32>
    %227 = vector.shape_cast %226 : vector<8xf32> to vector<8x1xf32>
    %cst_102 = arith.constant 3.125000e-02 : f32
    %228 = vector.broadcast %cst_102 : f32 to vector<8x1xf32>
    %229 = arith.mulf %227, %228 : vector<8x1xf32>
    %230 = vector.broadcast %222 : vector<8x1xf32> to vector<8x128xf32>
    %231 = arith.subf %213, %230 : vector<8x128xf32>
    %cst_103 = arith.constant 9.99999974E-6 : f32
    %232 = vector.broadcast %cst_103 : f32 to vector<8x1xf32>
    %233 = arith.addf %229, %232 : vector<8x1xf32>
    %234 = math.rsqrt %233 : vector<8x1xf32>
    %235 = vector.broadcast %234 : vector<8x1xf32> to vector<8x128xf32>
    %236 = arith.mulf %231, %235 : vector<8x128xf32>
    %237 = vector.broadcast %215 : vector<1x128xf32> to vector<8x128xf32>
    %238 = arith.mulf %236, %237 : vector<8x128xf32>
    %239 = vector.broadcast %217 : vector<1x128xf32> to vector<8x128xf32>
    %240 = arith.addf %238, %239 : vector<8x128xf32>
    %241 = vector.extract_strided_slice %240 {offsets = [0, 0], sizes = [8, 32], strides = [1, 1]} : vector<8x128xf32> to vector<8x32xf32>
    %242 = arith.truncf %241 : vector<8x32xf32> to vector<8x32xbf16>
    %c1_104 = arith.constant 1 : index
    %c0_105 = arith.constant 0 : index
    %c0_106 = arith.constant 0 : index
    %243 = vector.load %arg12[%c1_104, %c0_105, %c0_106] : memref<2x32x128xbf16, #tpu.memory_space<vmem>>, vector<1x32x128xbf16>
    %244 = vector.shape_cast %243 : vector<1x32x128xbf16> to vector<32x128xbf16>
    %cst_107 = arith.constant dense<0.000000e+00> : vector<8x128xf32>
    %245 = tpu.matmul %242, %244, %cst_107 {dimension_numbers = #tpu.dot_dimension_numbers<[1], [0], [0], [1], [0, 0, 1, 1], [], []>} : vector<8x32xbf16>, vector<32x128xbf16>, vector<8x128xf32> -> vector<8x128xf32>
    %c1_108 = arith.constant 1 : index
    %c0_109 = arith.constant 0 : index
    %c0_110 = arith.constant 0 : index
    %246 = vector.load %arg13[%c1_108, %c0_109, %c0_110] : memref<2x1x128xf32, #tpu.memory_space<vmem>>, vector<1x1x128xf32>
    %247 = vector.shape_cast %246 : vector<1x1x128xf32> to vector<1x128xf32>
    %248 = vector.broadcast %247 : vector<1x128xf32> to vector<8x128xf32>
    %249 = arith.addf %245, %248 : vector<8x128xf32>
    %250 = arith.mulf %249, %249 : vector<8x128xf32>
    %251 = arith.mulf %249, %250 : vector<8x128xf32>
    %cst_111 = arith.constant 4.471500e-02 : f32
    %252 = vector.broadcast %cst_111 : f32 to vector<8x128xf32>
    %253 = arith.mulf %252, %251 : vector<8x128xf32>
    %254 = arith.addf %249, %253 : vector<8x128xf32>
    %cst_112 = arith.constant 0.797884583 : f32
    %255 = vector.broadcast %cst_112 : f32 to vector<8x128xf32>
    %256 = arith.mulf %255, %254 : vector<8x128xf32>
    %257 = math.tanh %256 : vector<8x128xf32>
    %cst_113 = arith.constant 1.000000e+00 : f32
    %258 = vector.broadcast %cst_113 : f32 to vector<8x128xf32>
    %259 = arith.addf %258, %257 : vector<8x128xf32>
    %cst_114 = arith.constant 5.000000e-01 : f32
    %260 = vector.broadcast %cst_114 : f32 to vector<8x128xf32>
    %261 = arith.mulf %260, %259 : vector<8x128xf32>
    %262 = arith.mulf %249, %261 : vector<8x128xf32>
    %263 = vector.extract_strided_slice %262 {offsets = [0, 0], sizes = [8, 64], strides = [1, 1]} : vector<8x128xf32> to vector<8x64xf32>
    %264 = arith.truncf %263 : vector<8x64xf32> to vector<8x64xbf16>
    %c1_115 = arith.constant 1 : index
    %c0_116 = arith.constant 0 : index
    %c0_117 = arith.constant 0 : index
    %265 = vector.load %arg14[%c1_115, %c0_116, %c0_117] : memref<2x64x128xbf16, #tpu.memory_space<vmem>>, vector<1x64x128xbf16>
    %266 = vector.shape_cast %265 : vector<1x64x128xbf16> to vector<64x128xbf16>
    %cst_118 = arith.constant dense<0.000000e+00> : vector<8x128xf32>
    %267 = tpu.matmul %264, %266, %cst_118 {dimension_numbers = #tpu.dot_dimension_numbers<[1], [0], [0], [1], [0, 0, 1, 1], [], []>} : vector<8x64xbf16>, vector<64x128xbf16>, vector<8x128xf32> -> vector<8x128xf32>
    %c1_119 = arith.constant 1 : index
    %c0_120 = arith.constant 0 : index
    %c0_121 = arith.constant 0 : index
    %268 = vector.load %arg15[%c1_119, %c0_120, %c0_121] : memref<2x1x128xf32, #tpu.memory_space<vmem>>, vector<1x1x128xf32>
    %269 = vector.shape_cast %268 : vector<1x1x128xf32> to vector<1x128xf32>
    %270 = vector.broadcast %269 : vector<1x128xf32> to vector<8x128xf32>
    %271 = arith.addf %267, %270 : vector<8x128xf32>
    %272 = arith.addf %240, %271 : vector<8x128xf32>
    %c1_122 = arith.constant 1 : index
    %c0_123 = arith.constant 0 : index
    %c0_124 = arith.constant 0 : index
    %273 = vector.load %arg16[%c1_122, %c0_123, %c0_124] : memref<2x1x128xf32, #tpu.memory_space<vmem>>, vector<1x1x128xf32>
    %274 = vector.shape_cast %273 : vector<1x1x128xf32> to vector<1x128xf32>
    %c1_125 = arith.constant 1 : index
    %c0_126 = arith.constant 0 : index
    %c0_127 = arith.constant 0 : index
    %275 = vector.load %arg17[%c1_125, %c0_126, %c0_127] : memref<2x1x128xf32, #tpu.memory_space<vmem>>, vector<1x1x128xf32>
    %276 = vector.shape_cast %275 : vector<1x1x128xf32> to vector<1x128xf32>
    %277 = vector.extract_strided_slice %272 {offsets = [0, 0], sizes = [8, 32], strides = [1, 1]} : vector<8x128xf32> to vector<8x32xf32>
    %cst_128 = arith.constant dense<0.000000e+00> : vector<8xf32>
    %278 = vector.multi_reduction <add>, %277, %cst_128 [1] : vector<8x32xf32> to vector<8xf32>
    %279 = vector.shape_cast %278 : vector<8xf32> to vector<8x1xf32>
    %cst_129 = arith.constant 3.125000e-02 : f32
    %280 = vector.broadcast %cst_129 : f32 to vector<8x1xf32>
    %281 = arith.mulf %279, %280 : vector<8x1xf32>
    %282 = vector.broadcast %281 : vector<8x1xf32> to vector<8x32xf32>
    %283 = arith.subf %277, %282 : vector<8x32xf32>
    %284 = arith.mulf %283, %283 : vector<8x32xf32>
    %cst_130 = arith.constant dense<0.000000e+00> : vector<8xf32>
    %285 = vector.multi_reduction <add>, %284, %cst_130 [1] : vector<8x32xf32> to vector<8xf32>
    %286 = vector.shape_cast %285 : vector<8xf32> to vector<8x1xf32>
    %cst_131 = arith.constant 3.125000e-02 : f32
    %287 = vector.broadcast %cst_131 : f32 to vector<8x1xf32>
    %288 = arith.mulf %286, %287 : vector<8x1xf32>
    %289 = vector.broadcast %281 : vector<8x1xf32> to vector<8x128xf32>
    %290 = arith.subf %272, %289 : vector<8x128xf32>
    %cst_132 = arith.constant 9.99999974E-6 : f32
    %291 = vector.broadcast %cst_132 : f32 to vector<8x1xf32>
    %292 = arith.addf %288, %291 : vector<8x1xf32>
    %293 = math.rsqrt %292 : vector<8x1xf32>
    %294 = vector.broadcast %293 : vector<8x1xf32> to vector<8x128xf32>
    %295 = arith.mulf %290, %294 : vector<8x128xf32>
    %296 = vector.broadcast %274 : vector<1x128xf32> to vector<8x128xf32>
    %297 = arith.mulf %295, %296 : vector<8x128xf32>
    %298 = vector.broadcast %276 : vector<1x128xf32> to vector<8x128xf32>
    %299 = arith.addf %297, %298 : vector<8x128xf32>
    %300 = vector.extract_strided_slice %299 {offsets = [0, 0], sizes = [1, 128], strides = [1, 1]} : vector<8x128xf32> to vector<1x128xf32>
    %301 = arith.mulf %300, %300 : vector<1x128xf32>
    %cst_133 = arith.constant dense<0.000000e+00> : vector<1xf32>
    %302 = vector.multi_reduction <add>, %301, %cst_133 [1] : vector<1x128xf32> to vector<1xf32>
    %303 = vector.shape_cast %302 : vector<1xf32> to vector<1x1xf32>
    %304 = math.sqrt %303 : vector<1x1xf32>
    %cst_134 = arith.constant 9.99999996E-13 : f32
    %305 = vector.broadcast %cst_134 : f32 to vector<1x1xf32>
    %306 = arith.maximumf %304, %305 : vector<1x1xf32>
    %307 = vector.broadcast %306 : vector<1x1xf32> to vector<1x128xf32>
    %308 = arith.divf %300, %307 : vector<1x128xf32>
    %c0_135 = arith.constant 0 : index
    %c0_136 = arith.constant 0 : index
    %c0_137 = arith.constant 0 : index
    %309 = vector.load %arg18[%c0_135, %c0_136, %c0_137] : memref<1x1x128xf32, #tpu.memory_space<vmem>>, vector<1x1x128xf32>
    %310 = vector.shape_cast %309 : vector<1x1x128xf32> to vector<1x128xf32>
    %311 = vector.shape_cast %308 : vector<1x128xf32> to vector<1x1x128xf32>
    tpu.vector_store %arg18[%c0_135, %c0_136, %c0_137], %311 {strides = array<i32>} : memref<1x1x128xf32, #tpu.memory_space<vmem>>, vector<1x1x128xf32>,
    return
  }
  func.func @transform_0(%arg0: i32) -> (i32, i32, i32) {
    %c0_i32 = arith.constant 0 : i32
    %c0_i32_0 = arith.constant 0 : i32
    %c0_i32_1 = arith.constant 0 : i32
    return %arg0, %c0_i32, %c0_i32_0 : i32, i32, i32
  }
  func.func @transform_1(%arg0: i32) -> (i32, i32, i32) {
    %c0_i32 = arith.constant 0 : i32
    %c0_i32_0 = arith.constant 0 : i32
    %c0_i32_1 = arith.constant 0 : i32
    return %arg0, %c0_i32, %c0_i32_0 : i32, i32, i32
  }
  func.func @transform_2(%arg0: i32) -> (i32, i32, i32) {
    %c0_i32 = arith.constant 0 : i32
    %c0_i32_0 = arith.constant 0 : i32
    %c0_i32_1 = arith.constant 0 : i32
    %c0_i32_2 = arith.constant 0 : i32
    return %c0_i32, %c0_i32_0, %c0_i32_1 : i32, i32, i32
  }
  func.func @transform_3(%arg0: i32) -> (i32, i32) {
    %c0_i32 = arith.constant 0 : i32
    %c0_i32_0 = arith.constant 0 : i32
    %c0_i32_1 = arith.constant 0 : i32
    return %c0_i32, %c0_i32_0 : i32, i32
  }
  func.func @transform_4(%arg0: i32) -> (i32, i32) {
    %c0_i32 = arith.constant 0 : i32
    %c0_i32_0 = arith.constant 0 : i32
    %c0_i32_1 = arith.constant 0 : i32
    return %c0_i32, %c0_i32_0 : i32, i32
  }
  func.func @transform_5(%arg0: i32) -> (i32, i32, i32) {
    %c0_i32 = arith.constant 0 : i32
    %c0_i32_0 = arith.constant 0 : i32
    %c0_i32_1 = arith.constant 0 : i32
    %c0_i32_2 = arith.constant 0 : i32
    return %c0_i32, %c0_i32_0, %c0_i32_1 : i32, i32, i32
  }
  func.func @transform_6(%arg0: i32) -> (i32, i32, i32) {
    %c0_i32 = arith.constant 0 : i32
    %c0_i32_0 = arith.constant 0 : i32
    %c0_i32_1 = arith.constant 0 : i32
    %c0_i32_2 = arith.constant 0 : i32
    return %c0_i32, %c0_i32_0, %c0_i32_1 : i32, i32, i32
  }
  func.func @transform_7(%arg0: i32) -> (i32, i32, i32) {
    %c0_i32 = arith.constant 0 : i32
    %c0_i32_0 = arith.constant 0 : i32
    %c0_i32_1 = arith.constant 0 : i32
    %c0_i32_2 = arith.constant 0 : i32
    return %c0_i32, %c0_i32_0, %c0_i32_1 : i32, i32, i32
  }
  func.func @transform_8(%arg0: i32) -> (i32, i32, i32) {
    %c0_i32 = arith.constant 0 : i32
    %c0_i32_0 = arith.constant 0 : i32
    %c0_i32_1 = arith.constant 0 : i32
    %c0_i32_2 = arith.constant 0 : i32
    return %c0_i32, %c0_i32_0, %c0_i32_1 : i32, i32, i32
  }
  func.func @transform_9(%arg0: i32) -> (i32, i32, i32) {
    %c0_i32 = arith.constant 0 : i32
    %c0_i32_0 = arith.constant 0 : i32
    %c0_i32_1 = arith.constant 0 : i32
    %c0_i32_2 = arith.constant 0 : i32
    return %c0_i32, %c0_i32_0, %c0_i32_1 : i32, i32, i32
  }
  func.func @transform_10(%arg0: i32) -> (i32, i32, i32) {
    %c0_i32 = arith.constant 0 : i32
    %c0_i32_0 = arith.constant 0 : i32
    %c0_i32_1 = arith.constant 0 : i32
    %c0_i32_2 = arith.constant 0 : i32
    return %c0_i32, %c0_i32_0, %c0_i32_1 : i32, i32, i32
  }
  func.func @transform_11(%arg0: i32) -> (i32, i32, i32) {
    %c0_i32 = arith.constant 0 : i32
    %c0_i32_0 = arith.constant 0 : i32
    %c0_i32_1 = arith.constant 0 : i32
    %c0_i32_2 = arith.constant 0 : i32
    return %c0_i32, %c0_i32_0, %c0_i32_1 : i32, i32, i32
  }
  func.func @transform_12(%arg0: i32) -> (i32, i32, i32) {
    %c0_i32 = arith.constant 0 : i32
    %c0_i32_0 = arith.constant 0 : i32
    %c0_i32_1 = arith.constant 0 : i32
    %c0_i32_2 = arith.constant 0 : i32
    return %c0_i32, %c0_i32_0, %c0_i32_1 : i32, i32, i32
  }
  func.func @transform_13(%arg0: i32) -> (i32, i32, i32) {
    %c0_i32 = arith.constant 0 : i32
    %c0_i32_0 = arith.constant 0 : i32
    %c0_i32_1 = arith.constant 0 : i32
    %c0_i32_2 = arith.constant 0 : i32
    return %c0_i32, %c0_i32_0, %c0_i32_1 : i32, i32, i32
  }
  func.func @transform_14(%arg0: i32) -> (i32, i32, i32) {
    %c0_i32 = arith.constant 0 : i32
    %c0_i32_0 = arith.constant 0 : i32
    %c0_i32_1 = arith.constant 0 : i32
    %c0_i32_2 = arith.constant 0 : i32
    return %c0_i32, %c0_i32_0, %c0_i32_1 : i32, i32, i32
  }
  func.func @transform_15(%arg0: i32) -> (i32, i32, i32) {
    %c0_i32 = arith.constant 0 : i32
    %c0_i32_0 = arith.constant 0 : i32
    %c0_i32_1 = arith.constant 0 : i32
    %c0_i32_2 = arith.constant 0 : i32
    return %c0_i32, %c0_i32_0, %c0_i32_1 : i32, i32, i32
  }
  func.func @transform_16(%arg0: i32) -> (i32, i32, i32) {
    %c0_i32 = arith.constant 0 : i32
    %c0_i32_0 = arith.constant 0 : i32
    %c0_i32_1 = arith.constant 0 : i32
    %c0_i32_2 = arith.constant 0 : i32
    return %c0_i32, %c0_i32_0, %c0_i32_1 : i32, i32, i32
  }
  func.func @transform_17(%arg0: i32) -> (i32, i32, i32) {
    %c0_i32 = arith.constant 0 : i32
    %c0_i32_0 = arith.constant 0 : i32
    %c0_i32_1 = arith.constant 0 : i32
    return %arg0, %c0_i32, %c0_i32_0 : i32, i32, i32
  }
}

</mosaic_0001>

<llo_original>
// kernel: tpu_custom_call.1
$region0: #{tpu_custom_call.1}
  #allocation0 [shape = 'u32[]', space=smem, size = 0x4, offset = 0x4, fixed_abs, tag = 'smem constant byte address 0x4 - core index']
  #allocation1 [shape = 'u32[144,128]{1,0:T(1,128)}', space=vmem, size = 0x12000, scoped, tag = 'internal scratch']
  %s0 = inlined_call_operand.hbm [shape: f32[2,8,128], index: 0, kind: input, shape index: {}]
  %s1 = inlined_call_operand.hbm [shape: f32[2,1,8], index: 1, kind: input, shape index: {}]
  %s2 = inlined_call_operand.vmem [shape: f32[2,1,128], index: 2, kind: input, shape index: {}]
  %s3 = inlined_call_operand.hbm [shape: f32[1,128], index: 3, kind: input, shape index: {}]
  %s4 = inlined_call_operand.hbm [shape: f32[1,128], index: 4, kind: input, shape index: {}]
  %s5 = inlined_call_operand.hbm [shape: bf16[2,32,384], index: 5, kind: input, shape index: {}]
  %s6 = inlined_call_operand.vmem [shape: f32[2,1,384], index: 6, kind: input, shape index: {}]
  %s7 = inlined_call_operand.hbm [shape: bf16[2,32,128], index: 7, kind: input, shape index: {}]
  %s8 = inlined_call_operand.vmem [shape: f32[2,1,128], index: 8, kind: input, shape index: {}]
  %s9 = inlined_call_operand.vmem [shape: f32[2,1,128], index: 9, kind: input, shape index: {}]
  %s10 = inlined_call_operand.vmem [shape: f32[2,1,128], index: 10, kind: input, shape index: {}]
  %s11 = inlined_call_operand.hbm [shape: bf16[2,32,128], index: 11, kind: input, shape index: {}]
  %s12 = inlined_call_operand.vmem [shape: f32[2,1,128], index: 12, kind: input, shape index: {}]
  %s13 = inlined_call_operand.hbm [shape: bf16[2,64,128], index: 13, kind: input, shape index: {}]
  %s14 = inlined_call_operand.vmem [shape: f32[2,1,128], index: 14, kind: input, shape index: {}]
  %s15 = inlined_call_operand.vmem [shape: f32[2,1,128], index: 15, kind: input, shape index: {}]
  %s16 = inlined_call_operand.vmem [shape: f32[2,1,128], index: 16, kind: input, shape index: {}]
  %s17 = inlined_call_operand.hbm [shape: f32[2,1,128], index: 17, kind: output, shape index: {}]
  %s18 = sld [smem:[#allocation0]]
  $region133: #{tpu_custom_call.1} parent=0
    _
  %s20 = ssub.s32 1, %s18
  %s21 = scalar_select 0, %s20, %s18
  $region1: #{tpu_custom_call.1} parent=0
    #allocation2 [shape = 'u8[8192]{0}', space=vmem, size = 0x2000, scoped, tag = 'input window, operand 0']
    #allocation3 [shape = 's32[2]{0}', space=sflag, size = 0x8, scoped, tag = 'scoped memory for tpu_custom_call.1']
    #allocation4 [shape = 's32[2]{0}', space=sflag, size = 0x8, scoped, tag = 'scoped memory for tpu_custom_call.1']
    #allocation5 [shape = 'u8[1024]{0}', space=vmem, size = 0x400, scoped, tag = 'input window, operand 1']
    #allocation6 [shape = 's32[2]{0}', space=sflag, size = 0x8, scoped, tag = 'scoped memory for tpu_custom_call.1']
    #allocation7 [shape = 'u8[512]{0}', space=vmem, size = 0x400, scoped, tag = 'input window, operand 3, single buffered']
    #allocation8 [shape = 'u8[512]{0}', space=vmem, size = 0x400, scoped, tag = 'input window, operand 4, single buffered']
    #allocation9 [shape = 's32[1]{0}', space=sflag, size = 0x4, scoped, tag = 'scoped memory for tpu_custom_call.1']
    #allocation10 [shape = 'u8[49152]{0}', space=vmem, size = 0xc000, scoped, tag = 'input window, operand 5, single buffered']
    #allocation11 [shape = 'u8[16384]{0}', space=vmem, size = 0x4000, scoped, tag = 'input window, operand 7, single buffered']
    #allocation12 [shape = 's32[1]{0}', space=sflag, size = 0x4, scoped, tag = 'scoped memory for tpu_custom_call.1']
    #allocation13 [shape = 'u8[16384]{0}', space=vmem, size = 0x4000, scoped, tag = 'input window, operand 11, single buffered']
    #allocation14 [shape = 'u8[32768]{0}', space=vmem, size = 0x8000, scoped, tag = 'input window, operand 13, single buffered']
    #allocation15 [shape = 's32[1]{0}', space=sflag, size = 0x4, scoped, tag = 'scoped memory for tpu_custom_call.1']
    #allocation16 [shape = 'u8[1024]{0}', space=vmem, size = 0x400, scoped, tag = 'output window, operand 0']
    %22 = vsyncpa [#allocation3], 0
    %s23 = scalar_lea.sflag [#allocation3], 1
    %24 = vsyncpa %s23, 0
    %25 = vsyncpa [#allocation6], 0
    %s26 = scalar_lea.sflag [#allocation6], 1
    %27 = vsyncpa %s26, 0
    %28 = vsyncpa [#allocation9], 0
    %29 = vsyncpa [#allocation12], 0
    %30 = vsyncpa [#allocation15], 0
    %31 = vsyncpa [#allocation4], 0
    %s32 = scalar_lea.sflag [#allocation4], 1
    %33 = vsyncpa %s32, 0
    loop: start=0, step=1, limit=4
    $region2: #{tpu_custom_call.1} parent=1 // loop_pre_header
      _
    $region3: #{tpu_custom_call.1} parent=1 // loop_header
      %s35 = sphi 0, %s39
      %p36 = scmp.ge.s32.totalorder %s35, 4
      %s45 = sphi 0, %s47
      %s48 = sphi 0, %s45
      %s49 = sphi 0, %s48
      %s65 = sphi 0, %s49
      %s71 = sphi 0, %s73
      %s74 = sphi 0, %s71
      %s75 = sphi 0, %s74
      %s91 = sphi 0, %s75
      %s95 = sphi 0, %s95
      %s97 = sphi 0, %s95
      %s98 = sphi 0, %s97
      %s112 = sphi 0, %s98
      %s116 = sphi 0, %s116
      %s118 = sphi 0, %s116
      %s119 = sphi 0, %s118
      %s133 = sphi 0, %s119
      %s137 = sphi 0, %s137
      %s139 = sphi 0, %s137
      %s140 = sphi 0, %s139
      %s154 = sphi 0, %s140
      %s158 = sphi 0, %s158
      %s160 = sphi 0, %s158
      %s161 = sphi 0, %s160
      %s175 = sphi 0, %s161
      %s179 = sphi 0, %s179
      %s181 = sphi 0, %s179
      %s182 = sphi 0, %s181
      %s196 = sphi 0, %s182
      %s200 = sphi 0, %s200
      %s202 = sphi 0, %s200
      %s203 = sphi 0, %s202
      %s217 = sphi 0, %s203
      %s221 = sphi 0, %s221
      %s223 = sphi 0, %s221
      %s224 = sphi 0, %s223
      %s238 = sphi 0, %s224
      %s242 = sphi 0, %s242
      %s244 = sphi 0, %s242
      %s245 = sphi 0, %s244
      %s259 = sphi 0, %s245
      %s263 = sphi 0, %s263
      %s265 = sphi 0, %s263
      %s266 = sphi 0, %s265
      %s280 = sphi 0, %s266
      %s284 = sphi 0, %s284
      %s286 = sphi 0, %s284
      %s287 = sphi 0, %s286
      %s301 = sphi 0, %s287
      %s305 = sphi 0, %s305
      %s307 = sphi 0, %s305
      %s308 = sphi 0, %s307
      %s322 = sphi 0, %s308
      %s326 = sphi 0, %s326
      %s328 = sphi 0, %s326
      %s329 = sphi 0, %s328
      %s343 = sphi 0, %s329
      %s347 = sphi 0, %s347
      %s349 = sphi 0, %s347
      %s350 = sphi 0, %s349
      %s364 = sphi 0, %s350
      %s368 = sphi 0, %s368
      %s370 = sphi 0, %s368
      %s371 = sphi 0, %s370
      %s385 = sphi 0, %s371
      %s389 = sphi 0, %s389
      %s391 = sphi 0, %s389
      %s392 = sphi 0, %s391
      %s406 = sphi 0, %s392
      %s412 = sphi 0, %s414
      %s415 = sphi 0, %s412
      %s416 = sphi 0, %s415
      %s432 = sphi 0, %s416
    $region4: #{tpu_custom_call.1} parent=1 // loop_header_branch
      %38 = sbr.rel (%p36) target = $region8
    $region5: #{tpu_custom_call.1} parent=1 // loop_body
      %s40 = ssub.s32 %s35, 1
      %s41 = ssub.s32 %s35, 2
      %s42 = sadd.s32 %s35, 1
      %s43 = ssub.s32 %s35, %s42
      %p44 = scmp.eq.s32.totalorder %s43, 0
      %s46 = sadd.s32 %s45, 1
      %s47 = scalar_select %p44, %s45, %s46
      %p50 = pneg %p44
      %p51 = scmp.eq.s32.totalorder %s35, 1
      %p52 = por %p50, %p51
      %p53 = scmp.ne.s32.totalorder %s45, %s48
      %p54 = scmp.eq.s32.totalorder %s35, 0
      %p55 = por %p53, %p54
      %p56 = scmp.ne.s32.totalorder %s45, %s48
      %p57 = scmp.eq.s32.totalorder %s40, 1
      %p58 = por %p56, %p57
      %p59 = scmp.ne.s32.totalorder %s48, %s49
      %p60 = scmp.eq.s32.totalorder %s40, 0
      %p61 = por %p59, %p60
      %p62 = scmp.ne.s32.totalorder %s48, %s49
      %p63 = scmp.eq.s32.totalorder %s41, 1
      %p64 = por %p62, %p63
      %p66 = scmp.ne.s32.totalorder %s49, %s65
      %p67 = scmp.eq.s32.totalorder %s41, 0
      %p68 = por %p66, %p67
      %s69 = ssub.s32 %s35, %s42
      %p70 = scmp.eq.s32.totalorder %s69, 0
      %s72 = sadd.s32 %s71, 1
      %s73 = scalar_select %p70, %s71, %s72
      %p76 = pneg %p70
      %p77 = scmp.eq.s32.totalorder %s35, 1
      %p78 = por %p76, %p77
      %p79 = scmp.ne.s32.totalorder %s71, %s74
      %p80 = scmp.eq.s32.totalorder %s35, 0
      %p81 = por %p79, %p80
      %p82 = scmp.ne.s32.totalorder %s71, %s74
      %p83 = scmp.eq.s32.totalorder %s40, 1
      %p84 = por %p82, %p83
      %p85 = scmp.ne.s32.totalorder %s74, %s75
      %p86 = scmp.eq.s32.totalorder %s40, 0
      %p87 = por %p85, %p86
      %p88 = scmp.ne.s32.totalorder %s74, %s75
      %p89 = scmp.eq.s32.totalorder %s41, 1
      %p90 = por %p88, %p89
      %p92 = scmp.ne.s32.totalorder %s75, %s91
      %p93 = scmp.eq.s32.totalorder %s41, 0
      %p94 = por %p92, %p93
      %s96 = sadd.s32 %s95, 1
      %p99 = scmp.eq.s32.totalorder %s35, 1
      %p100 = scmp.ne.s32.totalorder %s95, %s97
      %p101 = scmp.eq.s32.totalorder %s35, 0
      %p102 = por %p100, %p101
      %p103 = scmp.ne.s32.totalorder %s95, %s97
      %p104 = scmp.eq.s32.totalorder %s40, 1
      %p105 = por %p103, %p104
      %p106 = scmp.ne.s32.totalorder %s97, %s98
      %p107 = scmp.eq.s32.totalorder %s40, 0
      %p108 = por %p106, %p107
      %p109 = scmp.ne.s32.totalorder %s97, %s98
      %p110 = scmp.eq.s32.totalorder %s41, 1
      %p111 = por %p109, %p110
      %p113 = scmp.ne.s32.totalorder %s98, %s112
      %p114 = scmp.eq.s32.totalorder %s41, 0
      %p115 = por %p113, %p114
      %s117 = sadd.s32 %s116, 1
      %p120 = scmp.eq.s32.totalorder %s35, 1
      %p121 = scmp.ne.s32.totalorder %s116, %s118
      %p122 = scmp.eq.s32.totalorder %s35, 0
      %p123 = por %p121, %p122
      %p124 = scmp.ne.s32.totalorder %s116, %s118
      %p125 = scmp.eq.s32.totalorder %s40, 1
      %p126 = por %p124, %p125
      %p127 = scmp.ne.s32.totalorder %s118, %s119
      %p128 = scmp.eq.s32.totalorder %s40, 0
      %p129 = por %p127, %p128
      %p130 = scmp.ne.s32.totalorder %s118, %s119
      %p131 = scmp.eq.s32.totalorder %s41, 1
      %p132 = por %p130, %p131
      %p134 = scmp.ne.s32.totalorder %s119, %s133
      %p135 = scmp.eq.s32.totalorder %s41, 0
      %p136 = por %p134, %p135
      %s138 = sadd.s32 %s137, 1
      %p141 = scmp.eq.s32.totalorder %s35, 1
      %p142 = scmp.ne.s32.totalorder %s137, %s139
      %p143 = scmp.eq.s32.totalorder %s35, 0
      %p144 = por %p142, %p143
      %p145 = scmp.ne.s32.totalorder %s137, %s139
      %p146 = scmp.eq.s32.totalorder %s40, 1
      %p147 = por %p145, %p146
      %p148 = scmp.ne.s32.totalorder %s139, %s140
      %p149 = scmp.eq.s32.totalorder %s40, 0
      %p150 = por %p148, %p149
      %p151 = scmp.ne.s32.totalorder %s139, %s140
      %p152 = scmp.eq.s32.totalorder %s41, 1
      %p153 = por %p151, %p152
      %p155 = scmp.ne.s32.totalorder %s140, %s154
      %p156 = scmp.eq.s32.totalorder %s41, 0
      %p157 = por %p155, %p156
      %s159 = sadd.s32 %s158, 1
      %p162 = scmp.eq.s32.totalorder %s35, 1
      %p163 = scmp.ne.s32.totalorder %s158, %s160
      %p164 = scmp.eq.s32.totalorder %s35, 0
      %p165 = por %p163, %p164
      %p166 = scmp.ne.s32.totalorder %s158, %s160
      %p167 = scmp.eq.s32.totalorder %s40, 1
      %p168 = por %p166, %p167
      %p169 = scmp.ne.s32.totalorder %s160, %s161
      %p170 = scmp.eq.s32.totalorder %s40, 0
      %p171 = por %p169, %p170
      %p172 = scmp.ne.s32.totalorder %s160, %s161
      %p173 = scmp.eq.s32.totalorder %s41, 1
      %p174 = por %p172, %p173
      %p176 = scmp.ne.s32.totalorder %s161, %s175
      %p177 = scmp.eq.s32.totalorder %s41, 0
      %p178 = por %p176, %p177
      %s180 = sadd.s32 %s179, 1
      %p183 = scmp.eq.s32.totalorder %s35, 1
      %p184 = scmp.ne.s32.totalorder %s179, %s181
      %p185 = scmp.eq.s32.totalorder %s35, 0
      %p186 = por %p184, %p185
      %p187 = scmp.ne.s32.totalorder %s179, %s181
      %p188 = scmp.eq.s32.totalorder %s40, 1
      %p189 = por %p187, %p188
      %p190 = scmp.ne.s32.totalorder %s181, %s182
      %p191 = scmp.eq.s32.totalorder %s40, 0
      %p192 = por %p190, %p191
      %p193 = scmp.ne.s32.totalorder %s181, %s182
      %p194 = scmp.eq.s32.totalorder %s41, 1
      %p195 = por %p193, %p194
      %p197 = scmp.ne.s32.totalorder %s182, %s196
      %p198 = scmp.eq.s32.totalorder %s41, 0
      %p199 = por %p197, %p198
      %s201 = sadd.s32 %s200, 1
      %p204 = scmp.eq.s32.totalorder %s35, 1
      %p205 = scmp.ne.s32.totalorder %s200, %s202
      %p206 = scmp.eq.s32.totalorder %s35, 0
      %p207 = por %p205, %p206
      %p208 = scmp.ne.s32.totalorder %s200, %s202
      %p209 = scmp.eq.s32.totalorder %s40, 1
      %p210 = por %p208, %p209
      %p211 = scmp.ne.s32.totalorder %s202, %s203
      %p212 = scmp.eq.s32.totalorder %s40, 0
      %p213 = por %p211, %p212
      %p214 = scmp.ne.s32.totalorder %s202, %s203
      %p215 = scmp.eq.s32.totalorder %s41, 1
      %p216 = por %p214, %p215
      %p218 = scmp.ne.s32.totalorder %s203, %s217
      %p219 = scmp.eq.s32.totalorder %s41, 0
      %p220 = por %p218, %p219
      %s222 = sadd.s32 %s221, 1
      %p225 = scmp.eq.s32.totalorder %s35, 1
      %p226 = scmp.ne.s32.totalorder %s221, %s223
      %p227 = scmp.eq.s32.totalorder %s35, 0
      %p228 = por %p226, %p227
      %p229 = scmp.ne.s32.totalorder %s221, %s223
      %p230 = scmp.eq.s32.totalorder %s40, 1
      %p231 = por %p229, %p230
      %p232 = scmp.ne.s32.totalorder %s223, %s224
      %p233 = scmp.eq.s32.totalorder %s40, 0
      %p234 = por %p232, %p233
      %p235 = scmp.ne.s32.totalorder %s223, %s224
      %p236 = scmp.eq.s32.totalorder %s41, 1
      %p237 = por %p235, %p236
      %p239 = scmp.ne.s32.totalorder %s224, %s238
      %p240 = scmp.eq.s32.totalorder %s41, 0
      %p241 = por %p239, %p240
      %s243 = sadd.s32 %s242, 1
      %p246 = scmp.eq.s32.totalorder %s35, 1
      %p247 = scmp.ne.s32.totalorder %s242, %s244
      %p248 = scmp.eq.s32.totalorder %s35, 0
      %p249 = por %p247, %p248
      %p250 = scmp.ne.s32.totalorder %s242, %s244
      %p251 = scmp.eq.s32.totalorder %s40, 1
      %p252 = por %p250, %p251
      %p253 = scmp.ne.s32.totalorder %s244, %s245
      %p254 = scmp.eq.s32.totalorder %s40, 0
      %p255 = por %p253, %p254
      %p256 = scmp.ne.s32.totalorder %s244, %s245
      %p257 = scmp.eq.s32.totalorder %s41, 1
      %p258 = por %p256, %p257
      %p260 = scmp.ne.s32.totalorder %s245, %s259
      %p261 = scmp.eq.s32.totalorder %s41, 0
      %p262 = por %p260, %p261
      %s264 = sadd.s32 %s263, 1
      %p267 = scmp.eq.s32.totalorder %s35, 1
      %p268 = scmp.ne.s32.totalorder %s263, %s265
      %p269 = scmp.eq.s32.totalorder %s35, 0
      %p270 = por %p268, %p269
      %p271 = scmp.ne.s32.totalorder %s263, %s265
      %p272 = scmp.eq.s32.totalorder %s40, 1
      %p273 = por %p271, %p272
      %p274 = scmp.ne.s32.totalorder %s265, %s266
      %p275 = scmp.eq.s32.totalorder %s40, 0
      %p276 = por %p274, %p275
      %p277 = scmp.ne.s32.totalorder %s265, %s266
      %p278 = scmp.eq.s32.totalorder %s41, 1
      %p279 = por %p277, %p278
      %p281 = scmp.ne.s32.totalorder %s266, %s280
      %p282 = scmp.eq.s32.totalorder %s41, 0
      %p283 = por %p281, %p282
      %s285 = sadd.s32 %s284, 1
      %p288 = scmp.eq.s32.totalorder %s35, 1
      %p289 = scmp.ne.s32.totalorder %s284, %s286
      %p290 = scmp.eq.s32.totalorder %s35, 0
      %p291 = por %p289, %p290
      %p292 = scmp.ne.s32.totalorder %s284, %s286
      %p293 = scmp.eq.s32.totalorder %s40, 1
      %p294 = por %p292, %p293
      %p295 = scmp.ne.s32.totalorder %s286, %s287
      %p296 = scmp.eq.s32.totalorder %s40, 0
      %p297 = por %p295, %p296
      %p298 = scmp.ne.s32.totalorder %s286, %s287
      %p299 = scmp.eq.s32.totalorder %s41, 1
      %p300 = por %p298, %p299
      %p302 = scmp.ne.s32.totalorder %s287, %s301
      %p303 = scmp.eq.s32.totalorder %s41, 0
      %p304 = por %p302, %p303
      %s306 = sadd.s32 %s305, 1
      %p309 = scmp.eq.s32.totalorder %s35, 1
      %p310 = scmp.ne.s32.totalorder %s305, %s307
      %p311 = scmp.eq.s32.totalorder %s35, 0
      %p312 = por %p310, %p311
      %p313 = scmp.ne.s32.totalorder %s305, %s307
      %p314 = scmp.eq.s32.totalorder %s40, 1
      %p315 = por %p313, %p314
      %p316 = scmp.ne.s32.totalorder %s307, %s308
      %p317 = scmp.eq.s32.totalorder %s40, 0
      %p318 = por %p316, %p317
      %p319 = scmp.ne.s32.totalorder %s307, %s308
      %p320 = scmp.eq.s32.totalorder %s41, 1
      %p321 = por %p319, %p320
      %p323 = scmp.ne.s32.totalorder %s308, %s322
      %p324 = scmp.eq.s32.totalorder %s41, 0
      %p325 = por %p323, %p324
      %s327 = sadd.s32 %s326, 1
      %p330 = scmp.eq.s32.totalorder %s35, 1
      %p331 = scmp.ne.s32.totalorder %s326, %s328
      %p332 = scmp.eq.s32.totalorder %s35, 0
      %p333 = por %p331, %p332
      %p334 = scmp.ne.s32.totalorder %s326, %s328
      %p335 = scmp.eq.s32.totalorder %s40, 1
      %p336 = por %p334, %p335
      %p337 = scmp.ne.s32.totalorder %s328, %s329
      %p338 = scmp.eq.s32.totalorder %s40, 0
      %p339 = por %p337, %p338
      %p340 = scmp.ne.s32.totalorder %s328, %s329
      %p341 = scmp.eq.s32.totalorder %s41, 1
      %p342 = por %p340, %p341
      %p344 = scmp.ne.s32.totalorder %s329, %s343
      %p345 = scmp.eq.s32.totalorder %s41, 0
      %p346 = por %p344, %p345
      %s348 = sadd.s32 %s347, 1
      %p351 = scmp.eq.s32.totalorder %s35, 1
      %p352 = scmp.ne.s32.totalorder %s347, %s349
      %p353 = scmp.eq.s32.totalorder %s35, 0
      %p354 = por %p352, %p353
      %p355 = scmp.ne.s32.totalorder %s347, %s349
      %p356 = scmp.eq.s32.totalorder %s40, 1
      %p357 = por %p355, %p356
      %p358 = scmp.ne.s32.totalorder %s349, %s350
      %p359 = scmp.eq.s32.totalorder %s40, 0
      %p360 = por %p358, %p359
      %p361 = scmp.ne.s32.totalorder %s349, %s350
      %p362 = scmp.eq.s32.totalorder %s41, 1
      %p363 = por %p361, %p362
      %p365 = scmp.ne.s32.totalorder %s350, %s364
      %p366 = scmp.eq.s32.totalorder %s41, 0
      %p367 = por %p365, %p366
      %s369 = sadd.s32 %s368, 1
      %p372 = scmp.eq.s32.totalorder %s35, 1
      %p373 = scmp.ne.s32.totalorder %s368, %s370
      %p374 = scmp.eq.s32.totalorder %s35, 0
      %p375 = por %p373, %p374
      %p376 = scmp.ne.s32.totalorder %s368, %s370
      %p377 = scmp.eq.s32.totalorder %s40, 1
      %p378 = por %p376, %p377
      %p379 = scmp.ne.s32.totalorder %s370, %s371
      %p380 = scmp.eq.s32.totalorder %s40, 0
      %p381 = por %p379, %p380
      %p382 = scmp.ne.s32.totalorder %s370, %s371
      %p383 = scmp.eq.s32.totalorder %s41, 1
      %p384 = por %p382, %p383
      %p386 = scmp.ne.s32.totalorder %s371, %s385
      %p387 = scmp.eq.s32.totalorder %s41, 0
      %p388 = por %p386, %p387
      %s390 = sadd.s32 %s389, 1
      %p393 = scmp.eq.s32.totalorder %s35, 1
      %p394 = scmp.ne.s32.totalorder %s389, %s391
      %p395 = scmp.eq.s32.totalorder %s35, 0
      %p396 = por %p394, %p395
      %p397 = scmp.ne.s32.totalorder %s389, %s391
      %p398 = scmp.eq.s32.totalorder %s40, 1
      %p399 = por %p397, %p398
      %p400 = scmp.ne.s32.totalorder %s391, %s392
      %p401 = scmp.eq.s32.totalorder %s40, 0
      %p402 = por %p400, %p401
      %p403 = scmp.ne.s32.totalorder %s391, %s392
      %p404 = scmp.eq.s32.totalorder %s41, 1
      %p405 = por %p403, %p404
      %p407 = scmp.ne.s32.totalorder %s392, %s406
      %p408 = scmp.eq.s32.totalorder %s41, 0
      %p409 = por %p407, %p408
      %s410 = ssub.s32 %s35, %s42
      %p411 = scmp.eq.s32.totalorder %s410, 0
      %s413 = sadd.s32 %s412, 1
      %s414 = scalar_select %p411, %s412, %s413
      %p417 = pneg %p411
      %p418 = scmp.eq.s32.totalorder %s35, 1
      %p419 = por %p417, %p418
      %p420 = scmp.ne.s32.totalorder %s412, %s415
      %p421 = scmp.eq.s32.totalorder %s35, 0
      %p422 = por %p420, %p421
      %p423 = scmp.ne.s32.totalorder %s412, %s415
      %p424 = scmp.eq.s32.totalorder %s40, 1
      %p425 = por %p423, %p424
      %p426 = scmp.ne.s32.totalorder %s415, %s416
      %p427 = scmp.eq.s32.totalorder %s40, 0
      %p428 = por %p426, %p427
      %p429 = scmp.ne.s32.totalorder %s415, %s416
      %p430 = scmp.eq.s32.totalorder %s41, 1
      %p431 = por %p429, %p430
      %p433 = scmp.ne.s32.totalorder %s416, %s432
      %p434 = scmp.eq.s32.totalorder %s41, 0
      %p435 = por %p433, %p434
      %p436 = scmp.le.s32.totalorder 1, %s35
      %p437 = scmp.lt.s32.totalorder %s35, 3
      %p438 = pnand %p436, %p437
      %p439 = pneg %p438
      // Predicated region
      $region9: #{tpu_custom_call.1} parent=5 // pred_check
        _
      $region10: #{tpu_custom_call.1} parent=5 // pred_check_branch
        %441 = sbr.rel (%p438) target = $region12
      $region11: #{tpu_custom_call.1} parent=5 // pred_region
        %s442 = ssub.s32 %s35, 1
        // Predicated region
        $region13: #{tpu_custom_call.1} parent=11 // pred_check
          %p443 = pneg %p108
        $region14: #{tpu_custom_call.1} parent=11 // pred_check_branch
          %445 = sbr.rel (%p443) target = $region16
        $region15: #{tpu_custom_call.1} parent=11 // pred_region
          _
        $region16: #{tpu_custom_call.1} parent=11 // pred_fallthru
          _
        // Predicated region
        $region17: #{tpu_custom_call.1} parent=11 // pred_check
          %p446 = pneg %p129
        $region18: #{tpu_custom_call.1} parent=11 // pred_check_branch
          %448 = sbr.rel (%p446) target = $region20
        $region19: #{tpu_custom_call.1} parent=11 // pred_region
          %s450 = ssub.s32 16, 16
          %451 = vsyncadd [#allocation6], %s450
          %s453 = sshll.u32 [#allocation7], 4
          %s454 = int_to_ptr.vmem [resolvable:$true] %s453
          %456 = dma.hbm_to_vmem [thread:$0]  %s3, 16, %s454, [#allocation6]
        $region20: #{tpu_custom_call.1} parent=11 // pred_fallthru
          _
        // Predicated region
        $region21: #{tpu_custom_call.1} parent=11 // pred_check
          %p457 = pneg %p150
        $region22: #{tpu_custom_call.1} parent=11 // pred_check_branch
          %459 = sbr.rel (%p457) target = $region24
        $region23: #{tpu_custom_call.1} parent=11 // pred_region
          %s461 = ssub.s32 16, 16
          %462 = vsyncadd [#allocation9], %s461
          %s464 = sshll.u32 [#allocation8], 4
          %s465 = int_to_ptr.vmem [resolvable:$true] %s464
          %467 = dma.hbm_to_vmem [thread:$0]  %s4, 16, %s465, [#allocation9]
        $region24: #{tpu_custom_call.1} parent=11 // pred_fallthru
          _
        // Predicated region
        $region25: #{tpu_custom_call.1} parent=11 // pred_check
          %p468 = pneg %p171
        $region26: #{tpu_custom_call.1} parent=11 // pred_check_branch
          %470 = sbr.rel (%p468) target = $region28
        $region27: #{tpu_custom_call.1} parent=11 // pred_region
          %s472 = ssub.s32 1536, 1536
          %473 = vsyncadd [#allocation9], %s472
          %s474 = sshll.u32 [#allocation10], 4
          %s475 = int_to_ptr.vmem [resolvable:$true] %s474
          %480 = dma.hbm_to_vmem [thread:$0]  %s5, 1536, %s475, [#allocation9], 192, 192, 12
        $region28: #{tpu_custom_call.1} parent=11 // pred_fallthru
          _
        // Predicated region
        $region29: #{tpu_custom_call.1} parent=11 // pred_check
          %p481 = pneg %p192
        $region30: #{tpu_custom_call.1} parent=11 // pred_check_branch
          %483 = sbr.rel (%p481) target = $region32
        $region31: #{tpu_custom_call.1} parent=11 // pred_region
          _
        $region32: #{tpu_custom_call.1} parent=11 // pred_fallthru
          _
        // Predicated region
        $region33: #{tpu_custom_call.1} parent=11 // pred_check
          %p484 = pneg %p213
        $region34: #{tpu_custom_call.1} parent=11 // pred_check_branch
          %486 = sbr.rel (%p484) target = $region36
        $region35: #{tpu_custom_call.1} parent=11 // pred_region
          %s488 = ssub.s32 512, 512
          %489 = vsyncadd [#allocation12], %s488
          %s490 = sshll.u32 [#allocation11], 4
          %s491 = int_to_ptr.vmem [resolvable:$true] %s490
          %496 = dma.hbm_to_vmem [thread:$0]  %s7, 512, %s491, [#allocation12], 64, 64, 4
        $region36: #{tpu_custom_call.1} parent=11 // pred_fallthru
          _
        // Predicated region
        $region37: #{tpu_custom_call.1} parent=11 // pred_check
          %p497 = pneg %p234
        $region38: #{tpu_custom_call.1} parent=11 // pred_check_branch
          %499 = sbr.rel (%p497) target = $region40
        $region39: #{tpu_custom_call.1} parent=11 // pred_region
          _
        $region40: #{tpu_custom_call.1} parent=11 // pred_fallthru
          _
        // Predicated region
        $region41: #{tpu_custom_call.1} parent=11 // pred_check
          %p500 = pneg %p255
        $region42: #{tpu_custom_call.1} parent=11 // pred_check_branch
          %502 = sbr.rel (%p500) target = $region44
        $region43: #{tpu_custom_call.1} parent=11 // pred_region
          _
        $region44: #{tpu_custom_call.1} parent=11 // pred_fallthru
          _
        // Predicated region
        $region45: #{tpu_custom_call.1} parent=11 // pred_check
          %p503 = pneg %p276
        $region46: #{tpu_custom_call.1} parent=11 // pred_check_branch
          %505 = sbr.rel (%p503) target = $region48
        $region47: #{tpu_custom_call.1} parent=11 // pred_region
          _
        $region48: #{tpu_custom_call.1} parent=11 // pred_fallthru
          _
        // Predicated region
        $region49: #{tpu_custom_call.1} parent=11 // pred_check
          %p506 = pneg %p297
        $region50: #{tpu_custom_call.1} parent=11 // pred_check_branch
          %508 = sbr.rel (%p506) target = $region52
        $region51: #{tpu_custom_call.1} parent=11 // pred_region
          %s510 = ssub.s32 512, 512
          %511 = vsyncadd [#allocation12], %s510
          %s512 = sshll.u32 [#allocation13], 4
          %s513 = int_to_ptr.vmem [resolvable:$true] %s512
          %518 = dma.hbm_to_vmem [thread:$0]  %s11, 512, %s513, [#allocation12], 64, 64, 4
        $region52: #{tpu_custom_call.1} parent=11 // pred_fallthru
          _
        // Predicated region
        $region53: #{tpu_custom_call.1} parent=11 // pred_check
          %p519 = pneg %p318
        $region54: #{tpu_custom_call.1} parent=11 // pred_check_branch
          %521 = sbr.rel (%p519) target = $region56
        $region55: #{tpu_custom_call.1} parent=11 // pred_region
          _
        $region56: #{tpu_custom_call.1} parent=11 // pred_fallthru
          _
        // Predicated region
        $region57: #{tpu_custom_call.1} parent=11 // pred_check
          %p522 = pneg %p339
        $region58: #{tpu_custom_call.1} parent=11 // pred_check_branch
          %524 = sbr.rel (%p522) target = $region60
        $region59: #{tpu_custom_call.1} parent=11 // pred_region
          %s526 = ssub.s32 1024, 1024
          %527 = vsyncadd [#allocation15], %s526
          %s528 = sshll.u32 [#allocation14], 4
          %s529 = int_to_ptr.vmem [resolvable:$true] %s528
          %534 = dma.hbm_to_vmem [thread:$0]  %s13, 1024, %s529, [#allocation15], 64, 64, 4
        $region60: #{tpu_custom_call.1} parent=11 // pred_fallthru
          _
        // Predicated region
        $region61: #{tpu_custom_call.1} parent=11 // pred_check
          %p535 = pneg %p360
        $region62: #{tpu_custom_call.1} parent=11 // pred_check_branch
          %537 = sbr.rel (%p535) target = $region64
        $region63: #{tpu_custom_call.1} parent=11 // pred_region
          _
        $region64: #{tpu_custom_call.1} parent=11 // pred_fallthru
          _
        // Predicated region
        $region65: #{tpu_custom_call.1} parent=11 // pred_check
          %p538 = pneg %p381
        $region66: #{tpu_custom_call.1} parent=11 // pred_check_branch
          %540 = sbr.rel (%p538) target = $region68
        $region67: #{tpu_custom_call.1} parent=11 // pred_region
          _
        $region68: #{tpu_custom_call.1} parent=11 // pred_fallthru
          _
        // Predicated region
        $region69: #{tpu_custom_call.1} parent=11 // pred_check
          %p541 = pneg %p402
        $region70: #{tpu_custom_call.1} parent=11 // pred_check_branch
          %543 = sbr.rel (%p541) target = $region72
        $region71: #{tpu_custom_call.1} parent=11 // pred_region
          _
        $region72: #{tpu_custom_call.1} parent=11 // pred_fallthru
          _
      $region12: #{tpu_custom_call.1} parent=5 // pred_fallthru
        _
      %p544 = scmp.lt.s32.totalorder %s35, 2
      // Predicated region
      $region73: #{tpu_custom_call.1} parent=5 // pred_check
        %p545 = pneg %p544
      $region74: #{tpu_custom_call.1} parent=5 // pred_check_branch
        %547 = sbr.rel (%p545) target = $region76
      $region75: #{tpu_custom_call.1} parent=5 // pred_region
        // Predicated region
        $region77: #{tpu_custom_call.1} parent=75 // pred_check
          %p548 = pneg %p55
        $region78: #{tpu_custom_call.1} parent=75 // pred_check_branch
          %550 = sbr.rel (%p548) target = $region80
        $region79: #{tpu_custom_call.1} parent=75 // pred_region
          %s551 = sand.u32 %s45, 1
          %s552 = scalar_lea.sflag [#allocation3], %s551
          %s553 = sand.u32 %s45, 1
          %s554 = smul.addr %s553, 8
          %s555 = scalar_lea.vmem [#allocation2], %s554
          %s557 = ssub.s32 128, 128
          %558 = vsyncadd %s552, %s557
          %s559 = smul.addr %s35, 128
          %s560 = scalar_lea.hbm %s0, %s559
          %s562 = sshll.u32 %s555, 4
          %s563 = int_to_ptr.vmem [resolvable:$true] %s562
          %565 = dma.hbm_to_vmem [thread:$0]  %s560, 128, %s563, %s552
        $region80: #{tpu_custom_call.1} parent=75 // pred_fallthru
          _
        // Predicated region
        $region81: #{tpu_custom_call.1} parent=75 // pred_check
          %p566 = pneg %p81
        $region82: #{tpu_custom_call.1} parent=75 // pred_check_branch
          %568 = sbr.rel (%p566) target = $region84
        $region83: #{tpu_custom_call.1} parent=75 // pred_region
          %s569 = sand.u32 %s35, 1
          %s570 = scalar_lea.sflag [#allocation6], %s569
          %s571 = sand.u32 %s71, 1
          %s572 = scalar_lea.vmem [#allocation5], %s571
          %s574 = ssub.s32 16, 16
          %575 = vsyncadd %s570, %s574
          %s576 = smul.addr %s35, 16
          %s577 = scalar_lea.hbm %s1, %s576
          %s579 = sshll.u32 %s572, 4
          %s580 = int_to_ptr.vmem [resolvable:$true] %s579
          %582 = dma.hbm_to_vmem [thread:$0]  %s577, 16, %s580, %s570
        $region84: #{tpu_custom_call.1} parent=75 // pred_fallthru
          _
      $region76: #{tpu_custom_call.1} parent=5 // pred_fallthru
        _
      %p583 = scmp.le.s32.totalorder 1, %s35
      %p584 = scmp.lt.s32.totalorder %s35, 3
      %p585 = pnand %p583, %p584
      %p586 = pneg %p585
      // Predicated region
      $region85: #{tpu_custom_call.1} parent=5 // pred_check
        _
      $region86: #{tpu_custom_call.1} parent=5 // pred_check_branch
        %588 = sbr.rel (%p585) target = $region88
      $region87: #{tpu_custom_call.1} parent=5 // pred_region
        %s589 = ssub.s32 %s35, 1
        %s590 = sand.u32 %s48, 1
        %s591 = scalar_lea.sflag [#allocation3], %s590
        %s592 = sand.u32 %s48, 1
        %s593 = smul.addr %s592, 8
        %s594 = scalar_lea.vmem [#allocation2], %s593
        // Predicated region
        $region89: #{tpu_custom_call.1} parent=87 // pred_check
          %p595 = pneg %p61
        $region90: #{tpu_custom_call.1} parent=87 // pred_check_branch
          %597 = sbr.rel (%p595) target = $region92
        $region91: #{tpu_custom_call.1} parent=87 // pred_region
          %598 = dma.done %s591, 128
        $region92: #{tpu_custom_call.1} parent=87 // pred_fallthru
          _
        %s599 = sand.u32 %s40, 1
        %s600 = scalar_lea.sflag [#allocation6], %s599
        %s601 = sand.u32 %s74, 1
        %s602 = scalar_lea.vmem [#allocation5], %s601
        // Predicated region
        $region93: #{tpu_custom_call.1} parent=87 // pred_check
          %p603 = pneg %p87
        $region94: #{tpu_custom_call.1} parent=87 // pred_check_branch
          %605 = sbr.rel (%p603) target = $region96
        $region95: #{tpu_custom_call.1} parent=87 // pred_region
          %606 = dma.done %s600, 16
        $region96: #{tpu_custom_call.1} parent=87 // pred_fallthru
          _
        // Predicated region
        $region97: #{tpu_custom_call.1} parent=87 // pred_check
          %p607 = pneg %p129
        $region98: #{tpu_custom_call.1} parent=87 // pred_check_branch
          %609 = sbr.rel (%p607) target = $region100
        $region99: #{tpu_custom_call.1} parent=87 // pred_region
          %610 = dma.done [#allocation6], 16
        $region100: #{tpu_custom_call.1} parent=87 // pred_fallthru
          _
        // Predicated region
        $region101: #{tpu_custom_call.1} parent=87 // pred_check
          %p611 = pneg %p150
        $region102: #{tpu_custom_call.1} parent=87 // pred_check_branch
          %613 = sbr.rel (%p611) target = $region104
        $region103: #{tpu_custom_call.1} parent=87 // pred_region
          %614 = dma.done [#allocation9], 16
        $region104: #{tpu_custom_call.1} parent=87 // pred_fallthru
          _
        // Predicated region
        $region105: #{tpu_custom_call.1} parent=87 // pred_check
          %p615 = pneg %p171
        $region106: #{tpu_custom_call.1} parent=87 // pred_check_branch
          %617 = sbr.rel (%p615) target = $region108
        $region107: #{tpu_custom_call.1} parent=87 // pred_region
          %618 = dma.done [#allocation9], 1536
        $region108: #{tpu_custom_call.1} parent=87 // pred_fallthru
          _
        // Predicated region
        $region109: #{tpu_custom_call.1} parent=87 // pred_check
          %p619 = pneg %p213
        $region110: #{tpu_custom_call.1} parent=87 // pred_check_branch
          %621 = sbr.rel (%p619) target = $region112
        $region111: #{tpu_custom_call.1} parent=87 // pred_region
          %622 = dma.done [#allocation12], 512
        $region112: #{tpu_custom_call.1} parent=87 // pred_fallthru
          _
        // Predicated region
        $region113: #{tpu_custom_call.1} parent=87 // pred_check
          %p623 = pneg %p297
        $region114: #{tpu_custom_call.1} parent=87 // pred_check_branch
          %625 = sbr.rel (%p623) target = $region116
        $region115: #{tpu_custom_call.1} parent=87 // pred_region
          %626 = dma.done [#allocation12], 512
        $region116: #{tpu_custom_call.1} parent=87 // pred_fallthru
          _
        // Predicated region
        $region117: #{tpu_custom_call.1} parent=87 // pred_check
          %p627 = pneg %p339
        $region118: #{tpu_custom_call.1} parent=87 // pred_check_branch
          %629 = sbr.rel (%p627) target = $region120
        $region119: #{tpu_custom_call.1} parent=87 // pred_region
          %630 = dma.done [#allocation15], 1024
        $region120: #{tpu_custom_call.1} parent=87 // pred_fallthru
          _
        %s631 = sand.u32 %s48, 1
        %s632 = scalar_lea.sflag [#allocation3], %s631
        %s633 = sand.u32 %s48, 1
        %s634 = smul.addr %s633, 8
        %s635 = scalar_lea.vmem [#allocation2], %s634
        %p636 = pneg %p61
        %p637 = pneg %p58
        %s638 = sand.u32 %s40, 1
        %s639 = scalar_lea.sflag [#allocation6], %s638
        %s640 = sand.u32 %s74, 1
        %s641 = scalar_lea.vmem [#allocation5], %s640
        %p642 = pneg %p87
        %p643 = pneg %p84
        %p644 = pneg %p108
        %p645 = pneg %p105
        %p646 = pneg %p129
        %p647 = pneg %p126
        %p648 = pneg %p150
        %p649 = pneg %p147
        %p650 = pneg %p171
        %p651 = pneg %p168
        %p652 = pneg %p192
        %p653 = pneg %p189
        %p654 = pneg %p213
        %p655 = pneg %p210
        %p656 = pneg %p234
        %p657 = pneg %p231
        %p658 = pneg %p255
        %p659 = pneg %p252
        %p660 = pneg %p276
        %p661 = pneg %p273
        %p662 = pneg %p297
        %p663 = pneg %p294
        %p664 = pneg %p318
        %p665 = pneg %p315
        %p666 = pneg %p339
        %p667 = pneg %p336
        %p668 = pneg %p360
        %p669 = pneg %p357
        %p670 = pneg %p381
        %p671 = pneg %p378
        %p672 = pneg %p402
        %p673 = pneg %p399
        %p674 = pneg %p428
        %p675 = pneg %p425
        %s676 = sand.u32 %s415, 1
        %s677 = scalar_lea.sflag [#allocation4], %s676
        %s678 = sand.u32 %s415, 1
        %s679 = scalar_lea.vmem [#allocation16], %s678
        %v681 = vld [vmem:[%s594] sm:$0xff]
        %v682 = vld [vmem:[%s602] sm:$0x1]
        %v683 = vld [vmem:[%s2] sm:$0x1]
        %v684 = vld [vmem:[%s2 + $0x1] sm:$0x1]
        %v685 = vld [vmem:[#allocation7] sm:$0x1]
        %v686 = vld [vmem:[#allocation8] sm:$0x1]
        %vm687 = vcmask 261120
        %v688 = vsel %vm687, %v681, 0.0
        %689 = vadd.xlane.f32.xlu0 %v688
        %v690 = vpop.xlane.xlu0 %689
        %v691 = vmul.f32 %v690, 0.03125
        %v692 = vsub.f32 %v681, %v691
        %v693 = vmul.f32 %v692, %v692
        %v694 = vsel %vm687, %v693, 0.0
        %695 = vadd.xlane.f32.xlu0 %v694
        %v696 = vpop.xlane.xlu0 %695
        %v697 = vmul.f32 %v696, 0.03125
        %v698 = vadd.f32 %v697, 1e-05
        %v699 = vrsqrt.pop %v698
        %v700 = vmul.f32 %v692, %v699
        %v702 = vlaneseq
        %v703 = vshrl.u32 %v702, 7
        %v704 = vsub.s32 0, %v703
        %v705 = vrot.slane %v685, %v704
        %v707 = vmul.f32 %v700, %v705
        %v709 = vlaneseq
        %v710 = vshrl.u32 %v709, 7
        %v711 = vsub.s32 0, %v710
        %v712 = vrot.slane %v686, %v711
        %v714 = vadd.f32 %v707, %v712
        %v715 = vpack.c.bf16 %v714, %v714
        %v716 = vld [vmem:[#allocation10] sm:$0xff]
        %v717 = vld [vmem:[#allocation10 + $0x8] sm:$0xf]
        %v718 = vld [vmem:[#allocation10 + $0xc] sm:$0xff]
        %v719 = vld [vmem:[#allocation10 + $0x14] sm:$0xf]
        %v720 = vld [vmem:[#allocation10 + $0x18] sm:$0xff]
        %v721 = vld [vmem:[#allocation10 + $0x20] sm:$0xf]
        %v722 = vld [vmem:[#allocation10 + $0x24] sm:$0xff]
        %v723 = vld [vmem:[#allocation10 + $0x2c] sm:$0xf]
        %v724 = vld [vmem:[%s6] sm:$0x7]
        %v726 = vlaneseq
        %v727 = vshrl.u32 %v726, 7
        %v728 = vsub.s32 0, %v727
        %v729 = vrot.slane %v724, %v728
        %v730 = vlaneseq
        %v731 = vshrl.u32 %v730, 7
        %v732 = vsub.s32 1, %v731
        %v733 = vrot.slane %v724, %v732
        %v734 = vlaneseq
        %v735 = vshrl.u32 %v734, 7
        %v736 = vsub.s32 2, %v735
        %v737 = vrot.slane %v724, %v736
        %v749 = vunpack.c.l.b16 %v716
        %v750 = vunpack.c.h.b16 %v716
        %v751 = vunpack.c.l.b16 %v717
        %v752 = vunpack.c.l.b16 %v718
        %v753 = vunpack.c.h.b16 %v718
        %v754 = vunpack.c.l.b16 %v719
        %v755 = vunpack.c.l.b16 %v720
        %v756 = vunpack.c.h.b16 %v720
        %v757 = vunpack.c.l.b16 %v721
        %v758 = vunpack.c.l.b16 %v722
        %v759 = vunpack.c.h.b16 %v722
        %v760 = vunpack.c.l.b16 %v723
        %v761 = vpack.c.b16 %v752, %v749
        %v762 = vpack.c.b16 %v753, %v750
        %v763 = vpack.c.b16 %v754, %v751
        %v764 = vpack.c.b16 %v758, %v755
        %v765 = vpack.c.b16 %v759, %v756
        %v766 = vpack.c.b16 %v760, %v757
        %v774 = vsel %vm687, %v715, 0
        %776 = vmatprep.subr.bf16.mxu0 0
        %777 = vmatpush1.bf16.msra.mxu0 0
        %778 = vmatprep.subr.bf16.mxu0 0
        %779 = vmatpush1.bf16.msra.mxu0 0
        %780 = vmatprep.subr.bf16.mxu0 0
        %781 = vmatpush1.bf16.msra.mxu0 0
        %782 = vmatprep.subr.bf16.mxu0 0
        %783 = vmatpush1.bf16.msra.mxu0 0
        %784 = vmatprep.subr.bf16.mxu0 0
        %785 = vmatpush1.bf16.msra.mxu0 0
        %786 = vmatprep.subr.bf16.mxu0 0
        %787 = vmatpush1.bf16.msra.mxu0 0
        %788 = vmatprep.subr.bf16.mxu0 %v765
        %789 = vmatpush1.bf16.msra.mxu0 %v764
        %790 = vmatprep.subr.bf16.mxu0 %v762
        %791 = vmatpush1.bf16.msra.mxu0 %v761
        %792 = vmatprep.subr.bf16.mxu0 0
        %793 = vmatpush2.bf16.msra.mxu0 0
        %794 = vmatprep.subr.bf16.mxu0 0
        %795 = vmatpush2.bf16.msra.mxu0 0
        %796 = vmatprep.subr.bf16.mxu0 0
        %797 = vmatpush2.bf16.msra.mxu0 0
        %798 = vmatprep.subr.bf16.mxu0 0
        %799 = vmatpush2.bf16.msra.mxu0 0
        %800 = vmatprep.subr.bf16.mxu0 0
        %801 = vmatpush2.bf16.msra.mxu0 0
        %802 = vmatprep.subr.bf16.mxu0 0
        %803 = vmatpush2.bf16.msra.mxu0 0
        %804 = vmatprep.subr.bf16.mxu0 0
        %805 = vmatpush2.bf16.msra.mxu0 0
        %806 = vmatprep.subr.bf16.mxu0 0
        %807 = vmatpush2.bf16.msra.mxu0 0
        %808 = vmatprep.mubr.bf16.mxu0 0
        %809 = vmatmul.mubr.bf16.gmra.mxu0 %v774
        %v810 = vpop.f32.mrf.mxu0
        %v811 = vadd.f32 %v729, %v810
        %v812 = vpop.f32.mrf.mxu0
        %v813 = vadd.f32 %v733, %v812
        %v814 = vpop.f32.mrf.mxu0
        %v815 = vpop.f32.mrf.mxu0
        %816 = vdwg.mxu0
        %817 = vmatprep.subr.bf16.mxu0 0
        %818 = vmatpush1.bf16.msra.mxu0 0
        %819 = vmatprep.subr.bf16.mxu0 0
        %820 = vmatpush1.bf16.msra.mxu0 0
        %821 = vmatprep.subr.bf16.mxu0 0
        %822 = vmatpush1.bf16.msra.mxu0 0
        %823 = vmatprep.subr.bf16.mxu0 0
        %824 = vmatpush1.bf16.msra.mxu0 0
        %825 = vmatprep.subr.bf16.mxu0 0
        %826 = vmatpush1.bf16.msra.mxu0 0
        %827 = vmatprep.subr.bf16.mxu0 0
        %828 = vmatpush1.bf16.msra.mxu0 0
        %829 = vmatprep.subr.bf16.mxu0 0
        %830 = vmatpush1.bf16.msra.mxu0 %v766
        %831 = vmatprep.subr.bf16.mxu0 0
        %832 = vmatpush1.bf16.msra.mxu0 %v763
        %833 = vmatprep.subr.bf16.mxu0 0
        %834 = vmatpush2.bf16.msra.mxu0 0
        %835 = vmatprep.subr.bf16.mxu0 0
        %836 = vmatpush2.bf16.msra.mxu0 0
        %837 = vmatprep.subr.bf16.mxu0 0
        %838 = vmatpush2.bf16.msra.mxu0 0
        %839 = vmatprep.subr.bf16.mxu0 0
        %840 = vmatpush2.bf16.msra.mxu0 0
        %841 = vmatprep.subr.bf16.mxu0 0
        %842 = vmatpush2.bf16.msra.mxu0 0
        %843 = vmatprep.subr.bf16.mxu0 0
        %844 = vmatpush2.bf16.msra.mxu0 0
        %845 = vmatprep.subr.bf16.mxu0 0
        %846 = vmatpush2.bf16.msra.mxu0 0
        %847 = vmatprep.subr.bf16.mxu0 0
        %848 = vmatpush2.bf16.msra.mxu0 0
        %849 = vmatprep.mubr.bf16.mxu0 0
        %850 = vmatmul.mubr.bf16.gmra.mxu0 %v774
        %v851 = vpop.f32.mrf.mxu0
        %v852 = vadd.f32 %v737, %v851
        %v853 = vpop.f32.mrf.mxu0
        %v854 = vpop.f32.mrf.mxu0
        %v855 = vpop.f32.mrf.mxu0
        %856 = vdwg.mxu0
        %v859 = vlaneseq
        %v860 = vshrl.u32 %v859, 7
        %v861 = vsub.s32 0, %v860
        %v862 = vrot.slane %v683, %v861
        %v863 = vlaneseq
        %v864 = vshrl.u32 %v863, 7
        %v865 = vsub.s32 0, %v864
        %v866 = vrot.slane %v684, %v865
        %v869 = vmul.f32 %v811, %v862
        %v870 = vmul.f32 %v811, %v866
        %v871 = vmul.f32 %v852, %v862
        %v872 = vmul.f32 %v852, %v866
        %v874 = vlaneseq
        %v875 = vshrl.u32 %v874, 7
        %v876 = vsub.s32 0, %v875
        %v877 = vrot.slane %v682, %v876
        %879 = vmatprep.subr.mxu0 0.0
        %880 = vmatpush1.xpose.msra.mxu0 0.0
        %881 = vmatprep.subr.mxu0 0.0
        %882 = vmatpush1.xpose.msra.mxu0 0.0
        %883 = vmatprep.subr.mxu0 0.0
        %884 = vmatpush1.xpose.msra.mxu0 0.0
        %885 = vmatprep.subr.mxu0 0.0
        %886 = vmatpush1.xpose.msra.mxu0 0.0
        %887 = vmatprep.subr.mxu0 0.0
        %888 = vmatpush1.xpose.msra.mxu0 0.0
        %889 = vmatprep.subr.mxu0 0.0
        %890 = vmatpush1.xpose.msra.mxu0 0.0
        %891 = vmatprep.subr.mxu0 0.0
        %892 = vmatpush1.xpose.msra.mxu0 0.0
        %893 = vmatprep.subr.mxu0 0.0
        %894 = vmatpush1.xpose.msra.mxu0 0.0
        %895 = vmatprep.subr.mxu0 0.0
        %896 = vmatpush1.xpose.msra.mxu0 0.0
        %897 = vmatprep.subr.mxu0 0.0
        %898 = vmatpush1.xpose.msra.mxu0 0.0
        %899 = vmatprep.subr.mxu0 0.0
        %900 = vmatpush1.xpose.msra.mxu0 0.0
        %901 = vmatprep.subr.mxu0 0.0
        %902 = vmatpush1.xpose.msra.mxu0 0.0
        %903 = vmatprep.subr.mxu0 0.0
        %904 = vmatpush1.xpose.msra.mxu0 0.0
        %905 = vmatprep.subr.mxu0 0.0
        %906 = vmatpush1.xpose.msra.mxu0 0.0
        %907 = vmatprep.subr.mxu0 0.0
        %908 = vmatpush1.xpose.msra.mxu0 0.0
        %909 = vmatprep.subr.mxu0 0.0
        %910 = vmatpush1.xpose.msra.mxu0 %v813
        %911 = vmatprep.subr.mxu0 0.0
        %912 = vmatpush2.xpose.msra.mxu0 0.0
        %913 = vmatprep.subr.mxu0 0.0
        %914 = vmatpush2.xpose.msra.mxu0 0.0
        %915 = vmatprep.subr.mxu0 0.0
        %916 = vmatpush2.xpose.msra.mxu0 0.0
        %917 = vmatprep.subr.mxu0 0.0
        %918 = vmatpush2.xpose.msra.mxu0 0.0
        %919 = vmatprep.subr.mxu0 0.0
        %920 = vmatpush2.xpose.msra.mxu0 0.0
        %921 = vmatprep.subr.mxu0 0.0
        %922 = vmatpush2.xpose.msra.mxu0 0.0
        %923 = vmatprep.subr.mxu0 0.0
        %924 = vmatpush2.xpose.msra.mxu0 0.0
        %925 = vmatprep.subr.mxu0 0.0
        %926 = vmatpush2.xpose.msra.mxu0 0.0
        %927 = vmatprep.subr.mxu0 0.0
        %928 = vmatpush2.xpose.msra.mxu0 0.0
        %929 = vmatprep.subr.mxu0 0.0
        %930 = vmatpush2.xpose.msra.mxu0 0.0
        %931 = vmatprep.subr.mxu0 0.0
        %932 = vmatpush2.xpose.msra.mxu0 0.0
        %933 = vmatprep.subr.mxu0 0.0
        %934 = vmatpush2.xpose.msra.mxu0 0.0
        %935 = vmatprep.subr.mxu0 0.0
        %936 = vmatpush2.xpose.msra.mxu0 0.0
        %937 = vmatprep.subr.mxu0 0.0
        %938 = vmatpush2.xpose.msra.mxu0 0.0
        %939 = vmatprep.subr.mxu0 0.0
        %940 = vmatpush2.xpose.msra.mxu0 0.0
        %941 = vmatprep.subr.mxu0 0.0
        %942 = vmatpush2.xpose.msra.mxu0 0.0
        %943 = vmatprep.mubr.f32.mxu0 0.0
        %944 = vmatmul.mubr.f32.gmra.mxu0 %v869
        %v945 = vpop.f32.mrf.mxu0
        %v946 = vadd.f32 %v877, %v945
        %v947 = vpop.f32.mrf.mxu0
        %948 = vdwg.mxu0
        %949 = vmatprep.subr.mxu0 0.0
        %950 = vmatpush1.xpose.msra.mxu0 0.0
        %951 = vmatprep.subr.mxu0 0.0
        %952 = vmatpush1.xpose.msra.mxu0 0.0
        %953 = vmatprep.subr.mxu0 0.0
        %954 = vmatpush1.xpose.msra.mxu0 0.0
        %955 = vmatprep.subr.mxu0 0.0
        %956 = vmatpush1.xpose.msra.mxu0 0.0
        %957 = vmatprep.subr.mxu0 0.0
        %958 = vmatpush1.xpose.msra.mxu0 0.0
        %959 = vmatprep.subr.mxu0 0.0
        %960 = vmatpush1.xpose.msra.mxu0 0.0
        %961 = vmatprep.subr.mxu0 0.0
        %962 = vmatpush1.xpose.msra.mxu0 0.0
        %963 = vmatprep.subr.mxu0 0.0
        %964 = vmatpush1.xpose.msra.mxu0 0.0
        %965 = vmatprep.subr.mxu0 0.0
        %966 = vmatpush1.xpose.msra.mxu0 0.0
        %967 = vmatprep.subr.mxu0 0.0
        %968 = vmatpush1.xpose.msra.mxu0 0.0
        %969 = vmatprep.subr.mxu0 0.0
        %970 = vmatpush1.xpose.msra.mxu0 0.0
        %971 = vmatprep.subr.mxu0 0.0
        %972 = vmatpush1.xpose.msra.mxu0 0.0
        %973 = vmatprep.subr.mxu0 0.0
        %974 = vmatpush1.xpose.msra.mxu0 0.0
        %975 = vmatprep.subr.mxu0 0.0
        %976 = vmatpush1.xpose.msra.mxu0 0.0
        %977 = vmatprep.subr.mxu0 0.0
        %978 = vmatpush1.xpose.msra.mxu0 0.0
        %979 = vmatprep.subr.mxu0 0.0
        %980 = vmatpush1.xpose.msra.mxu0 %v813
        %981 = vmatprep.subr.mxu0 0.0
        %982 = vmatpush2.xpose.msra.mxu0 0.0
        %983 = vmatprep.subr.mxu0 0.0
        %984 = vmatpush2.xpose.msra.mxu0 0.0
        %985 = vmatprep.subr.mxu0 0.0
        %986 = vmatpush2.xpose.msra.mxu0 0.0
        %987 = vmatprep.subr.mxu0 0.0
        %988 = vmatpush2.xpose.msra.mxu0 0.0
        %989 = vmatprep.subr.mxu0 0.0
        %990 = vmatpush2.xpose.msra.mxu0 0.0
        %991 = vmatprep.subr.mxu0 0.0
        %992 = vmatpush2.xpose.msra.mxu0 0.0
        %993 = vmatprep.subr.mxu0 0.0
        %994 = vmatpush2.xpose.msra.mxu0 0.0
        %995 = vmatprep.subr.mxu0 0.0
        %996 = vmatpush2.xpose.msra.mxu0 0.0
        %997 = vmatprep.subr.mxu0 0.0
        %998 = vmatpush2.xpose.msra.mxu0 0.0
        %999 = vmatprep.subr.mxu0 0.0
        %1000 = vmatpush2.xpose.msra.mxu0 0.0
        %1001 = vmatprep.subr.mxu0 0.0
        %1002 = vmatpush2.xpose.msra.mxu0 0.0
        %1003 = vmatprep.subr.mxu0 0.0
        %1004 = vmatpush2.xpose.msra.mxu0 0.0
        %1005 = vmatprep.subr.mxu0 0.0
        %1006 = vmatpush2.xpose.msra.mxu0 0.0
        %1007 = vmatprep.subr.mxu0 0.0
        %1008 = vmatpush2.xpose.msra.mxu0 0.0
        %1009 = vmatprep.subr.mxu0 0.0
        %1010 = vmatpush2.xpose.msra.mxu0 0.0
        %1011 = vmatprep.subr.mxu0 0.0
        %1012 = vmatpush2.xpose.msra.mxu0 0.0
        %1013 = vmatprep.mubr.f32.mxu0 0.0
        %1014 = vmatmul.mubr.f32.gmra.mxu0 %v870
        %v1015 = vpop.f32.mrf.mxu0
        %v1016 = vadd.f32 %v877, %v1015
        %v1017 = vpop.f32.mrf.mxu0
        %1018 = vdwg.mxu0
        %vm1019 = vcmask 64512
        %v1020 = vsel %vm1019, %v946, -inf
        %1021 = vmax.xlane.f32.xlu0 %v1020
        %v1022 = vpop.xlane.xlu0 %1021
        %v1023 = vsel %vm1019, %v1016, -inf
        %1024 = vmax.xlane.f32.xlu0 %v1023
        %v1025 = vpop.xlane.xlu0 %1024
        %v1026 = vsub.f32 %v946, %v1022
        %v1027 = vsub.f32 %v1016, %v1025
        %v1028 = vmul.f32 %v1026, 1.442695
        %v1029 = vpow.pop %v1028
        %v1030 = vmul.f32 %v1027, 1.442695
        %v1031 = vpow.pop %v1030
        %v1032 = vsel %vm1019, %v1029, 0.0
        %1033 = vadd.xlane.f32.xlu0 %v1032
        %v1034 = vpop.xlane.xlu0 %1033
        %v1035 = vsel %vm1019, %v1031, 0.0
        %1036 = vadd.xlane.f32.xlu0 %v1035
        %v1037 = vpop.xlane.xlu0 %1036
        %v1038 = vrcp.pop %v1034
        %v1039 = vrcp.pop %v1037
        %v1040 = vmul.f32 %v1029, %v1038
        %v1041 = vmul.f32 %v1031, %v1039
        %v1043 = vsel %vm1019, %v1040, 0
        %1045 = vmatprep.subr.mxu0 0.0
        %1046 = vmatpush1.msra.mxu0 0.0
        %1047 = vmatprep.subr.mxu0 0.0
        %1048 = vmatpush1.msra.mxu0 0.0
        %1049 = vmatprep.subr.mxu0 0.0
        %1050 = vmatpush1.msra.mxu0 0.0
        %1051 = vmatprep.subr.mxu0 0.0
        %1052 = vmatpush1.msra.mxu0 0.0
        %1053 = vmatprep.subr.mxu0 0.0
        %1054 = vmatpush1.msra.mxu0 0.0
        %1055 = vmatprep.subr.mxu0 0.0
        %1056 = vmatpush1.msra.mxu0 0.0
        %1057 = vmatprep.subr.mxu0 0.0
        %1058 = vmatpush1.msra.mxu0 0.0
        %1059 = vmatprep.subr.mxu0 0.0
        %1060 = vmatpush1.msra.mxu0 0.0
        %1061 = vmatprep.subr.mxu0 0.0
        %1062 = vmatpush1.msra.mxu0 0.0
        %1063 = vmatprep.subr.mxu0 0.0
        %1064 = vmatpush1.msra.mxu0 0.0
        %1065 = vmatprep.subr.mxu0 0.0
        %1066 = vmatpush1.msra.mxu0 0.0
        %1067 = vmatprep.subr.mxu0 0.0
        %1068 = vmatpush1.msra.mxu0 0.0
        %1069 = vmatprep.subr.mxu0 0.0
        %1070 = vmatpush1.msra.mxu0 0.0
        %1071 = vmatprep.subr.mxu0 0.0
        %1072 = vmatpush1.msra.mxu0 0.0
        %1073 = vmatprep.subr.mxu0 0.0
        %1074 = vmatpush1.msra.mxu0 0.0
        %1075 = vmatprep.subr.mxu0 0.0
        %1076 = vmatpush1.msra.mxu0 %v871
        %1077 = vmatprep.subr.mxu0 0.0
        %1078 = vmatpush2.msra.mxu0 0.0
        %1079 = vmatprep.subr.mxu0 0.0
        %1080 = vmatpush2.msra.mxu0 0.0
        %1081 = vmatprep.subr.mxu0 0.0
        %1082 = vmatpush2.msra.mxu0 0.0
        %1083 = vmatprep.subr.mxu0 0.0
        %1084 = vmatpush2.msra.mxu0 0.0
        %1085 = vmatprep.subr.mxu0 0.0
        %1086 = vmatpush2.msra.mxu0 0.0
        %1087 = vmatprep.subr.mxu0 0.0
        %1088 = vmatpush2.msra.mxu0 0.0
        %1089 = vmatprep.subr.mxu0 0.0
        %1090 = vmatpush2.msra.mxu0 0.0
        %1091 = vmatprep.subr.mxu0 0.0
        %1092 = vmatpush2.msra.mxu0 0.0
        %1093 = vmatprep.subr.mxu0 0.0
        %1094 = vmatpush2.msra.mxu0 0.0
        %1095 = vmatprep.subr.mxu0 0.0
        %1096 = vmatpush2.msra.mxu0 0.0
        %1097 = vmatprep.subr.mxu0 0.0
        %1098 = vmatpush2.msra.mxu0 0.0
        %1099 = vmatprep.subr.mxu0 0.0
        %1100 = vmatpush2.msra.mxu0 0.0
        %1101 = vmatprep.subr.mxu0 0.0
        %1102 = vmatpush2.msra.mxu0 0.0
        %1103 = vmatprep.subr.mxu0 0.0
        %1104 = vmatpush2.msra.mxu0 0.0
        %1105 = vmatprep.subr.mxu0 0.0
        %1106 = vmatpush2.msra.mxu0 0.0
        %1107 = vmatprep.subr.mxu0 0.0
        %1108 = vmatpush2.msra.mxu0 0.0
        %1109 = vmatprep.mubr.f32.mxu0 0.0
        %1110 = vmatmul.mubr.f32.gmra.mxu0 %v1043
        %v1111 = vpop.f32.mrf.mxu0
        %v1112 = vadd.f32 0.0, %v1111
        %v1113 = vpop.f32.mrf.mxu0
        %1114 = vdwg.mxu0
        %v1116 = vsel %vm1019, %v1041, 0
        %1118 = vmatprep.subr.mxu0 0.0
        %1119 = vmatpush1.msra.mxu0 0.0
        %1120 = vmatprep.subr.mxu0 0.0
        %1121 = vmatpush1.msra.mxu0 0.0
        %1122 = vmatprep.subr.mxu0 0.0
        %1123 = vmatpush1.msra.mxu0 0.0
        %1124 = vmatprep.subr.mxu0 0.0
        %1125 = vmatpush1.msra.mxu0 0.0
        %1126 = vmatprep.subr.mxu0 0.0
        %1127 = vmatpush1.msra.mxu0 0.0
        %1128 = vmatprep.subr.mxu0 0.0
        %1129 = vmatpush1.msra.mxu0 0.0
        %1130 = vmatprep.subr.mxu0 0.0
        %1131 = vmatpush1.msra.mxu0 0.0
        %1132 = vmatprep.subr.mxu0 0.0
        %1133 = vmatpush1.msra.mxu0 0.0
        %1134 = vmatprep.subr.mxu0 0.0
        %1135 = vmatpush1.msra.mxu0 0.0
        %1136 = vmatprep.subr.mxu0 0.0
        %1137 = vmatpush1.msra.mxu0 0.0
        %1138 = vmatprep.subr.mxu0 0.0
        %1139 = vmatpush1.msra.mxu0 0.0
        %1140 = vmatprep.subr.mxu0 0.0
        %1141 = vmatpush1.msra.mxu0 0.0
        %1142 = vmatprep.subr.mxu0 0.0
        %1143 = vmatpush1.msra.mxu0 0.0
        %1144 = vmatprep.subr.mxu0 0.0
        %1145 = vmatpush1.msra.mxu0 0.0
        %1146 = vmatprep.subr.mxu0 0.0
        %1147 = vmatpush1.msra.mxu0 0.0
        %1148 = vmatprep.subr.mxu0 0.0
        %1149 = vmatpush1.msra.mxu0 %v872
        %1150 = vmatprep.subr.mxu0 0.0
        %1151 = vmatpush2.msra.mxu0 0.0
        %1152 = vmatprep.subr.mxu0 0.0
        %1153 = vmatpush2.msra.mxu0 0.0
        %1154 = vmatprep.subr.mxu0 0.0
        %1155 = vmatpush2.msra.mxu0 0.0
        %1156 = vmatprep.subr.mxu0 0.0
        %1157 = vmatpush2.msra.mxu0 0.0
        %1158 = vmatprep.subr.mxu0 0.0
        %1159 = vmatpush2.msra.mxu0 0.0
        %1160 = vmatprep.subr.mxu0 0.0
        %1161 = vmatpush2.msra.mxu0 0.0
        %1162 = vmatprep.subr.mxu0 0.0
        %1163 = vmatpush2.msra.mxu0 0.0
        %1164 = vmatprep.subr.mxu0 0.0
        %1165 = vmatpush2.msra.mxu0 0.0
        %1166 = vmatprep.subr.mxu0 0.0
        %1167 = vmatpush2.msra.mxu0 0.0
        %1168 = vmatprep.subr.mxu0 0.0
        %1169 = vmatpush2.msra.mxu0 0.0
        %1170 = vmatprep.subr.mxu0 0.0
        %1171 = vmatpush2.msra.mxu0 0.0
        %1172 = vmatprep.subr.mxu0 0.0
        %1173 = vmatpush2.msra.mxu0 0.0
        %1174 = vmatprep.subr.mxu0 0.0
        %1175 = vmatpush2.msra.mxu0 0.0
        %1176 = vmatprep.subr.mxu0 0.0
        %1177 = vmatpush2.msra.mxu0 0.0
        %1178 = vmatprep.subr.mxu0 0.0
        %1179 = vmatpush2.msra.mxu0 0.0
        %1180 = vmatprep.subr.mxu0 0.0
        %1181 = vmatpush2.msra.mxu0 0.0
        %1182 = vmatprep.mubr.f32.mxu0 0.0
        %1183 = vmatmul.mubr.f32.gmra.mxu0 %v1116
        %v1184 = vpop.f32.mrf.mxu0
        %v1185 = vadd.f32 0.0, %v1184
        %v1186 = vpop.f32.mrf.mxu0
        %1187 = vdwg.mxu0
        %v1188 = vadd.f32 %v1112, %v1185
        %v1189 = vpack.c.bf16 %v1188, %v1188
        %v1190 = vld [vmem:[#allocation11] sm:$0xf]
        %v1191 = vld [vmem:[#allocation11 + $0x4] sm:$0xf]
        %v1192 = vld [vmem:[#allocation11 + $0x8] sm:$0xf]
        %v1193 = vld [vmem:[#allocation11 + $0xc] sm:$0xf]
        %v1194 = vld [vmem:[%s8] sm:$0x1]
        %v1196 = vlaneseq
        %v1197 = vshrl.u32 %v1196, 7
        %v1198 = vsub.s32 0, %v1197
        %v1199 = vrot.slane %v1194, %v1198
        %v1205 = vunpack.c.l.b16 %v1190
        %v1206 = vunpack.c.l.b16 %v1191
        %v1207 = vunpack.c.l.b16 %v1192
        %v1208 = vunpack.c.l.b16 %v1193
        %v1209 = vpack.c.b16 %v1206, %v1205
        %v1210 = vpack.c.b16 %v1208, %v1207
        %v1214 = vsel %vm687, %v1189, 0
        %1216 = vmatprep.subr.bf16.mxu0 0
        %1217 = vmatpush1.bf16.msra.mxu0 0
        %1218 = vmatprep.subr.bf16.mxu0 0
        %1219 = vmatpush1.bf16.msra.mxu0 0
        %1220 = vmatprep.subr.bf16.mxu0 0
        %1221 = vmatpush1.bf16.msra.mxu0 0
        %1222 = vmatprep.subr.bf16.mxu0 0
        %1223 = vmatpush1.bf16.msra.mxu0 0
        %1224 = vmatprep.subr.bf16.mxu0 0
        %1225 = vmatpush1.bf16.msra.mxu0 0
        %1226 = vmatprep.subr.bf16.mxu0 0
        %1227 = vmatpush1.bf16.msra.mxu0 0
        %1228 = vmatprep.subr.bf16.mxu0 0
        %1229 = vmatpush1.bf16.msra.mxu0 %v1210
        %1230 = vmatprep.subr.bf16.mxu0 0
        %1231 = vmatpush1.bf16.msra.mxu0 %v1209
        %1232 = vmatprep.subr.bf16.mxu0 0
        %1233 = vmatpush2.bf16.msra.mxu0 0
        %1234 = vmatprep.subr.bf16.mxu0 0
        %1235 = vmatpush2.bf16.msra.mxu0 0
        %1236 = vmatprep.subr.bf16.mxu0 0
        %1237 = vmatpush2.bf16.msra.mxu0 0
        %1238 = vmatprep.subr.bf16.mxu0 0
        %1239 = vmatpush2.bf16.msra.mxu0 0
        %1240 = vmatprep.subr.bf16.mxu0 0
        %1241 = vmatpush2.bf16.msra.mxu0 0
        %1242 = vmatprep.subr.bf16.mxu0 0
        %1243 = vmatpush2.bf16.msra.mxu0 0
        %1244 = vmatprep.subr.bf16.mxu0 0
        %1245 = vmatpush2.bf16.msra.mxu0 0
        %1246 = vmatprep.subr.bf16.mxu0 0
        %1247 = vmatpush2.bf16.msra.mxu0 0
        %1248 = vmatprep.mubr.bf16.mxu0 0
        %1249 = vmatmul.mubr.bf16.gmra.mxu0 %v1214
        %v1250 = vpop.f32.mrf.mxu0
        %v1251 = vadd.f32 %v1199, %v1250
        %v1252 = vpop.f32.mrf.mxu0
        %v1253 = vpop.f32.mrf.mxu0
        %v1254 = vpop.f32.mrf.mxu0
        %1255 = vdwg.mxu0
        %v1256 = vadd.f32 %v714, %v1251
        %v1257 = vld [vmem:[%s9] sm:$0x1]
        %v1258 = vld [vmem:[%s10] sm:$0x1]
        %v1259 = vsel %vm687, %v1256, 0.0
        %1260 = vadd.xlane.f32.xlu0 %v1259
        %v1261 = vpop.xlane.xlu0 %1260
        %v1262 = vmul.f32 %v1261, 0.03125
        %v1263 = vsub.f32 %v1256, %v1262
        %v1264 = vmul.f32 %v1263, %v1263
        %v1265 = vsel %vm687, %v1264, 0.0
        %1266 = vadd.xlane.f32.xlu0 %v1265
        %v1267 = vpop.xlane.xlu0 %1266
        %v1268 = vmul.f32 %v1267, 0.03125
        %v1269 = vadd.f32 %v1268, 1e-05
        %v1270 = vrsqrt.pop %v1269
        %v1271 = vmul.f32 %v1263, %v1270
        %v1273 = vlaneseq
        %v1274 = vshrl.u32 %v1273, 7
        %v1275 = vsub.s32 0, %v1274
        %v1276 = vrot.slane %v1257, %v1275
        %v1278 = vmul.f32 %v1271, %v1276
        %v1280 = vlaneseq
        %v1281 = vshrl.u32 %v1280, 7
        %v1282 = vsub.s32 0, %v1281
        %v1283 = vrot.slane %v1258, %v1282
        %v1285 = vadd.f32 %v1278, %v1283
        %v1286 = vpack.c.bf16 %v1285, %v1285
        %v1287 = vld [vmem:[#allocation13] sm:$0xf]
        %v1288 = vld [vmem:[#allocation13 + $0x4] sm:$0xf]
        %v1289 = vld [vmem:[#allocation13 + $0x8] sm:$0xf]
        %v1290 = vld [vmem:[#allocation13 + $0xc] sm:$0xf]
        %v1291 = vld [vmem:[%s12] sm:$0x1]
        %v1293 = vlaneseq
        %v1294 = vshrl.u32 %v1293, 7
        %v1295 = vsub.s32 0, %v1294
        %v1296 = vrot.slane %v1291, %v1295
        %v1302 = vunpack.c.l.b16 %v1287
        %v1303 = vunpack.c.l.b16 %v1288
        %v1304 = vunpack.c.l.b16 %v1289
        %v1305 = vunpack.c.l.b16 %v1290
        %v1306 = vpack.c.b16 %v1303, %v1302
        %v1307 = vpack.c.b16 %v1305, %v1304
        %v1311 = vsel %vm687, %v1286, 0
        %1313 = vmatprep.subr.bf16.mxu0 0
        %1314 = vmatpush1.bf16.msra.mxu0 0
        %1315 = vmatprep.subr.bf16.mxu0 0
        %1316 = vmatpush1.bf16.msra.mxu0 0
        %1317 = vmatprep.subr.bf16.mxu0 0
        %1318 = vmatpush1.bf16.msra.mxu0 0
        %1319 = vmatprep.subr.bf16.mxu0 0
        %1320 = vmatpush1.bf16.msra.mxu0 0
        %1321 = vmatprep.subr.bf16.mxu0 0
        %1322 = vmatpush1.bf16.msra.mxu0 0
        %1323 = vmatprep.subr.bf16.mxu0 0
        %1324 = vmatpush1.bf16.msra.mxu0 0
        %1325 = vmatprep.subr.bf16.mxu0 0
        %1326 = vmatpush1.bf16.msra.mxu0 %v1307
        %1327 = vmatprep.subr.bf16.mxu0 0
        %1328 = vmatpush1.bf16.msra.mxu0 %v1306
        %1329 = vmatprep.subr.bf16.mxu0 0
        %1330 = vmatpush2.bf16.msra.mxu0 0
        %1331 = vmatprep.subr.bf16.mxu0 0
        %1332 = vmatpush2.bf16.msra.mxu0 0
        %1333 = vmatprep.subr.bf16.mxu0 0
        %1334 = vmatpush2.bf16.msra.mxu0 0
        %1335 = vmatprep.subr.bf16.mxu0 0
        %1336 = vmatpush2.bf16.msra.mxu0 0
        %1337 = vmatprep.subr.bf16.mxu0 0
        %1338 = vmatpush2.bf16.msra.mxu0 0
        %1339 = vmatprep.subr.bf16.mxu0 0
        %1340 = vmatpush2.bf16.msra.mxu0 0
        %1341 = vmatprep.subr.bf16.mxu0 0
        %1342 = vmatpush2.bf16.msra.mxu0 0
        %1343 = vmatprep.subr.bf16.mxu0 0
        %1344 = vmatpush2.bf16.msra.mxu0 0
        %1345 = vmatprep.mubr.bf16.mxu0 0
        %1346 = vmatmul.mubr.bf16.gmra.mxu0 %v1311
        %v1347 = vpop.f32.mrf.mxu0
        %v1348 = vadd.f32 %v1296, %v1347
        %v1349 = vpop.f32.mrf.mxu0
        %v1350 = vpop.f32.mrf.mxu0
        %v1351 = vpop.f32.mrf.mxu0
        %1352 = vdwg.mxu0
        %v1353 = vmul.f32 %v1348, %v1348
        %v1354 = vmul.f32 %v1348, %v1353
        %v1355 = vmul.f32 %v1354, 0.044715
        %v1356 = vadd.f32 %v1348, %v1355
        %v1357 = vmul.f32 %v1356, 0.7978846
        %v1358 = vtanh.pop %v1357
        %v1359 = vadd.f32 %v1358, 1.0
        %v1360 = vmul.f32 %v1359, 0.5
        %v1361 = vmul.f32 %v1348, %v1360
        %v1362 = vpack.c.bf16 %v1361, %v1361
        %v1363 = vld [vmem:[#allocation14] sm:$0xf]
        %v1364 = vld [vmem:[#allocation14 + $0x4] sm:$0xf]
        %v1365 = vld [vmem:[#allocation14 + $0x8] sm:$0xf]
        %v1366 = vld [vmem:[#allocation14 + $0xc] sm:$0xf]
        %v1367 = vld [vmem:[#allocation14 + $0x10] sm:$0xf]
        %v1368 = vld [vmem:[#allocation14 + $0x14] sm:$0xf]
        %v1369 = vld [vmem:[#allocation14 + $0x18] sm:$0xf]
        %v1370 = vld [vmem:[#allocation14 + $0x1c] sm:$0xf]
        %v1371 = vld [vmem:[%s14] sm:$0x1]
        %v1373 = vlaneseq
        %v1374 = vshrl.u32 %v1373, 7
        %v1375 = vsub.s32 0, %v1374
        %v1376 = vrot.slane %v1371, %v1375
        %v1386 = vunpack.c.l.b16 %v1363
        %v1387 = vunpack.c.l.b16 %v1364
        %v1388 = vunpack.c.l.b16 %v1365
        %v1389 = vunpack.c.l.b16 %v1366
        %v1390 = vunpack.c.l.b16 %v1367
        %v1391 = vunpack.c.l.b16 %v1368
        %v1392 = vunpack.c.l.b16 %v1369
        %v1393 = vunpack.c.l.b16 %v1370
        %v1394 = vpack.c.b16 %v1387, %v1386
        %v1395 = vpack.c.b16 %v1389, %v1388
        %v1396 = vpack.c.b16 %v1391, %v1390
        %v1397 = vpack.c.b16 %v1393, %v1392
        %vm1402 = vcmask 523264
        %v1404 = vsel %vm1402, %v1362, 0
        %1406 = vmatprep.subr.bf16.mxu0 0
        %1407 = vmatpush1.bf16.msra.mxu0 0
        %1408 = vmatprep.subr.bf16.mxu0 0
        %1409 = vmatpush1.bf16.msra.mxu0 0
        %1410 = vmatprep.subr.bf16.mxu0 0
        %1411 = vmatpush1.bf16.msra.mxu0 0
        %1412 = vmatprep.subr.bf16.mxu0 0
        %1413 = vmatpush1.bf16.msra.mxu0 0
        %1414 = vmatprep.subr.bf16.mxu0 0
        %1415 = vmatpush1.bf16.msra.mxu0 %v1397
        %1416 = vmatprep.subr.bf16.mxu0 0
        %1417 = vmatpush1.bf16.msra.mxu0 %v1396
        %1418 = vmatprep.subr.bf16.mxu0 0
        %1419 = vmatpush1.bf16.msra.mxu0 %v1395
        %1420 = vmatprep.subr.bf16.mxu0 0
        %1421 = vmatpush1.bf16.msra.mxu0 %v1394
        %1422 = vmatprep.subr.bf16.mxu0 0
        %1423 = vmatpush2.bf16.msra.mxu0 0
        %1424 = vmatprep.subr.bf16.mxu0 0
        %1425 = vmatpush2.bf16.msra.mxu0 0
        %1426 = vmatprep.subr.bf16.mxu0 0
        %1427 = vmatpush2.bf16.msra.mxu0 0
        %1428 = vmatprep.subr.bf16.mxu0 0
        %1429 = vmatpush2.bf16.msra.mxu0 0
        %1430 = vmatprep.subr.bf16.mxu0 0
        %1431 = vmatpush2.bf16.msra.mxu0 0
        %1432 = vmatprep.subr.bf16.mxu0 0
        %1433 = vmatpush2.bf16.msra.mxu0 0
        %1434 = vmatprep.subr.bf16.mxu0 0
        %1435 = vmatpush2.bf16.msra.mxu0 0
        %1436 = vmatprep.subr.bf16.mxu0 0
        %1437 = vmatpush2.bf16.msra.mxu0 0
        %1438 = vmatprep.mubr.bf16.mxu0 0
        %1439 = vmatmul.mubr.bf16.gmra.mxu0 %v1404
        %v1440 = vpop.f32.mrf.mxu0
        %v1441 = vadd.f32 %v1376, %v1440
        %v1442 = vpop.f32.mrf.mxu0
        %v1443 = vpop.f32.mrf.mxu0
        %v1444 = vpop.f32.mrf.mxu0
        %1445 = vdwg.mxu0
        %v1446 = vadd.f32 %v1285, %v1441
        %v1447 = vld [vmem:[%s15] sm:$0x1]
        %v1448 = vld [vmem:[%s16] sm:$0x1]
        %v1449 = vsel %vm687, %v1446, 0.0
        %1450 = vadd.xlane.f32.xlu0 %v1449
        %v1451 = vpop.xlane.xlu0 %1450
        %v1452 = vmul.f32 %v1451, 0.03125
        %v1453 = vsub.f32 %v1446, %v1452
        %v1454 = vmul.f32 %v1453, %v1453
        %v1455 = vsel %vm687, %v1454, 0.0
        %1456 = vadd.xlane.f32.xlu0 %v1455
        %v1457 = vpop.xlane.xlu0 %1456
        %v1458 = vmul.f32 %v1457, 0.03125
        %v1459 = vadd.f32 %v1458, 1e-05
        %v1460 = vrsqrt.pop %v1459
        %v1461 = vmul.f32 %v1453, %v1460
        %v1463 = vlaneseq
        %v1464 = vshrl.u32 %v1463, 7
        %v1465 = vsub.s32 0, %v1464
        %v1466 = vrot.slane %v1447, %v1465
        %v1468 = vmul.f32 %v1461, %v1466
        %v1470 = vlaneseq
        %v1471 = vshrl.u32 %v1470, 7
        %v1472 = vsub.s32 0, %v1471
        %v1473 = vrot.slane %v1448, %v1472
        %v1475 = vadd.f32 %v1468, %v1473
        %v1476 = vpack.c.bf16 %v1475, %v1475
        %s1477 = scalar_lea.vmem [#allocation10], 48
        %v1478 = vld [vmem:[%s1477] sm:$0xff]
        %v1479 = vld [vmem:[%s1477 + $0x8] sm:$0xf]
        %v1480 = vld [vmem:[%s1477 + $0xc] sm:$0xff]
        %v1481 = vld [vmem:[%s1477 + $0x14] sm:$0xf]
        %v1482 = vld [vmem:[%s1477 + $0x18] sm:$0xff]
        %v1483 = vld [vmem:[%s1477 + $0x20] sm:$0xf]
        %v1484 = vld [vmem:[%s1477 + $0x24] sm:$0xff]
        %v1485 = vld [vmem:[%s1477 + $0x2c] sm:$0xf]
        %s1486 = scalar_lea.vmem %s6, 3
        %v1487 = vld [vmem:[%s1486] sm:$0x7]
        %v1489 = vlaneseq
        %v1490 = vshrl.u32 %v1489, 7
        %v1491 = vsub.s32 0, %v1490
        %v1492 = vrot.slane %v1487, %v1491
        %v1493 = vlaneseq
        %v1494 = vshrl.u32 %v1493, 7
        %v1495 = vsub.s32 1, %v1494
        %v1496 = vrot.slane %v1487, %v1495
        %v1497 = vlaneseq
        %v1498 = vshrl.u32 %v1497, 7
        %v1499 = vsub.s32 2, %v1498
        %v1500 = vrot.slane %v1487, %v1499
        %v1512 = vunpack.c.l.b16 %v1478
        %v1513 = vunpack.c.h.b16 %v1478
        %v1514 = vunpack.c.l.b16 %v1479
        %v1515 = vunpack.c.l.b16 %v1480
        %v1516 = vunpack.c.h.b16 %v1480
        %v1517 = vunpack.c.l.b16 %v1481
        %v1518 = vunpack.c.l.b16 %v1482
        %v1519 = vunpack.c.h.b16 %v1482
        %v1520 = vunpack.c.l.b16 %v1483
        %v1521 = vunpack.c.l.b16 %v1484
        %v1522 = vunpack.c.h.b16 %v1484
        %v1523 = vunpack.c.l.b16 %v1485
        %v1524 = vpack.c.b16 %v1515, %v1512
        %v1525 = vpack.c.b16 %v1516, %v1513
        %v1526 = vpack.c.b16 %v1517, %v1514
        %v1527 = vpack.c.b16 %v1521, %v1518
        %v1528 = vpack.c.b16 %v1522, %v1519
        %v1529 = vpack.c.b16 %v1523, %v1520
        %v1537 = vsel %vm687, %v1476, 0
        %1539 = vmatprep.subr.bf16.mxu0 0
        %1540 = vmatpush1.bf16.msra.mxu0 0
        %1541 = vmatprep.subr.bf16.mxu0 0
        %1542 = vmatpush1.bf16.msra.mxu0 0
        %1543 = vmatprep.subr.bf16.mxu0 0
        %1544 = vmatpush1.bf16.msra.mxu0 0
        %1545 = vmatprep.subr.bf16.mxu0 0
        %1546 = vmatpush1.bf16.msra.mxu0 0
        %1547 = vmatprep.subr.bf16.mxu0 0
        %1548 = vmatpush1.bf16.msra.mxu0 0
        %1549 = vmatprep.subr.bf16.mxu0 0
        %1550 = vmatpush1.bf16.msra.mxu0 0
        %1551 = vmatprep.subr.bf16.mxu0 %v1528
        %1552 = vmatpush1.bf16.msra.mxu0 %v1527
        %1553 = vmatprep.subr.bf16.mxu0 %v1525
        %1554 = vmatpush1.bf16.msra.mxu0 %v1524
        %1555 = vmatprep.subr.bf16.mxu0 0
        %1556 = vmatpush2.bf16.msra.mxu0 0
        %1557 = vmatprep.subr.bf16.mxu0 0
        %1558 = vmatpush2.bf16.msra.mxu0 0
        %1559 = vmatprep.subr.bf16.mxu0 0
        %1560 = vmatpush2.bf16.msra.mxu0 0
        %1561 = vmatprep.subr.bf16.mxu0 0
        %1562 = vmatpush2.bf16.msra.mxu0 0
        %1563 = vmatprep.subr.bf16.mxu0 0
        %1564 = vmatpush2.bf16.msra.mxu0 0
        %1565 = vmatprep.subr.bf16.mxu0 0
        %1566 = vmatpush2.bf16.msra.mxu0 0
        %1567 = vmatprep.subr.bf16.mxu0 0
        %1568 = vmatpush2.bf16.msra.mxu0 0
        %1569 = vmatprep.subr.bf16.mxu0 0
        %1570 = vmatpush2.bf16.msra.mxu0 0
        %1571 = vmatprep.mubr.bf16.mxu0 0
        %1572 = vmatmul.mubr.bf16.gmra.mxu0 %v1537
        %v1573 = vpop.f32.mrf.mxu0
        %v1574 = vadd.f32 %v1492, %v1573
        %v1575 = vpop.f32.mrf.mxu0
        %v1576 = vadd.f32 %v1496, %v1575
        %v1577 = vpop.f32.mrf.mxu0
        %v1578 = vpop.f32.mrf.mxu0
        %1579 = vdwg.mxu0
        %1580 = vmatprep.subr.bf16.mxu0 0
        %1581 = vmatpush1.bf16.msra.mxu0 0
        %1582 = vmatprep.subr.bf16.mxu0 0
        %1583 = vmatpush1.bf16.msra.mxu0 0
        %1584 = vmatprep.subr.bf16.mxu0 0
        %1585 = vmatpush1.bf16.msra.mxu0 0
        %1586 = vmatprep.subr.bf16.mxu0 0
        %1587 = vmatpush1.bf16.msra.mxu0 0
        %1588 = vmatprep.subr.bf16.mxu0 0
        %1589 = vmatpush1.bf16.msra.mxu0 0
        %1590 = vmatprep.subr.bf16.mxu0 0
        %1591 = vmatpush1.bf16.msra.mxu0 0
        %1592 = vmatprep.subr.bf16.mxu0 0
        %1593 = vmatpush1.bf16.msra.mxu0 %v1529
        %1594 = vmatprep.subr.bf16.mxu0 0
        %1595 = vmatpush1.bf16.msra.mxu0 %v1526
        %1596 = vmatprep.subr.bf16.mxu0 0
        %1597 = vmatpush2.bf16.msra.mxu0 0
        %1598 = vmatprep.subr.bf16.mxu0 0
        %1599 = vmatpush2.bf16.msra.mxu0 0
        %1600 = vmatprep.subr.bf16.mxu0 0
        %1601 = vmatpush2.bf16.msra.mxu0 0
        %1602 = vmatprep.subr.bf16.mxu0 0
        %1603 = vmatpush2.bf16.msra.mxu0 0
        %1604 = vmatprep.subr.bf16.mxu0 0
        %1605 = vmatpush2.bf16.msra.mxu0 0
        %1606 = vmatprep.subr.bf16.mxu0 0
        %1607 = vmatpush2.bf16.msra.mxu0 0
        %1608 = vmatprep.subr.bf16.mxu0 0
        %1609 = vmatpush2.bf16.msra.mxu0 0
        %1610 = vmatprep.subr.bf16.mxu0 0
        %1611 = vmatpush2.bf16.msra.mxu0 0
        %1612 = vmatprep.mubr.bf16.mxu0 0
        %1613 = vmatmul.mubr.bf16.gmra.mxu0 %v1537
        %v1614 = vpop.f32.mrf.mxu0
        %v1615 = vadd.f32 %v1500, %v1614
        %v1616 = vpop.f32.mrf.mxu0
        %v1617 = vpop.f32.mrf.mxu0
        %v1618 = vpop.f32.mrf.mxu0
        %1619 = vdwg.mxu0
        %v1620 = vmul.f32 %v1574, %v862
        %v1621 = vmul.f32 %v1574, %v866
        %v1622 = vmul.f32 %v1615, %v862
        %v1623 = vmul.f32 %v1615, %v866
        %1624 = vmatprep.subr.mxu0 0.0
        %1625 = vmatpush1.xpose.msra.mxu0 0.0
        %1626 = vmatprep.subr.mxu0 0.0
        %1627 = vmatpush1.xpose.msra.mxu0 0.0
        %1628 = vmatprep.subr.mxu0 0.0
        %1629 = vmatpush1.xpose.msra.mxu0 0.0
        %1630 = vmatprep.subr.mxu0 0.0
        %1631 = vmatpush1.xpose.msra.mxu0 0.0
        %1632 = vmatprep.subr.mxu0 0.0
        %1633 = vmatpush1.xpose.msra.mxu0 0.0
        %1634 = vmatprep.subr.mxu0 0.0
        %1635 = vmatpush1.xpose.msra.mxu0 0.0
        %1636 = vmatprep.subr.mxu0 0.0
        %1637 = vmatpush1.xpose.msra.mxu0 0.0
        %1638 = vmatprep.subr.mxu0 0.0
        %1639 = vmatpush1.xpose.msra.mxu0 0.0
        %1640 = vmatprep.subr.mxu0 0.0
        %1641 = vmatpush1.xpose.msra.mxu0 0.0
        %1642 = vmatprep.subr.mxu0 0.0
        %1643 = vmatpush1.xpose.msra.mxu0 0.0
        %1644 = vmatprep.subr.mxu0 0.0
        %1645 = vmatpush1.xpose.msra.mxu0 0.0
        %1646 = vmatprep.subr.mxu0 0.0
        %1647 = vmatpush1.xpose.msra.mxu0 0.0
        %1648 = vmatprep.subr.mxu0 0.0
        %1649 = vmatpush1.xpose.msra.mxu0 0.0
        %1650 = vmatprep.subr.mxu0 0.0
        %1651 = vmatpush1.xpose.msra.mxu0 0.0
        %1652 = vmatprep.subr.mxu0 0.0
        %1653 = vmatpush1.xpose.msra.mxu0 0.0
        %1654 = vmatprep.subr.mxu0 0.0
        %1655 = vmatpush1.xpose.msra.mxu0 %v1576
        %1656 = vmatprep.subr.mxu0 0.0
        %1657 = vmatpush2.xpose.msra.mxu0 0.0
        %1658 = vmatprep.subr.mxu0 0.0
        %1659 = vmatpush2.xpose.msra.mxu0 0.0
        %1660 = vmatprep.subr.mxu0 0.0
        %1661 = vmatpush2.xpose.msra.mxu0 0.0
        %1662 = vmatprep.subr.mxu0 0.0
        %1663 = vmatpush2.xpose.msra.mxu0 0.0
        %1664 = vmatprep.subr.mxu0 0.0
        %1665 = vmatpush2.xpose.msra.mxu0 0.0
        %1666 = vmatprep.subr.mxu0 0.0
        %1667 = vmatpush2.xpose.msra.mxu0 0.0
        %1668 = vmatprep.subr.mxu0 0.0
        %1669 = vmatpush2.xpose.msra.mxu0 0.0
        %1670 = vmatprep.subr.mxu0 0.0
        %1671 = vmatpush2.xpose.msra.mxu0 0.0
        %1672 = vmatprep.subr.mxu0 0.0
        %1673 = vmatpush2.xpose.msra.mxu0 0.0
        %1674 = vmatprep.subr.mxu0 0.0
        %1675 = vmatpush2.xpose.msra.mxu0 0.0
        %1676 = vmatprep.subr.mxu0 0.0
        %1677 = vmatpush2.xpose.msra.mxu0 0.0
        %1678 = vmatprep.subr.mxu0 0.0
        %1679 = vmatpush2.xpose.msra.mxu0 0.0
        %1680 = vmatprep.subr.mxu0 0.0
        %1681 = vmatpush2.xpose.msra.mxu0 0.0
        %1682 = vmatprep.subr.mxu0 0.0
        %1683 = vmatpush2.xpose.msra.mxu0 0.0
        %1684 = vmatprep.subr.mxu0 0.0
        %1685 = vmatpush2.xpose.msra.mxu0 0.0
        %1686 = vmatprep.subr.mxu0 0.0
        %1687 = vmatpush2.xpose.msra.mxu0 0.0
        %1688 = vmatprep.mubr.f32.mxu0 0.0
        %1689 = vmatmul.mubr.f32.gmra.mxu0 %v1620
        %v1690 = vpop.f32.mrf.mxu0
        %v1691 = vadd.f32 %v877, %v1690
        %v1692 = vpop.f32.mrf.mxu0
        %1693 = vdwg.mxu0
        %1694 = vmatprep.subr.mxu0 0.0
        %1695 = vmatpush1.xpose.msra.mxu0 0.0
        %1696 = vmatprep.subr.mxu0 0.0
        %1697 = vmatpush1.xpose.msra.mxu0 0.0
        %1698 = vmatprep.subr.mxu0 0.0
        %1699 = vmatpush1.xpose.msra.mxu0 0.0
        %1700 = vmatprep.subr.mxu0 0.0
        %1701 = vmatpush1.xpose.msra.mxu0 0.0
        %1702 = vmatprep.subr.mxu0 0.0
        %1703 = vmatpush1.xpose.msra.mxu0 0.0
        %1704 = vmatprep.subr.mxu0 0.0
        %1705 = vmatpush1.xpose.msra.mxu0 0.0
        %1706 = vmatprep.subr.mxu0 0.0
        %1707 = vmatpush1.xpose.msra.mxu0 0.0
        %1708 = vmatprep.subr.mxu0 0.0
        %1709 = vmatpush1.xpose.msra.mxu0 0.0
        %1710 = vmatprep.subr.mxu0 0.0
        %1711 = vmatpush1.xpose.msra.mxu0 0.0
        %1712 = vmatprep.subr.mxu0 0.0
        %1713 = vmatpush1.xpose.msra.mxu0 0.0
        %1714 = vmatprep.subr.mxu0 0.0
        %1715 = vmatpush1.xpose.msra.mxu0 0.0
        %1716 = vmatprep.subr.mxu0 0.0
        %1717 = vmatpush1.xpose.msra.mxu0 0.0
        %1718 = vmatprep.subr.mxu0 0.0
        %1719 = vmatpush1.xpose.msra.mxu0 0.0
        %1720 = vmatprep.subr.mxu0 0.0
        %1721 = vmatpush1.xpose.msra.mxu0 0.0
        %1722 = vmatprep.subr.mxu0 0.0
        %1723 = vmatpush1.xpose.msra.mxu0 0.0
        %1724 = vmatprep.subr.mxu0 0.0
        %1725 = vmatpush1.xpose.msra.mxu0 %v1576
        %1726 = vmatprep.subr.mxu0 0.0
        %1727 = vmatpush2.xpose.msra.mxu0 0.0
        %1728 = vmatprep.subr.mxu0 0.0
        %1729 = vmatpush2.xpose.msra.mxu0 0.0
        %1730 = vmatprep.subr.mxu0 0.0
        %1731 = vmatpush2.xpose.msra.mxu0 0.0
        %1732 = vmatprep.subr.mxu0 0.0
        %1733 = vmatpush2.xpose.msra.mxu0 0.0
        %1734 = vmatprep.subr.mxu0 0.0
        %1735 = vmatpush2.xpose.msra.mxu0 0.0
        %1736 = vmatprep.subr.mxu0 0.0
        %1737 = vmatpush2.xpose.msra.mxu0 0.0
        %1738 = vmatprep.subr.mxu0 0.0
        %1739 = vmatpush2.xpose.msra.mxu0 0.0
        %1740 = vmatprep.subr.mxu0 0.0
        %1741 = vmatpush2.xpose.msra.mxu0 0.0
        %1742 = vmatprep.subr.mxu0 0.0
        %1743 = vmatpush2.xpose.msra.mxu0 0.0
        %1744 = vmatprep.subr.mxu0 0.0
        %1745 = vmatpush2.xpose.msra.mxu0 0.0
        %1746 = vmatprep.subr.mxu0 0.0
        %1747 = vmatpush2.xpose.msra.mxu0 0.0
        %1748 = vmatprep.subr.mxu0 0.0
        %1749 = vmatpush2.xpose.msra.mxu0 0.0
        %1750 = vmatprep.subr.mxu0 0.0
        %1751 = vmatpush2.xpose.msra.mxu0 0.0
        %1752 = vmatprep.subr.mxu0 0.0
        %1753 = vmatpush2.xpose.msra.mxu0 0.0
        %1754 = vmatprep.subr.mxu0 0.0
        %1755 = vmatpush2.xpose.msra.mxu0 0.0
        %1756 = vmatprep.subr.mxu0 0.0
        %1757 = vmatpush2.xpose.msra.mxu0 0.0
        %1758 = vmatprep.mubr.f32.mxu0 0.0
        %1759 = vmatmul.mubr.f32.gmra.mxu0 %v1621
        %v1760 = vpop.f32.mrf.mxu0
        %v1761 = vadd.f32 %v877, %v1760
        %v1762 = vpop.f32.mrf.mxu0
        %1763 = vdwg.mxu0
        %v1764 = vsel %vm1019, %v1691, -inf
        %1765 = vmax.xlane.f32.xlu0 %v1764
        %v1766 = vpop.xlane.xlu0 %1765
        %v1767 = vsel %vm1019, %v1761, -inf
        %1768 = vmax.xlane.f32.xlu0 %v1767
        %v1769 = vpop.xlane.xlu0 %1768
        %v1770 = vsub.f32 %v1691, %v1766
        %v1771 = vsub.f32 %v1761, %v1769
        %v1772 = vmul.f32 %v1770, 1.442695
        %v1773 = vpow.pop %v1772
        %v1774 = vmul.f32 %v1771, 1.442695
        %v1775 = vpow.pop %v1774
        %v1776 = vsel %vm1019, %v1773, 0.0
        %1777 = vadd.xlane.f32.xlu0 %v1776
        %v1778 = vpop.xlane.xlu0 %1777
        %v1779 = vsel %vm1019, %v1775, 0.0
        %1780 = vadd.xlane.f32.xlu0 %v1779
        %v1781 = vpop.xlane.xlu0 %1780
        %v1782 = vrcp.pop %v1778
        %v1783 = vrcp.pop %v1781
        %v1784 = vmul.f32 %v1773, %v1782
        %v1785 = vmul.f32 %v1775, %v1783
        %v1787 = vsel %vm1019, %v1784, 0
        %1789 = vmatprep.subr.mxu0 0.0
        %1790 = vmatpush1.msra.mxu0 0.0
        %1791 = vmatprep.subr.mxu0 0.0
        %1792 = vmatpush1.msra.mxu0 0.0
        %1793 = vmatprep.subr.mxu0 0.0
        %1794 = vmatpush1.msra.mxu0 0.0
        %1795 = vmatprep.subr.mxu0 0.0
        %1796 = vmatpush1.msra.mxu0 0.0
        %1797 = vmatprep.subr.mxu0 0.0
        %1798 = vmatpush1.msra.mxu0 0.0
        %1799 = vmatprep.subr.mxu0 0.0
        %1800 = vmatpush1.msra.mxu0 0.0
        %1801 = vmatprep.subr.mxu0 0.0
        %1802 = vmatpush1.msra.mxu0 0.0
        %1803 = vmatprep.subr.mxu0 0.0
        %1804 = vmatpush1.msra.mxu0 0.0
        %1805 = vmatprep.subr.mxu0 0.0
        %1806 = vmatpush1.msra.mxu0 0.0
        %1807 = vmatprep.subr.mxu0 0.0
        %1808 = vmatpush1.msra.mxu0 0.0
        %1809 = vmatprep.subr.mxu0 0.0
        %1810 = vmatpush1.msra.mxu0 0.0
        %1811 = vmatprep.subr.mxu0 0.0
        %1812 = vmatpush1.msra.mxu0 0.0
        %1813 = vmatprep.subr.mxu0 0.0
        %1814 = vmatpush1.msra.mxu0 0.0
        %1815 = vmatprep.subr.mxu0 0.0
        %1816 = vmatpush1.msra.mxu0 0.0
        %1817 = vmatprep.subr.mxu0 0.0
        %1818 = vmatpush1.msra.mxu0 0.0
        %1819 = vmatprep.subr.mxu0 0.0
        %1820 = vmatpush1.msra.mxu0 %v1622
        %1821 = vmatprep.subr.mxu0 0.0
        %1822 = vmatpush2.msra.mxu0 0.0
        %1823 = vmatprep.subr.mxu0 0.0
        %1824 = vmatpush2.msra.mxu0 0.0
        %1825 = vmatprep.subr.mxu0 0.0
        %1826 = vmatpush2.msra.mxu0 0.0
        %1827 = vmatprep.subr.mxu0 0.0
        %1828 = vmatpush2.msra.mxu0 0.0
        %1829 = vmatprep.subr.mxu0 0.0
        %1830 = vmatpush2.msra.mxu0 0.0
        %1831 = vmatprep.subr.mxu0 0.0
        %1832 = vmatpush2.msra.mxu0 0.0
        %1833 = vmatprep.subr.mxu0 0.0
        %1834 = vmatpush2.msra.mxu0 0.0
        %1835 = vmatprep.subr.mxu0 0.0
        %1836 = vmatpush2.msra.mxu0 0.0
        %1837 = vmatprep.subr.mxu0 0.0
        %1838 = vmatpush2.msra.mxu0 0.0
        %1839 = vmatprep.subr.mxu0 0.0
        %1840 = vmatpush2.msra.mxu0 0.0
        %1841 = vmatprep.subr.mxu0 0.0
        %1842 = vmatpush2.msra.mxu0 0.0
        %1843 = vmatprep.subr.mxu0 0.0
        %1844 = vmatpush2.msra.mxu0 0.0
        %1845 = vmatprep.subr.mxu0 0.0
        %1846 = vmatpush2.msra.mxu0 0.0
        %1847 = vmatprep.subr.mxu0 0.0
        %1848 = vmatpush2.msra.mxu0 0.0
        %1849 = vmatprep.subr.mxu0 0.0
        %1850 = vmatpush2.msra.mxu0 0.0
        %1851 = vmatprep.subr.mxu0 0.0
        %1852 = vmatpush2.msra.mxu0 0.0
        %1853 = vmatprep.mubr.f32.mxu0 0.0
        %1854 = vmatmul.mubr.f32.gmra.mxu0 %v1787
        %v1855 = vpop.f32.mrf.mxu0
        %v1856 = vadd.f32 0.0, %v1855
        %v1857 = vpop.f32.mrf.mxu0
        %1858 = vdwg.mxu0
        %v1860 = vsel %vm1019, %v1785, 0
        %1862 = vmatprep.subr.mxu0 0.0
        %1863 = vmatpush1.msra.mxu0 0.0
        %1864 = vmatprep.subr.mxu0 0.0
        %1865 = vmatpush1.msra.mxu0 0.0
        %1866 = vmatprep.subr.mxu0 0.0
        %1867 = vmatpush1.msra.mxu0 0.0
        %1868 = vmatprep.subr.mxu0 0.0
        %1869 = vmatpush1.msra.mxu0 0.0
        %1870 = vmatprep.subr.mxu0 0.0
        %1871 = vmatpush1.msra.mxu0 0.0
        %1872 = vmatprep.subr.mxu0 0.0
        %1873 = vmatpush1.msra.mxu0 0.0
        %1874 = vmatprep.subr.mxu0 0.0
        %1875 = vmatpush1.msra.mxu0 0.0
        %1876 = vmatprep.subr.mxu0 0.0
        %1877 = vmatpush1.msra.mxu0 0.0
        %1878 = vmatprep.subr.mxu0 0.0
        %1879 = vmatpush1.msra.mxu0 0.0
        %1880 = vmatprep.subr.mxu0 0.0
        %1881 = vmatpush1.msra.mxu0 0.0
        %1882 = vmatprep.subr.mxu0 0.0
        %1883 = vmatpush1.msra.mxu0 0.0
        %1884 = vmatprep.subr.mxu0 0.0
        %1885 = vmatpush1.msra.mxu0 0.0
        %1886 = vmatprep.subr.mxu0 0.0
        %1887 = vmatpush1.msra.mxu0 0.0
        %1888 = vmatprep.subr.mxu0 0.0
        %1889 = vmatpush1.msra.mxu0 0.0
        %1890 = vmatprep.subr.mxu0 0.0
        %1891 = vmatpush1.msra.mxu0 0.0
        %1892 = vmatprep.subr.mxu0 0.0
        %1893 = vmatpush1.msra.mxu0 %v1623
        %1894 = vmatprep.subr.mxu0 0.0
        %1895 = vmatpush2.msra.mxu0 0.0
        %1896 = vmatprep.subr.mxu0 0.0
        %1897 = vmatpush2.msra.mxu0 0.0
        %1898 = vmatprep.subr.mxu0 0.0
        %1899 = vmatpush2.msra.mxu0 0.0
        %1900 = vmatprep.subr.mxu0 0.0
        %1901 = vmatpush2.msra.mxu0 0.0
        %1902 = vmatprep.subr.mxu0 0.0
        %1903 = vmatpush2.msra.mxu0 0.0
        %1904 = vmatprep.subr.mxu0 0.0
        %1905 = vmatpush2.msra.mxu0 0.0
        %1906 = vmatprep.subr.mxu0 0.0
        %1907 = vmatpush2.msra.mxu0 0.0
        %1908 = vmatprep.subr.mxu0 0.0
        %1909 = vmatpush2.msra.mxu0 0.0
        %1910 = vmatprep.subr.mxu0 0.0
        %1911 = vmatpush2.msra.mxu0 0.0
        %1912 = vmatprep.subr.mxu0 0.0
        %1913 = vmatpush2.msra.mxu0 0.0
        %1914 = vmatprep.subr.mxu0 0.0
        %1915 = vmatpush2.msra.mxu0 0.0
        %1916 = vmatprep.subr.mxu0 0.0
        %1917 = vmatpush2.msra.mxu0 0.0
        %1918 = vmatprep.subr.mxu0 0.0
        %1919 = vmatpush2.msra.mxu0 0.0
        %1920 = vmatprep.subr.mxu0 0.0
        %1921 = vmatpush2.msra.mxu0 0.0
        %1922 = vmatprep.subr.mxu0 0.0
        %1923 = vmatpush2.msra.mxu0 0.0
        %1924 = vmatprep.subr.mxu0 0.0
        %1925 = vmatpush2.msra.mxu0 0.0
        %1926 = vmatprep.mubr.f32.mxu0 0.0
        %1927 = vmatmul.mubr.f32.gmra.mxu0 %v1860
        %v1928 = vpop.f32.mrf.mxu0
        %v1929 = vadd.f32 0.0, %v1928
        %v1930 = vpop.f32.mrf.mxu0
        %1931 = vdwg.mxu0
        %v1932 = vadd.f32 %v1856, %v1929
        %v1933 = vpack.c.bf16 %v1932, %v1932
        %s1934 = scalar_lea.vmem [#allocation11], 16
        %v1935 = vld [vmem:[%s1934] sm:$0xf]
        %v1936 = vld [vmem:[%s1934 + $0x4] sm:$0xf]
        %v1937 = vld [vmem:[%s1934 + $0x8] sm:$0xf]
        %v1938 = vld [vmem:[%s1934 + $0xc] sm:$0xf]
        %s1939 = scalar_lea.vmem %s8, 1
        %v1940 = vld [vmem:[%s1939] sm:$0x1]
        %v1942 = vlaneseq
        %v1943 = vshrl.u32 %v1942, 7
        %v1944 = vsub.s32 0, %v1943
        %v1945 = vrot.slane %v1940, %v1944
        %v1951 = vunpack.c.l.b16 %v1935
        %v1952 = vunpack.c.l.b16 %v1936
        %v1953 = vunpack.c.l.b16 %v1937
        %v1954 = vunpack.c.l.b16 %v1938
        %v1955 = vpack.c.b16 %v1952, %v1951
        %v1956 = vpack.c.b16 %v1954, %v1953
        %v1960 = vsel %vm687, %v1933, 0
        %1962 = vmatprep.subr.bf16.mxu0 0
        %1963 = vmatpush1.bf16.msra.mxu0 0
        %1964 = vmatprep.subr.bf16.mxu0 0
        %1965 = vmatpush1.bf16.msra.mxu0 0
        %1966 = vmatprep.subr.bf16.mxu0 0
        %1967 = vmatpush1.bf16.msra.mxu0 0
        %1968 = vmatprep.subr.bf16.mxu0 0
        %1969 = vmatpush1.bf16.msra.mxu0 0
        %1970 = vmatprep.subr.bf16.mxu0 0
        %1971 = vmatpush1.bf16.msra.mxu0 0
        %1972 = vmatprep.subr.bf16.mxu0 0
        %1973 = vmatpush1.bf16.msra.mxu0 0
        %1974 = vmatprep.subr.bf16.mxu0 0
        %1975 = vmatpush1.bf16.msra.mxu0 %v1956
        %1976 = vmatprep.subr.bf16.mxu0 0
        %1977 = vmatpush1.bf16.msra.mxu0 %v1955
        %1978 = vmatprep.subr.bf16.mxu0 0
        %1979 = vmatpush2.bf16.msra.mxu0 0
        %1980 = vmatprep.subr.bf16.mxu0 0
        %1981 = vmatpush2.bf16.msra.mxu0 0
        %1982 = vmatprep.subr.bf16.mxu0 0
        %1983 = vmatpush2.bf16.msra.mxu0 0
        %1984 = vmatprep.subr.bf16.mxu0 0
        %1985 = vmatpush2.bf16.msra.mxu0 0
        %1986 = vmatprep.subr.bf16.mxu0 0
        %1987 = vmatpush2.bf16.msra.mxu0 0
        %1988 = vmatprep.subr.bf16.mxu0 0
        %1989 = vmatpush2.bf16.msra.mxu0 0
        %1990 = vmatprep.subr.bf16.mxu0 0
        %1991 = vmatpush2.bf16.msra.mxu0 0
        %1992 = vmatprep.subr.bf16.mxu0 0
        %1993 = vmatpush2.bf16.msra.mxu0 0
        %1994 = vmatprep.mubr.bf16.mxu0 0
        %1995 = vmatmul.mubr.bf16.gmra.mxu0 %v1960
        %v1996 = vpop.f32.mrf.mxu0
        %v1997 = vadd.f32 %v1945, %v1996
        %v1998 = vpop.f32.mrf.mxu0
        %v1999 = vpop.f32.mrf.mxu0
        %v2000 = vpop.f32.mrf.mxu0
        %2001 = vdwg.mxu0
        %v2002 = vadd.f32 %v1475, %v1997
        %s2003 = scalar_lea.vmem %s9, 1
        %v2004 = vld [vmem:[%s2003] sm:$0x1]
        %s2005 = scalar_lea.vmem %s10, 1
        %v2006 = vld [vmem:[%s2005] sm:$0x1]
        %v2007 = vsel %vm687, %v2002, 0.0
        %2008 = vadd.xlane.f32.xlu0 %v2007
        %v2009 = vpop.xlane.xlu0 %2008
        %v2010 = vmul.f32 %v2009, 0.03125
        %v2011 = vsub.f32 %v2002, %v2010
        %v2012 = vmul.f32 %v2011, %v2011
        %v2013 = vsel %vm687, %v2012, 0.0
        %2014 = vadd.xlane.f32.xlu0 %v2013
        %v2015 = vpop.xlane.xlu0 %2014
        %v2016 = vmul.f32 %v2015, 0.03125
        %v2017 = vadd.f32 %v2016, 1e-05
        %v2018 = vrsqrt.pop %v2017
        %v2019 = vmul.f32 %v2011, %v2018
        %v2021 = vlaneseq
        %v2022 = vshrl.u32 %v2021, 7
        %v2023 = vsub.s32 0, %v2022
        %v2024 = vrot.slane %v2004, %v2023
        %v2026 = vmul.f32 %v2019, %v2024
        %v2028 = vlaneseq
        %v2029 = vshrl.u32 %v2028, 7
        %v2030 = vsub.s32 0, %v2029
        %v2031 = vrot.slane %v2006, %v2030
        %v2033 = vadd.f32 %v2026, %v2031
        %v2034 = vpack.c.bf16 %v2033, %v2033
        %s2035 = scalar_lea.vmem [#allocation13], 16
        %v2036 = vld [vmem:[%s2035] sm:$0xf]
        %v2037 = vld [vmem:[%s2035 + $0x4] sm:$0xf]
        %v2038 = vld [vmem:[%s2035 + $0x8] sm:$0xf]
        %v2039 = vld [vmem:[%s2035 + $0xc] sm:$0xf]
        %s2040 = scalar_lea.vmem %s12, 1
        %v2041 = vld [vmem:[%s2040] sm:$0x1]
        %v2043 = vlaneseq
        %v2044 = vshrl.u32 %v2043, 7
        %v2045 = vsub.s32 0, %v2044
        %v2046 = vrot.slane %v2041, %v2045
        %v2052 = vunpack.c.l.b16 %v2036
        %v2053 = vunpack.c.l.b16 %v2037
        %v2054 = vunpack.c.l.b16 %v2038
        %v2055 = vunpack.c.l.b16 %v2039
        %v2056 = vpack.c.b16 %v2053, %v2052
        %v2057 = vpack.c.b16 %v2055, %v2054
        %v2061 = vsel %vm687, %v2034, 0
        %2063 = vmatprep.subr.bf16.mxu0 0
        %2064 = vmatpush1.bf16.msra.mxu0 0
        %2065 = vmatprep.subr.bf16.mxu0 0
        %2066 = vmatpush1.bf16.msra.mxu0 0
        %2067 = vmatprep.subr.bf16.mxu0 0
        %2068 = vmatpush1.bf16.msra.mxu0 0
        %2069 = vmatprep.subr.bf16.mxu0 0
        %2070 = vmatpush1.bf16.msra.mxu0 0
        %2071 = vmatprep.subr.bf16.mxu0 0
        %2072 = vmatpush1.bf16.msra.mxu0 0
        %2073 = vmatprep.subr.bf16.mxu0 0
        %2074 = vmatpush1.bf16.msra.mxu0 0
        %2075 = vmatprep.subr.bf16.mxu0 0
        %2076 = vmatpush1.bf16.msra.mxu0 %v2057
        %2077 = vmatprep.subr.bf16.mxu0 0
        %2078 = vmatpush1.bf16.msra.mxu0 %v2056
        %2079 = vmatprep.subr.bf16.mxu0 0
        %2080 = vmatpush2.bf16.msra.mxu0 0
        %2081 = vmatprep.subr.bf16.mxu0 0
        %2082 = vmatpush2.bf16.msra.mxu0 0
        %2083 = vmatprep.subr.bf16.mxu0 0
        %2084 = vmatpush2.bf16.msra.mxu0 0
        %2085 = vmatprep.subr.bf16.mxu0 0
        %2086 = vmatpush2.bf16.msra.mxu0 0
        %2087 = vmatprep.subr.bf16.mxu0 0
        %2088 = vmatpush2.bf16.msra.mxu0 0
        %2089 = vmatprep.subr.bf16.mxu0 0
        %2090 = vmatpush2.bf16.msra.mxu0 0
        %2091 = vmatprep.subr.bf16.mxu0 0
        %2092 = vmatpush2.bf16.msra.mxu0 0
        %2093 = vmatprep.subr.bf16.mxu0 0
        %2094 = vmatpush2.bf16.msra.mxu0 0
        %2095 = vmatprep.mubr.bf16.mxu0 0
        %2096 = vmatmul.mubr.bf16.gmra.mxu0 %v2061
        %v2097 = vpop.f32.mrf.mxu0
        %v2098 = vadd.f32 %v2046, %v2097
        %v2099 = vpop.f32.mrf.mxu0
        %v2100 = vpop.f32.mrf.mxu0
        %v2101 = vpop.f32.mrf.mxu0
        %2102 = vdwg.mxu0
        %v2103 = vmul.f32 %v2098, %v2098
        %v2104 = vmul.f32 %v2098, %v2103
        %v2105 = vmul.f32 %v2104, 0.044715
        %v2106 = vadd.f32 %v2098, %v2105
        %v2107 = vmul.f32 %v2106, 0.7978846
        %v2108 = vtanh.pop %v2107
        %v2109 = vadd.f32 %v2108, 1.0
        %v2110 = vmul.f32 %v2109, 0.5
        %v2111 = vmul.f32 %v2098, %v2110
        %v2112 = vpack.c.bf16 %v2111, %v2111
        %s2113 = scalar_lea.vmem [#allocation14], 32
        %v2114 = vld [vmem:[%s2113] sm:$0xf]
        %v2115 = vld [vmem:[%s2113 + $0x4] sm:$0xf]
        %v2116 = vld [vmem:[%s2113 + $0x8] sm:$0xf]
        %v2117 = vld [vmem:[%s2113 + $0xc] sm:$0xf]
        %v2118 = vld [vmem:[%s2113 + $0x10] sm:$0xf]
        %v2119 = vld [vmem:[%s2113 + $0x14] sm:$0xf]
        %v2120 = vld [vmem:[%s2113 + $0x18] sm:$0xf]
        %v2121 = vld [vmem:[%s2113 + $0x1c] sm:$0xf]
        %s2122 = scalar_lea.vmem %s14, 1
        %v2123 = vld [vmem:[%s2122] sm:$0x1]
        %v2125 = vlaneseq
        %v2126 = vshrl.u32 %v2125, 7
        %v2127 = vsub.s32 0, %v2126
        %v2128 = vrot.slane %v2123, %v2127
        %v2138 = vunpack.c.l.b16 %v2114
        %v2139 = vunpack.c.l.b16 %v2115
        %v2140 = vunpack.c.l.b16 %v2116
        %v2141 = vunpack.c.l.b16 %v2117
        %v2142 = vunpack.c.l.b16 %v2118
        %v2143 = vunpack.c.l.b16 %v2119
        %v2144 = vunpack.c.l.b16 %v2120
        %v2145 = vunpack.c.l.b16 %v2121
        %v2146 = vpack.c.b16 %v2139, %v2138
        %v2147 = vpack.c.b16 %v2141, %v2140
        %v2148 = vpack.c.b16 %v2143, %v2142
        %v2149 = vpack.c.b16 %v2145, %v2144
        %v2155 = vsel %vm1402, %v2112, 0
        %2157 = vmatprep.subr.bf16.mxu0 0
        %2158 = vmatpush1.bf16.msra.mxu0 0
        %2159 = vmatprep.subr.bf16.mxu0 0
        %2160 = vmatpush1.bf16.msra.mxu0 0
        %2161 = vmatprep.subr.bf16.mxu0 0
        %2162 = vmatpush1.bf16.msra.mxu0 0
        %2163 = vmatprep.subr.bf16.mxu0 0
        %2164 = vmatpush1.bf16.msra.mxu0 0
        %2165 = vmatprep.subr.bf16.mxu0 0
        %2166 = vmatpush1.bf16.msra.mxu0 %v2149
        %2167 = vmatprep.subr.bf16.mxu0 0
        %2168 = vmatpush1.bf16.msra.mxu0 %v2148
        %2169 = vmatprep.subr.bf16.mxu0 0
        %2170 = vmatpush1.bf16.msra.mxu0 %v2147
        %2171 = vmatprep.subr.bf16.mxu0 0
        %2172 = vmatpush1.bf16.msra.mxu0 %v2146
        %2173 = vmatprep.subr.bf16.mxu0 0
        %2174 = vmatpush2.bf16.msra.mxu0 0
        %2175 = vmatprep.subr.bf16.mxu0 0
        %2176 = vmatpush2.bf16.msra.mxu0 0
        %2177 = vmatprep.subr.bf16.mxu0 0
        %2178 = vmatpush2.bf16.msra.mxu0 0
        %2179 = vmatprep.subr.bf16.mxu0 0
        %2180 = vmatpush2.bf16.msra.mxu0 0
        %2181 = vmatprep.subr.bf16.mxu0 0
        %2182 = vmatpush2.bf16.msra.mxu0 0
        %2183 = vmatprep.subr.bf16.mxu0 0
        %2184 = vmatpush2.bf16.msra.mxu0 0
        %2185 = vmatprep.subr.bf16.mxu0 0
        %2186 = vmatpush2.bf16.msra.mxu0 0
        %2187 = vmatprep.subr.bf16.mxu0 0
        %2188 = vmatpush2.bf16.msra.mxu0 0
        %2189 = vmatprep.mubr.bf16.mxu0 0
        %2190 = vmatmul.mubr.bf16.gmra.mxu0 %v2155
        %v2191 = vpop.f32.mrf.mxu0
        %v2192 = vadd.f32 %v2128, %v2191
        %v2193 = vpop.f32.mrf.mxu0
        %v2194 = vpop.f32.mrf.mxu0
        %v2195 = vpop.f32.mrf.mxu0
        %2196 = vdwg.mxu0
        %v2197 = vadd.f32 %v2033, %v2192
        %s2198 = scalar_lea.vmem %s15, 1
        %v2199 = vld [vmem:[%s2198] sm:$0x1]
        %s2200 = scalar_lea.vmem %s16, 1
        %v2201 = vld [vmem:[%s2200] sm:$0x1]
        %v2202 = vsel %vm687, %v2197, 0.0
        %2203 = vadd.xlane.f32.xlu0 %v2202
        %v2204 = vpop.xlane.xlu0 %2203
        %v2205 = vmul.f32 %v2204, 0.03125
        %v2206 = vsub.f32 %v2197, %v2205
        %v2207 = vmul.f32 %v2206, %v2206
        %v2208 = vsel %vm687, %v2207, 0.0
        %2209 = vadd.xlane.f32.xlu0 %v2208
        %v2210 = vpop.xlane.xlu0 %2209
        %v2211 = vmul.f32 %v2210, 0.03125
        %v2212 = vadd.f32 %v2211, 1e-05
        %v2213 = vrsqrt.pop %v2212
        %v2214 = vmul.f32 %v2206, %v2213
        %v2216 = vlaneseq
        %v2217 = vshrl.u32 %v2216, 7
        %v2218 = vsub.s32 0, %v2217
        %v2219 = vrot.slane %v2199, %v2218
        %v2221 = vmul.f32 %v2214, %v2219
        %v2223 = vlaneseq
        %v2224 = vshrl.u32 %v2223, 7
        %v2225 = vsub.s32 0, %v2224
        %v2226 = vrot.slane %v2201, %v2225
        %v2228 = vadd.f32 %v2221, %v2226
        %v2229 = vmul.f32 %v2228, %v2228
        %vm2230 = vcmask 1040384
        %v2231 = vsel %vm2230, %v2229, 0.0
        %2232 = vadd.xlane.f32.xlu0 %v2231
        %v2233 = vpop.xlane.xlu0 %2232
        %v2234 = vrsqrt.pop %v2233
        %v2235 = vmul.f32 %v2233, %v2234
        %vm2236 = vcmp.eq.f32.partialorder %v2233, inf
        %v2237 = vsel %vm2236, %v2233, %v2235
        %vm2238 = vcmp.eq.f32.partialorder %v2233, 0.0
        %v2239 = vand.u32 %v2233, 2147483648
        %v2240 = vsel %vm2238, %v2239, %v2237
        %v2241 = vmax.f32 %v2240, 1e-12
        %v2242 = vrcp.pop %v2241
        %v2243 = vmul.f32 %v2228, %v2242
        %2244 = vst [vmem:[%s679] sm:$0x1] %v2243
        %s2245 = sand.u32 %s415, 1
        %s2246 = scalar_lea.sflag [#allocation4], %s2245
        %s2247 = sand.u32 %s415, 1
        %s2248 = scalar_lea.vmem [#allocation16], %s2247
        // Predicated region
        $region121: #{tpu_custom_call.1} parent=87 // pred_check
          %p2249 = pneg %p425
        $region122: #{tpu_custom_call.1} parent=87 // pred_check_branch
          %2251 = sbr.rel (%p2249) target = $region124
        $region123: #{tpu_custom_call.1} parent=87 // pred_region
          %s2253 = ssub.s32 16, 16
          %2254 = vsyncadd %s2246, %s2253
          %s2255 = smul.addr %s40, 16
          %s2256 = scalar_lea.hbm %s17, %s2255
          %s2258 = sshll.u32 %s2248, 4
          %s2259 = int_to_ptr.vmem [resolvable:$true] %s2258
          %2261 = dma.vmem_to_hbm [thread:$0]  %s2259, 16, %s2256, %s2246
        $region124: #{tpu_custom_call.1} parent=87 // pred_fallthru
          _
      $region88: #{tpu_custom_call.1} parent=5 // pred_fallthru
        _
      %p2262 = scmp.le.s32.totalorder 2, %s35
      // Predicated region
      $region125: #{tpu_custom_call.1} parent=5 // pred_check
        %p2263 = pneg %p2262
      $region126: #{tpu_custom_call.1} parent=5 // pred_check_branch
        %2265 = sbr.rel (%p2263) target = $region128
      $region127: #{tpu_custom_call.1} parent=5 // pred_region
        %s2266 = ssub.s32 %s35, 2
        // Predicated region
        $region129: #{tpu_custom_call.1} parent=127 // pred_check
          %p2267 = pneg %p431
        $region130: #{tpu_custom_call.1} parent=127 // pred_check_branch
          %2269 = sbr.rel (%p2267) target = $region132
        $region131: #{tpu_custom_call.1} parent=127 // pred_region
          %s2270 = sand.u32 %s416, 1
          %s2271 = scalar_lea.sflag [#allocation4], %s2270
          %s2272 = sand.u32 %s416, 1
          %s2273 = scalar_lea.vmem [#allocation16], %s2272
          %2274 = dma.done %s2271, 16
        $region132: #{tpu_custom_call.1} parent=127 // pred_fallthru
          _
      $region128: #{tpu_custom_call.1} parent=5 // pred_fallthru
        _
    $region6: #{tpu_custom_call.1} parent=1 // loop_footer
      %s39 = sadd.s32 1, %s35
    $region7: #{tpu_custom_call.1} parent=1 // loop_footer_branch
      %34 = sbr.rel target = $region3
    $region8: #{tpu_custom_call.1} parent=1 // loop_exit
      _
    %2275 = vsyncpa [#allocation3], 1
    %s2276 = scalar_lea.sflag [#allocation3], 1
    %2277 = vsyncpa %s2276, 1
    %2278 = vsyncpa [#allocation6], 1
    %s2279 = scalar_lea.sflag [#allocation6], 1
    %2280 = vsyncpa %s2279, 1
    %2281 = vsyncpa [#allocation9], 1
    %2282 = vsyncpa [#allocation12], 1
    %2283 = vsyncpa [#allocation15], 1
    %2284 = vsyncpa [#allocation4], 1
    %s2285 = scalar_lea.sflag [#allocation4], 1
    %2286 = vsyncpa %s2285, 1

</llo_original>
